<compile_context>
chip_gen: v7x
topology: tpu7x:2x2x1
jax: 0.10.0
libtpu: 0.0.40
codegen_flags: <defaults>
</compile_context>

<pallas_src>
import functools
import math

import jax
import jax.numpy as jnp
from jax.experimental import pallas as pl
from jax.experimental.pallas import tpu as pltpu

# ----------------------------- config (small, synthetic) ---------------------
H = 32            # hidden size
NH = 4            # attention heads
DH = H // NH      # head dim
FF = 64           # intermediate (FFN) size
N_ENC = 2         # encoder layers
N_DEC = 2         # decoder layers
VOCAB_SRC = 64
VOCAB_TGT = 72
V_PAD = 128       # LM head padded to a lane-dense 128-wide output
MAX_POS = 32
EPS = 1e-12
NEG = -1e9


# ----------------------------- in-kernel helpers (traced) --------------------
def _ln_f32(x, g, b):
    mu = jnp.mean(x, axis=-1, keepdims=True)
    var = jnp.mean(jnp.square(x - mu), axis=-1, keepdims=True)
    return (x - mu) * jax.lax.rsqrt(var + EPS) * g + b


def _gelu_f32(x):
    # tanh-approx GELU (EUP-friendly); ~1e-3 from HF erf-GELU, structurally same.
    c = math.sqrt(2.0 / math.pi)
    return 0.5 * x * (1.0 + jnp.tanh(c * (x + 0.044715 * x * x * x)))


def _dot_bf16(x, w):
    # bf16 MXU operands, f32 accumulation.
    return jnp.dot(x.astype(jnp.bfloat16), w.astype(jnp.bfloat16),
                   preferred_element_type=jnp.float32)


def _split_heads(x_sh):
    # [S, H] -> [NH, S, DH] via lane slices + leading-dim concat (no minor-dim
    # reshape, no scratch stores).
    return jnp.concatenate(
        [x_sh[None, :, h * DH:(h + 1) * DH] for h in range(NH)], axis=0)


def _mha_heads(q_hsd, k_hsd, v_hsd, bias):
    """Batched-over-heads attention kept entirely in vregs.

    q_hsd: [NH, Sq, DH]; k_hsd/v_hsd: [NH, Sk, DH]; bias broadcastable to
    [Sq, Sk] (additive, 0 / -1e9).  Returns lane-dense context [Sq, H].
    """
    scale = 1.0 / math.sqrt(DH)
    s = jnp.einsum("hqd,hkd->hqk",
                   q_hsd.astype(jnp.bfloat16), k_hsd.astype(jnp.bfloat16),
                   preferred_element_type=jnp.float32) * scale
    s = s + bias[None, :, :]
    m = jnp.max(s, axis=-1, keepdims=True)
    p = jnp.exp(s - m)
    p = p * pl.reciprocal(jnp.sum(p, axis=-1, keepdims=True), approx=True)
    ctx = jnp.einsum("hqk,hkd->hqd",
                     p.astype(jnp.bfloat16), v_hsd.astype(jnp.bfloat16),
                     preferred_element_type=jnp.float32)   # [NH, Sq, DH]
    return jnp.concatenate([ctx[h] for h in range(NH)], axis=-1)   # [Sq, H]


# ----------------------------- Pallas megakernels ----------------------------
def _enc_stack_kernel(e_ref, bias_ref, eg_ref, eb_ref,
                      wqkv_ref, bqkv_ref, wo_ref, bo_ref,
                      ln1g_ref, ln1b_ref, w1_ref, b1_ref, w2_ref, b2_ref,
                      ln2g_ref, ln2b_ref,
                      o_ref, h_vmem):
    l = pl.program_id(1)

    @pl.when(l == 0)
    def _():
        # embedding LayerNorm folded in as the prologue of the first layer step
        h_vmem[...] = _ln_f32(e_ref[...].astype(jnp.float32),
                              eg_ref[...], eb_ref[...])

    h = h_vmem[...]                                      # [S, H] f32, VMEM-resident
    bias = bias_ref[...]                                 # [1, S] additive pad bias

    # fused QKV projection
    qkv = _dot_bf16(h, wqkv_ref[...]) + bqkv_ref[...]    # [S, 3H]
    ctx = _mha_heads(_split_heads(qkv[:, :H]),
                     _split_heads(qkv[:, H:2 * H]),
                     _split_heads(qkv[:, 2 * H:]),
                     bias)                               # [S, H]
    attn = _dot_bf16(ctx, wo_ref[...]) + bo_ref[...]
    h1 = _ln_f32(attn + h, ln1g_ref[...], ln1b_ref[...])

    f = _gelu_f32(_dot_bf16(h1, w1_ref[...]) + b1_ref[...])
    f = _dot_bf16(f, w2_ref[...]) + b2_ref[...]
    h2 = _ln_f32(f + h1, ln2g_ref[...], ln2b_ref[...])
    h_vmem[...] = h2

    @pl.when(l == pl.num_programs(1) - 1)
    def _():
        o_ref[...] = h2.astype(o_ref.dtype)


def _dec_stack_kernel(e_ref, enc_ref, sbias_ref, xbias_ref, eg_ref, eb_ref,
                      s_wqkv_ref, s_bqkv_ref, s_wo_ref, s_bo_ref,
                      s_lng_ref, s_lnb_ref,
                      c_wq_ref, c_bq_ref, c_wkv_ref, c_bkv_ref,
                      c_wo_ref, c_bo_ref, c_lng_ref, c_lnb_ref,
                      w1_ref, b1_ref, w2_ref, b2_ref, f_lng_ref, f_lnb_ref,
                      lm_w_ref, lm_b_ref,
                      o_ref, h_vmem):
    l = pl.program_id(1)

    @pl.when(l == 0)
    def _():
        h_vmem[...] = _ln_f32(e_ref[...].astype(jnp.float32),
                              eg_ref[...], eb_ref[...])

    h = h_vmem[...]                                      # [St, H]
    enc = enc_ref[...].astype(jnp.float32)               # [Ss, H]

    # ---- causal + padding masked self-attention (fused QKV) ----
    qkv = _dot_bf16(h, s_wqkv_ref[...]) + s_bqkv_ref[...]
    ctx = _mha_heads(_split_heads(qkv[:, :H]),
                     _split_heads(qkv[:, H:2 * H]),
                     _split_heads(qkv[:, 2 * H:]),
                     sbias_ref[...])                     # [St, H]
    attn = _dot_bf16(ctx, s_wo_ref[...]) + s_bo_ref[...]
    h1 = _ln_f32(attn + h, s_lng_ref[...], s_lnb_ref[...])

    # ---- cross-attention over encoder states (fused KV) ----
    q2 = _dot_bf16(h1, c_wq_ref[...]) + c_bq_ref[...]
    kv = _dot_bf16(enc, c_wkv_ref[...]) + c_bkv_ref[...]
    ctx2 = _mha_heads(_split_heads(q2),
                      _split_heads(kv[:, :H]),
                      _split_heads(kv[:, H:2 * H]),
                      xbias_ref[...])                    # [St, H]
    attn2 = _dot_bf16(ctx2, c_wo_ref[...]) + c_bo_ref[...]
    h2 = _ln_f32(attn2 + h1, c_lng_ref[...], c_lnb_ref[...])

    # ---- FFN ----
    f = _gelu_f32(_dot_bf16(h2, w1_ref[...]) + b1_ref[...])
    f = _dot_bf16(f, w2_ref[...]) + b2_ref[...]
    h3 = _ln_f32(f + h2, f_lng_ref[...], f_lnb_ref[...])
    h_vmem[...] = h3

    @pl.when(l == pl.num_programs(1) - 1)
    def _():
        # LM head folded in as the epilogue of the last decoder layer
        o_ref[...] = (_dot_bf16(h3, lm_w_ref[...]) + lm_b_ref[...]
                      ).astype(o_ref.dtype)


# ----------------------------- BlockSpec helpers ------------------------------
def _batch_spec(a):
    """Leading dim is the batch grid axis; rest is a full block."""
    rest = tuple(a.shape[1:])
    return pl.BlockSpec((None,) + rest,
                        lambda b, l, _n=len(rest): (b,) + (0,) * _n)


def _layer_spec(a):
    """Leading dim is the layer grid axis (stacked per-layer weights)."""
    rest = tuple(a.shape[1:])
    return pl.BlockSpec((None,) + rest,
                        lambda b, l, _n=len(rest): (l,) + (0,) * _n)


def _global_spec(a):
    """Whole array, same block every grid step."""
    return pl.BlockSpec(tuple(a.shape), lambda b, l, _n=a.ndim: (0,) * _n)


ENC_LAYER_KEYS = ("wqkv", "bqkv", "wo", "bo", "ln1_g", "ln1_b",
                  "w1", "b1", "w2", "b2", "ln2_g", "ln2_b")
DEC_LAYER_KEYS = ("s_wqkv", "s_bqkv", "s_wo", "s_bo", "s_ln_g", "s_ln_b",
                  "c_wq", "c_bq", "c_wkv", "c_bkv", "c_wo", "c_bo",
                  "c_ln_g", "c_ln_b",
                  "w1", "b1", "w2", "b2", "f_ln_g", "f_ln_b")


def enc_stack_call(p, e, bias, B, S):
    lp = p["layers"]
    args = [e, bias, p["emb_ln_g"], p["emb_ln_b"]] + [lp[k] for k in ENC_LAYER_KEYS]
    in_specs = ([_batch_spec(e), _batch_spec(bias),
                 _global_spec(p["emb_ln_g"]), _global_spec(p["emb_ln_b"])]
                + [_layer_spec(lp[k]) for k in ENC_LAYER_KEYS])
    return pl.pallas_call(
        _enc_stack_kernel,
        out_shape=jax.ShapeDtypeStruct((B, S, H), jnp.float32),
        grid_spec=pltpu.PrefetchScalarGridSpec(
            num_scalar_prefetch=0,
            grid=(B, N_ENC),
            in_specs=in_specs,
            out_specs=pl.BlockSpec((None, S, H), lambda b, l: (b, 0, 0)),
            scratch_shapes=[pltpu.VMEM((S, H), jnp.float32)],
        ),
        compiler_params=pltpu.CompilerParams(
            dimension_semantics=("parallel", "arbitrary")),
    )(*args)


def dec_stack_call(p, e, enc_hidden, sbias, xbias, B, St, Ss):
    lp = p["layers"]
    args = ([e, enc_hidden, sbias, xbias, p["emb_ln_g"], p["emb_ln_b"]]
            + [lp[k] for k in DEC_LAYER_KEYS]
            + [p["lm_w"], p["lm_b"]])
    in_specs = ([_batch_spec(e), _batch_spec(enc_hidden),
                 _batch_spec(sbias), _batch_spec(xbias),
                 _global_spec(p["emb_ln_g"]), _global_spec(p["emb_ln_b"])]
                + [_layer_spec(lp[k]) for k in DEC_LAYER_KEYS]
                + [_global_spec(p["lm_w"]), _global_spec(p["lm_b"])])
    return pl.pallas_call(
        _dec_stack_kernel,
        out_shape=jax.ShapeDtypeStruct((B, St, V_PAD), jnp.float32),
        grid_spec=pltpu.PrefetchScalarGridSpec(
            num_scalar_prefetch=0,
            grid=(B, N_DEC),
            in_specs=in_specs,
            out_specs=pl.BlockSpec((None, St, V_PAD), lambda b, l: (b, 0, 0)),
            scratch_shapes=[pltpu.VMEM((St, H), jnp.float32)],
        ),
        compiler_params=pltpu.CompilerParams(
            dimension_semantics=("parallel", "arbitrary")),
    )(*args)


# ----------------------------- forward (glue in plain JAX) --------------------
def encoder_forward(p, input_ids, attention_mask):
    B, S = input_ids.shape
    # TODO(synk): embedding gather stays in plain JAX (no dedicated gather
    # kernel needed at this size).
    e = p["word_emb"][input_ids] + p["pos_emb"][:S][None, :, :]
    # additive key-padding bias, built once (not per layer)
    bias = ((1.0 - attention_mask.astype(jnp.float32)) * NEG)[:, None, :]  # [B,1,S]
    return enc_stack_call(p, e, bias, B, S)              # last_hidden_state [B,S,H]


def decoder_forward(p, dec_ids, dec_mask, enc_hidden, enc_mask):
    B, St = dec_ids.shape
    Ss = enc_hidden.shape[1]
    e = p["word_emb"][dec_ids] + p["pos_emb"][:St][None, :, :]
    dmask_f = dec_mask.astype(jnp.float32)
    causal = (jnp.arange(St)[:, None] >= jnp.arange(St)[None, :]).astype(jnp.float32)
    sbias = (1.0 - causal[None, :, :] * dmask_f[:, None, :]) * NEG      # [B,St,St]
    xbias = ((1.0 - enc_mask.astype(jnp.float32)) * NEG)[:, None, :]    # [B,1,Ss]
    logits_pad = dec_stack_call(p, e, enc_hidden, sbias, xbias, B, St, Ss)
    return logits_pad[:, :, :VOCAB_TGT]                  # [B, St, VOCAB_TGT]


@jax.jit
def rrs_forward(params, input_ids, attention_mask,
                decoder_input_ids, decoder_attention_mask):
    # RRS.forward: encoder_outputs.last_hidden_state fed to the decoder together
    # with the encoder attention_mask; decoder returns LM logits.
    enc_hidden = encoder_forward(params["enc"], input_ids, attention_mask)
    logits = decoder_forward(params["dec"], decoder_input_ids,
                             decoder_attention_mask, enc_hidden, attention_mask)
    return enc_hidden, logits
# TODO(synk): tokenizer handling, cross-entropy loss and the beam-search
# evaluation path of DecoderModel are not compute kernels and are omitted.


# ----------------------------- deterministic params ---------------------------
class _KeyGen:
    def __init__(self, key):
        self.key = key
        self.i = 0

    def __call__(self):
        self.i += 1
        return jax.random.fold_in(self.key, self.i)


def _normal(key, shape):
    return jax.random.normal(key, shape, jnp.float32) * 0.02


def init_params(key):
    kg = _KeyGen(key)
    enc_layers = dict(
        wqkv=_normal(kg(), (N_ENC, H, 3 * H)),
        bqkv=jnp.zeros((N_ENC, 1, 3 * H), jnp.float32),
        wo=_normal(kg(), (N_ENC, H, H)),
        bo=jnp.zeros((N_ENC, 1, H), jnp.float32),
        ln1_g=jnp.ones((N_ENC, 1, H), jnp.float32),
        ln1_b=jnp.zeros((N_ENC, 1, H), jnp.float32),
        w1=_normal(kg(), (N_ENC, H, FF)),
        b1=jnp.zeros((N_ENC, 1, FF), jnp.float32),
        w2=_normal(kg(), (N_ENC, FF, H)),
        b2=jnp.zeros((N_ENC, 1, H), jnp.float32),
        ln2_g=jnp.ones((N_ENC, 1, H), jnp.float32),
        ln2_b=jnp.zeros((N_ENC, 1, H), jnp.float32),
    )
    enc = dict(
        word_emb=_normal(kg(), (VOCAB_SRC, H)),
        pos_emb=_normal(kg(), (MAX_POS, H)),
        emb_ln_g=jnp.ones((1, H), jnp.float32),
        emb_ln_b=jnp.zeros((1, H), jnp.float32),
        layers=enc_layers,
    )
    dec_layers = dict(
        s_wqkv=_normal(kg(), (N_DEC, H, 3 * H)),
        s_bqkv=jnp.zeros((N_DEC, 1, 3 * H), jnp.float32),
        s_wo=_normal(kg(), (N_DEC, H, H)),
        s_bo=jnp.zeros((N_DEC, 1, H), jnp.float32),
        s_ln_g=jnp.ones((N_DEC, 1, H), jnp.float32),
        s_ln_b=jnp.zeros((N_DEC, 1, H), jnp.float32),
        c_wq=_normal(kg(), (N_DEC, H, H)),
        c_bq=jnp.zeros((N_DEC, 1, H), jnp.float32),
        c_wkv=_normal(kg(), (N_DEC, H, 2 * H)),
        c_bkv=jnp.zeros((N_DEC, 1, 2 * H), jnp.float32),
        c_wo=_normal(kg(), (N_DEC, H, H)),
        c_bo=jnp.zeros((N_DEC, 1, H), jnp.float32),
        c_ln_g=jnp.ones((N_DEC, 1, H), jnp.float32),
        c_ln_b=jnp.zeros((N_DEC, 1, H), jnp.float32),
        w1=_normal(kg(), (N_DEC, H, FF)),
        b1=jnp.zeros((N_DEC, 1, FF), jnp.float32),
        w2=_normal(kg(), (N_DEC, FF, H)),
        b2=jnp.zeros((N_DEC, 1, H), jnp.float32),
        f_ln_g=jnp.ones((N_DEC, 1, H), jnp.float32),
        f_ln_b=jnp.zeros((N_DEC, 1, H), jnp.float32),
    )
    # LM head padded to 128 lanes; padded columns are zero and sliced off in JAX.
    lm_w = jnp.zeros((H, V_PAD), jnp.float32).at[:, :VOCAB_TGT].set(
        _normal(kg(), (H, VOCAB_TGT)))
    dec = dict(
        word_emb=_normal(kg(), (VOCAB_TGT, H)),
        pos_emb=_normal(kg(), (MAX_POS, H)),
        emb_ln_g=jnp.ones((1, H), jnp.float32),
        emb_ln_b=jnp.zeros((1, H), jnp.float32),
        layers=dec_layers,
        lm_w=lm_w,
        lm_b=jnp.zeros((1, V_PAD), jnp.float32),
    )
    return dict(enc=enc, dec=dec)


# ----------------------------- run -------------------------------------------
if __name__ == "__main__":
    root = jax.random.PRNGKey(0)
    params = init_params(root)

    B, S_SRC, S_TGT = 2, 8, 8
    k_ids = jax.random.split(jax.random.fold_in(root, 999), 2)
    input_ids = jax.random.randint(k_ids[0], (B, S_SRC), 0, VOCAB_SRC, jnp.int32)
    decoder_input_ids = jax.random.randint(k_ids[1], (B, S_TGT), 0, VOCAB_TGT, jnp.int32)
    attention_mask = jnp.ones((B, S_SRC), jnp.int32).at[1, 6:].set(0)
    decoder_attention_mask = jnp.ones((B, S_TGT), jnp.int32).at[0, 5:].set(0)

    enc_hidden, logits = rrs_forward(params, input_ids, attention_mask,
                                     decoder_input_ids, decoder_attention_mask)
    jax.block_until_ready((enc_hidden, logits))
    assert enc_hidden.shape == (B, S_SRC, H)
    assert logits.shape == (B, S_TGT, VOCAB_TGT)
    assert bool(jnp.all(jnp.isfinite(enc_hidden))) and bool(jnp.all(jnp.isfinite(logits)))
    print("KERNEL_OK")
</pallas_src>

<mosaic_0001>
module attributes {stable_mosaic.version = 11 : i64} {
  func.func @_enc_stack_kernel(%arg0: i32, %arg1: i32, %arg2: memref<1x8x32xf32, #tpu.memory_space<vmem>>, %arg3: memref<1x1x8xf32, #tpu.memory_space<vmem>>, %arg4: memref<1x32xf32, #tpu.memory_space<vmem>>, %arg5: memref<1x32xf32, #tpu.memory_space<vmem>>, %arg6: memref<1x32x96xf32, #tpu.memory_space<vmem>>, %arg7: memref<1x1x96xf32, #tpu.memory_space<vmem>>, %arg8: memref<1x32x32xf32, #tpu.memory_space<vmem>>, %arg9: memref<1x1x32xf32, #tpu.memory_space<vmem>>, %arg10: memref<1x1x32xf32, #tpu.memory_space<vmem>>, %arg11: memref<1x1x32xf32, #tpu.memory_space<vmem>>, %arg12: memref<1x32x64xf32, #tpu.memory_space<vmem>>, %arg13: memref<1x1x64xf32, #tpu.memory_space<vmem>>, %arg14: memref<1x64x32xf32, #tpu.memory_space<vmem>>, %arg15: memref<1x1x32xf32, #tpu.memory_space<vmem>>, %arg16: memref<1x1x32xf32, #tpu.memory_space<vmem>>, %arg17: memref<1x1x32xf32, #tpu.memory_space<vmem>>, %arg18: memref<1x8x32xf32, #tpu.memory_space<vmem>>, %arg19: memref<8x32xf32, #tpu.memory_space<vmem>>) attributes {dimension_semantics = [#tpu.dimension_semantics<parallel>, #tpu.dimension_semantics<arbitrary>], iteration_bounds = array<i64: 2, 2>, scalar_prefetch = 0 : i64, scratch_operands = 1 : i64, tpu.core_type = #tpu.core_type<tc>, window_params = [{transform_indices = @transform_0, window_bounds = array<i64: 1, 8, 32>}, {transform_indices = @transform_1, window_bounds = array<i64: 1, 1, 8>}, {pipeline_mode = #tpu.pipeline_mode<synchronous>, transform_indices = @transform_2, window_bounds = array<i64: 1, 32>}, {pipeline_mode = #tpu.pipeline_mode<synchronous>, transform_indices = @transform_3, window_bounds = array<i64: 1, 32>}, {transform_indices = @transform_4, window_bounds = array<i64: 1, 32, 96>}, {transform_indices = @transform_5, window_bounds = array<i64: 1, 1, 96>}, {transform_indices = @transform_6, window_bounds = array<i64: 1, 32, 32>}, {transform_indices = @transform_7, window_bounds = array<i64: 1, 1, 32>}, {transform_indices = @transform_8, window_bounds = array<i64: 1, 1, 32>}, {transform_indices = @transform_9, window_bounds = array<i64: 1, 1, 32>}, {transform_indices = @transform_10, window_bounds = array<i64: 1, 32, 64>}, {transform_indices = @transform_11, window_bounds = array<i64: 1, 1, 64>}, {transform_indices = @transform_12, window_bounds = array<i64: 1, 64, 32>}, {transform_indices = @transform_13, window_bounds = array<i64: 1, 1, 32>}, {transform_indices = @transform_14, window_bounds = array<i64: 1, 1, 32>}, {transform_indices = @transform_15, window_bounds = array<i64: 1, 1, 32>}, {transform_indices = @transform_16, window_bounds = array<i64: 1, 8, 32>}]} {
    %c0_i32 = arith.constant 0 : i32
    %0 = arith.cmpi eq, %arg1, %c0_i32 : i32
    %1 = arith.extui %0 : i1 to i32
    %c0_i32_0 = arith.constant 0 : i32
    %2 = arith.cmpi ne, %1, %c0_i32_0 : i32
    scf.if %2 {
      %c0_66 = arith.constant 0 : index
      %c0_67 = arith.constant 0 : index
      %c0_68 = arith.constant 0 : index
      %173 = vector.load %arg2[%c0_66, %c0_67, %c0_68] : memref<1x8x32xf32, #tpu.memory_space<vmem>>, vector<1x8x32xf32>
      %174 = vector.shape_cast %173 : vector<1x8x32xf32> to vector<8x32xf32>
      %c0_69 = arith.constant 0 : index
      %c0_70 = arith.constant 0 : index
      %175 = vector.load %arg4[%c0_69, %c0_70] : memref<1x32xf32, #tpu.memory_space<vmem>>, vector<1x32xf32>
      %c0_71 = arith.constant 0 : index
      %c0_72 = arith.constant 0 : index
      %176 = vector.load %arg5[%c0_71, %c0_72] : memref<1x32xf32, #tpu.memory_space<vmem>>, vector<1x32xf32>
      %cst_73 = arith.constant dense<0.000000e+00> : vector<8xf32>
      %177 = vector.multi_reduction <add>, %174, %cst_73 [1] : vector<8x32xf32> to vector<8xf32>
      %178 = vector.shape_cast %177 : vector<8xf32> to vector<8x1xf32>
      %cst_74 = arith.constant 3.200000e+01 : f32
      %179 = vector.broadcast %cst_74 : f32 to vector<8x1xf32>
      %180 = arith.divf %178, %179 : vector<8x1xf32>
      %181 = vector.broadcast %180 : vector<8x1xf32> to vector<8x32xf32>
      %182 = arith.subf %174, %181 : vector<8x32xf32>
      %183 = arith.mulf %182, %182 : vector<8x32xf32>
      %cst_75 = arith.constant dense<0.000000e+00> : vector<8xf32>
      %184 = vector.multi_reduction <add>, %183, %cst_75 [1] : vector<8x32xf32> to vector<8xf32>
      %185 = vector.shape_cast %184 : vector<8xf32> to vector<8x1xf32>
      %cst_76 = arith.constant 3.200000e+01 : f32
      %186 = vector.broadcast %cst_76 : f32 to vector<8x1xf32>
      %187 = arith.divf %185, %186 : vector<8x1xf32>
      %188 = vector.broadcast %180 : vector<8x1xf32> to vector<8x32xf32>
      %189 = arith.subf %174, %188 : vector<8x32xf32>
      %cst_77 = arith.constant 9.99999996E-13 : f32
      %190 = vector.broadcast %cst_77 : f32 to vector<8x1xf32>
      %191 = arith.addf %187, %190 : vector<8x1xf32>
      %192 = math.rsqrt %191 : vector<8x1xf32>
      %193 = vector.broadcast %192 : vector<8x1xf32> to vector<8x32xf32>
      %194 = arith.mulf %189, %193 : vector<8x32xf32>
      %195 = vector.broadcast %175 : vector<1x32xf32> to vector<8x32xf32>
      %196 = arith.mulf %194, %195 : vector<8x32xf32>
      %197 = vector.broadcast %176 : vector<1x32xf32> to vector<8x32xf32>
      %198 = arith.addf %196, %197 : vector<8x32xf32>
      %c0_78 = arith.constant 0 : index
      %c0_79 = arith.constant 0 : index
      %199 = vector.load %arg19[%c0_78, %c0_79] : memref<8x32xf32, #tpu.memory_space<vmem>>, vector<8x32xf32>
      tpu.vector_store %arg19[%c0_78, %c0_79], %198 {strides = array<i32>} : memref<8x32xf32, #tpu.memory_space<vmem>>, vector<8x32xf32>,
    } else {
    }
    %c0 = arith.constant 0 : index
    %c0_1 = arith.constant 0 : index
    %3 = vector.load %arg19[%c0, %c0_1] : memref<8x32xf32, #tpu.memory_space<vmem>>, vector<8x32xf32>
    %c0_2 = arith.constant 0 : index
    %c0_3 = arith.constant 0 : index
    %c0_4 = arith.constant 0 : index
    %4 = vector.load %arg3[%c0_2, %c0_3, %c0_4] : memref<1x1x8xf32, #tpu.memory_space<vmem>>, vector<1x1x8xf32>
    %5 = vector.shape_cast %4 : vector<1x1x8xf32> to vector<1x8xf32>
    %c0_5 = arith.constant 0 : index
    %c0_6 = arith.constant 0 : index
    %c0_7 = arith.constant 0 : index
    %6 = vector.load %arg6[%c0_5, %c0_6, %c0_7] : memref<1x32x96xf32, #tpu.memory_space<vmem>>, vector<1x32x96xf32>
    %7 = vector.shape_cast %6 : vector<1x32x96xf32> to vector<32x96xf32>
    %8 = arith.truncf %3 : vector<8x32xf32> to vector<8x32xbf16>
    %9 = arith.truncf %7 : vector<32x96xf32> to vector<32x96xbf16>
    %cst = arith.constant dense<0.000000e+00> : vector<8x96xf32>
    %10 = tpu.matmul %8, %9, %cst {dimension_numbers = #tpu.dot_dimension_numbers<[1], [0], [0], [1], [0, 0, 1, 1], [], []>} : vector<8x32xbf16>, vector<32x96xbf16>, vector<8x96xf32> -> vector<8x96xf32>
    %c0_8 = arith.constant 0 : index
    %c0_9 = arith.constant 0 : index
    %c0_10 = arith.constant 0 : index
    %11 = vector.load %arg7[%c0_8, %c0_9, %c0_10] : memref<1x1x96xf32, #tpu.memory_space<vmem>>, vector<1x1x96xf32>
    %12 = vector.shape_cast %11 : vector<1x1x96xf32> to vector<1x96xf32>
    %13 = vector.broadcast %12 : vector<1x96xf32> to vector<8x96xf32>
    %14 = arith.addf %10, %13 : vector<8x96xf32>
    %15 = vector.extract_strided_slice %14 {offsets = [0, 0], sizes = [8, 32], strides = [1, 1]} : vector<8x96xf32> to vector<8x32xf32>
    %16 = vector.extract_strided_slice %15 {offsets = [0, 0], sizes = [8, 8], strides = [1, 1]} : vector<8x32xf32> to vector<8x8xf32>
    %17 = vector.shape_cast %16 : vector<8x8xf32> to vector<1x8x8xf32>
    %18 = vector.extract_strided_slice %15 {offsets = [0, 8], sizes = [8, 8], strides = [1, 1]} : vector<8x32xf32> to vector<8x8xf32>
    %19 = vector.shape_cast %18 : vector<8x8xf32> to vector<1x8x8xf32>
    %20 = vector.extract_strided_slice %15 {offsets = [0, 16], sizes = [8, 8], strides = [1, 1]} : vector<8x32xf32> to vector<8x8xf32>
    %21 = vector.shape_cast %20 : vector<8x8xf32> to vector<1x8x8xf32>
    %22 = vector.extract_strided_slice %15 {offsets = [0, 24], sizes = [8, 8], strides = [1, 1]} : vector<8x32xf32> to vector<8x8xf32>
    %23 = vector.shape_cast %22 : vector<8x8xf32> to vector<1x8x8xf32>
    %24 = tpu.concatenate %17, %19, %21, %23 in 0 : vector<1x8x8xf32>, vector<1x8x8xf32>, vector<1x8x8xf32>, vector<1x8x8xf32> -> vector<4x8x8xf32>
    %25 = vector.extract_strided_slice %14 {offsets = [0, 32], sizes = [8, 32], strides = [1, 1]} : vector<8x96xf32> to vector<8x32xf32>
    %26 = vector.extract_strided_slice %25 {offsets = [0, 0], sizes = [8, 8], strides = [1, 1]} : vector<8x32xf32> to vector<8x8xf32>
    %27 = vector.shape_cast %26 : vector<8x8xf32> to vector<1x8x8xf32>
    %28 = vector.extract_strided_slice %25 {offsets = [0, 8], sizes = [8, 8], strides = [1, 1]} : vector<8x32xf32> to vector<8x8xf32>
    %29 = vector.shape_cast %28 : vector<8x8xf32> to vector<1x8x8xf32>
    %30 = vector.extract_strided_slice %25 {offsets = [0, 16], sizes = [8, 8], strides = [1, 1]} : vector<8x32xf32> to vector<8x8xf32>
    %31 = vector.shape_cast %30 : vector<8x8xf32> to vector<1x8x8xf32>
    %32 = vector.extract_strided_slice %25 {offsets = [0, 24], sizes = [8, 8], strides = [1, 1]} : vector<8x32xf32> to vector<8x8xf32>
    %33 = vector.shape_cast %32 : vector<8x8xf32> to vector<1x8x8xf32>
    %34 = tpu.concatenate %27, %29, %31, %33 in 0 : vector<1x8x8xf32>, vector<1x8x8xf32>, vector<1x8x8xf32>, vector<1x8x8xf32> -> vector<4x8x8xf32>
    %35 = vector.extract_strided_slice %14 {offsets = [0, 64], sizes = [8, 32], strides = [1, 1]} : vector<8x96xf32> to vector<8x32xf32>
    %36 = vector.extract_strided_slice %35 {offsets = [0, 0], sizes = [8, 8], strides = [1, 1]} : vector<8x32xf32> to vector<8x8xf32>
    %37 = vector.shape_cast %36 : vector<8x8xf32> to vector<1x8x8xf32>
    %38 = vector.extract_strided_slice %35 {offsets = [0, 8], sizes = [8, 8], strides = [1, 1]} : vector<8x32xf32> to vector<8x8xf32>
    %39 = vector.shape_cast %38 : vector<8x8xf32> to vector<1x8x8xf32>
    %40 = vector.extract_strided_slice %35 {offsets = [0, 16], sizes = [8, 8], strides = [1, 1]} : vector<8x32xf32> to vector<8x8xf32>
    %41 = vector.shape_cast %40 : vector<8x8xf32> to vector<1x8x8xf32>
    %42 = vector.extract_strided_slice %35 {offsets = [0, 24], sizes = [8, 8], strides = [1, 1]} : vector<8x32xf32> to vector<8x8xf32>
    %43 = vector.shape_cast %42 : vector<8x8xf32> to vector<1x8x8xf32>
    %44 = tpu.concatenate %37, %39, %41, %43 in 0 : vector<1x8x8xf32>, vector<1x8x8xf32>, vector<1x8x8xf32>, vector<1x8x8xf32> -> vector<4x8x8xf32>
    %45 = arith.truncf %24 : vector<4x8x8xf32> to vector<4x8x8xbf16>
    %46 = arith.truncf %34 : vector<4x8x8xf32> to vector<4x8x8xbf16>
    "tpu.trace_start"() <{level = 10 : i32, message = "hqd,hkd->hqk"}> : () -> ()
    %cst_11 = arith.constant dense<0.000000e+00> : vector<4x8x8xf32>
    %47 = tpu.matmul %45, %46, %cst_11 {dimension_numbers = #tpu.dot_dimension_numbers<[2], [2], [1], [1], [0, 0, 0, 1, 1, 1], [0], [0]>} : vector<4x8x8xbf16>, vector<4x8x8xbf16>, vector<4x8x8xf32> -> vector<4x8x8xf32>
    "tpu.trace_stop"() : () -> ()
    %cst_12 = arith.constant 0.353553385 : f32
    %48 = vector.broadcast %cst_12 : f32 to vector<4x8x8xf32>
    %49 = arith.mulf %47, %48 : vector<4x8x8xf32>
    %50 = vector.shape_cast %5 : vector<1x8xf32> to vector<1x1x8xf32>
    %51 = vector.broadcast %50 : vector<1x1x8xf32> to vector<4x8x8xf32>
    %52 = arith.addf %49, %51 : vector<4x8x8xf32>
    %cst_13 = arith.constant dense<0xFF800000> : vector<4x8xf32>
    %53 = vector.multi_reduction <maximumf>, %52, %cst_13 [2] : vector<4x8x8xf32> to vector<4x8xf32>
    %54 = vector.shape_cast %53 : vector<4x8xf32> to vector<4x8x1xf32>
    %55 = vector.broadcast %54 : vector<4x8x1xf32> to vector<4x8x8xf32>
    %56 = arith.subf %52, %55 : vector<4x8x8xf32>
    %57 = math.exp %56 : vector<4x8x8xf32>
    %cst_14 = arith.constant dense<0.000000e+00> : vector<4x8xf32>
    %58 = vector.multi_reduction <add>, %57, %cst_14 [2] : vector<4x8x8xf32> to vector<4x8xf32>
    %59 = vector.shape_cast %58 : vector<4x8xf32> to vector<4x8x1xf32>
    %60 = tpu.reciprocal %59 {approx = true} : vector<4x8x1xf32> -> vector<4x8x1xf32>
    %61 = vector.broadcast %60 : vector<4x8x1xf32> to vector<4x8x8xf32>
    %62 = arith.mulf %57, %61 : vector<4x8x8xf32>
    %63 = arith.truncf %62 : vector<4x8x8xf32> to vector<4x8x8xbf16>
    %64 = arith.truncf %44 : vector<4x8x8xf32> to vector<4x8x8xbf16>
    "tpu.trace_start"() <{level = 10 : i32, message = "hqk,hkd->hqd"}> : () -> ()
    %cst_15 = arith.constant dense<0.000000e+00> : vector<4x8x8xf32>
    %65 = tpu.matmul %63, %64, %cst_15 {dimension_numbers = #tpu.dot_dimension_numbers<[2], [1], [1], [2], [0, 0, 0, 1, 1, 2], [0], [0]>} : vector<4x8x8xbf16>, vector<4x8x8xbf16>, vector<4x8x8xf32> -> vector<4x8x8xf32>
    "tpu.trace_stop"() : () -> ()
    %66 = vector.extract_strided_slice %65 {offsets = [0, 0, 0], sizes = [1, 8, 8], strides = [1, 1, 1]} : vector<4x8x8xf32> to vector<1x8x8xf32>
    %67 = vector.shape_cast %66 : vector<1x8x8xf32> to vector<8x8xf32>
    %68 = vector.extract_strided_slice %65 {offsets = [1, 0, 0], sizes = [1, 8, 8], strides = [1, 1, 1]} : vector<4x8x8xf32> to vector<1x8x8xf32>
    %69 = vector.shape_cast %68 : vector<1x8x8xf32> to vector<8x8xf32>
    %70 = vector.extract_strided_slice %65 {offsets = [2, 0, 0], sizes = [1, 8, 8], strides = [1, 1, 1]} : vector<4x8x8xf32> to vector<1x8x8xf32>
    %71 = vector.shape_cast %70 : vector<1x8x8xf32> to vector<8x8xf32>
    %72 = vector.extract_strided_slice %65 {offsets = [3, 0, 0], sizes = [1, 8, 8], strides = [1, 1, 1]} : vector<4x8x8xf32> to vector<1x8x8xf32>
    %73 = vector.shape_cast %72 : vector<1x8x8xf32> to vector<8x8xf32>
    %74 = tpu.concatenate %67, %69, %71, %73 in 1 : vector<8x8xf32>, vector<8x8xf32>, vector<8x8xf32>, vector<8x8xf32> -> vector<8x32xf32>
    %c0_16 = arith.constant 0 : index
    %c0_17 = arith.constant 0 : index
    %c0_18 = arith.constant 0 : index
    %75 = vector.load %arg8[%c0_16, %c0_17, %c0_18] : memref<1x32x32xf32, #tpu.memory_space<vmem>>, vector<1x32x32xf32>
    %76 = vector.shape_cast %75 : vector<1x32x32xf32> to vector<32x32xf32>
    %77 = arith.truncf %74 : vector<8x32xf32> to vector<8x32xbf16>
    %78 = arith.truncf %76 : vector<32x32xf32> to vector<32x32xbf16>
    %cst_19 = arith.constant dense<0.000000e+00> : vector<8x32xf32>
    %79 = tpu.matmul %77, %78, %cst_19 {dimension_numbers = #tpu.dot_dimension_numbers<[1], [0], [0], [1], [0, 0, 1, 1], [], []>} : vector<8x32xbf16>, vector<32x32xbf16>, vector<8x32xf32> -> vector<8x32xf32>
    %c0_20 = arith.constant 0 : index
    %c0_21 = arith.constant 0 : index
    %c0_22 = arith.constant 0 : index
    %80 = vector.load %arg9[%c0_20, %c0_21, %c0_22] : memref<1x1x32xf32, #tpu.memory_space<vmem>>, vector<1x1x32xf32>
    %81 = vector.shape_cast %80 : vector<1x1x32xf32> to vector<1x32xf32>
    %82 = vector.broadcast %81 : vector<1x32xf32> to vector<8x32xf32>
    %83 = arith.addf %79, %82 : vector<8x32xf32>
    %84 = arith.addf %83, %3 : vector<8x32xf32>
    %c0_23 = arith.constant 0 : index
    %c0_24 = arith.constant 0 : index
    %c0_25 = arith.constant 0 : index
    %85 = vector.load %arg10[%c0_23, %c0_24, %c0_25] : memref<1x1x32xf32, #tpu.memory_space<vmem>>, vector<1x1x32xf32>
    %86 = vector.shape_cast %85 : vector<1x1x32xf32> to vector<1x32xf32>
    %c0_26 = arith.constant 0 : index
    %c0_27 = arith.constant 0 : index
    %c0_28 = arith.constant 0 : index
    %87 = vector.load %arg11[%c0_26, %c0_27, %c0_28] : memref<1x1x32xf32, #tpu.memory_space<vmem>>, vector<1x1x32xf32>
    %88 = vector.shape_cast %87 : vector<1x1x32xf32> to vector<1x32xf32>
    %cst_29 = arith.constant dense<0.000000e+00> : vector<8xf32>
    %89 = vector.multi_reduction <add>, %84, %cst_29 [1] : vector<8x32xf32> to vector<8xf32>
    %90 = vector.shape_cast %89 : vector<8xf32> to vector<8x1xf32>
    %cst_30 = arith.constant 3.200000e+01 : f32
    %91 = vector.broadcast %cst_30 : f32 to vector<8x1xf32>
    %92 = arith.divf %90, %91 : vector<8x1xf32>
    %93 = vector.broadcast %92 : vector<8x1xf32> to vector<8x32xf32>
    %94 = arith.subf %84, %93 : vector<8x32xf32>
    %95 = arith.mulf %94, %94 : vector<8x32xf32>
    %cst_31 = arith.constant dense<0.000000e+00> : vector<8xf32>
    %96 = vector.multi_reduction <add>, %95, %cst_31 [1] : vector<8x32xf32> to vector<8xf32>
    %97 = vector.shape_cast %96 : vector<8xf32> to vector<8x1xf32>
    %cst_32 = arith.constant 3.200000e+01 : f32
    %98 = vector.broadcast %cst_32 : f32 to vector<8x1xf32>
    %99 = arith.divf %97, %98 : vector<8x1xf32>
    %100 = vector.broadcast %92 : vector<8x1xf32> to vector<8x32xf32>
    %101 = arith.subf %84, %100 : vector<8x32xf32>
    %cst_33 = arith.constant 9.99999996E-13 : f32
    %102 = vector.broadcast %cst_33 : f32 to vector<8x1xf32>
    %103 = arith.addf %99, %102 : vector<8x1xf32>
    %104 = math.rsqrt %103 : vector<8x1xf32>
    %105 = vector.broadcast %104 : vector<8x1xf32> to vector<8x32xf32>
    %106 = arith.mulf %101, %105 : vector<8x32xf32>
    %107 = vector.broadcast %86 : vector<1x32xf32> to vector<8x32xf32>
    %108 = arith.mulf %106, %107 : vector<8x32xf32>
    %109 = vector.broadcast %88 : vector<1x32xf32> to vector<8x32xf32>
    %110 = arith.addf %108, %109 : vector<8x32xf32>
    %c0_34 = arith.constant 0 : index
    %c0_35 = arith.constant 0 : index
    %c0_36 = arith.constant 0 : index
    %111 = vector.load %arg12[%c0_34, %c0_35, %c0_36] : memref<1x32x64xf32, #tpu.memory_space<vmem>>, vector<1x32x64xf32>
    %112 = vector.shape_cast %111 : vector<1x32x64xf32> to vector<32x64xf32>
    %113 = arith.truncf %110 : vector<8x32xf32> to vector<8x32xbf16>
    %114 = arith.truncf %112 : vector<32x64xf32> to vector<32x64xbf16>
    %cst_37 = arith.constant dense<0.000000e+00> : vector<8x64xf32>
    %115 = tpu.matmul %113, %114, %cst_37 {dimension_numbers = #tpu.dot_dimension_numbers<[1], [0], [0], [1], [0, 0, 1, 1], [], []>} : vector<8x32xbf16>, vector<32x64xbf16>, vector<8x64xf32> -> vector<8x64xf32>
    %c0_38 = arith.constant 0 : index
    %c0_39 = arith.constant 0 : index
    %c0_40 = arith.constant 0 : index
    %116 = vector.load %arg13[%c0_38, %c0_39, %c0_40] : memref<1x1x64xf32, #tpu.memory_space<vmem>>, vector<1x1x64xf32>
    %117 = vector.shape_cast %116 : vector<1x1x64xf32> to vector<1x64xf32>
    %118 = vector.broadcast %117 : vector<1x64xf32> to vector<8x64xf32>
    %119 = arith.addf %115, %118 : vector<8x64xf32>
    %cst_41 = arith.constant 5.000000e-01 : f32
    %120 = vector.broadcast %cst_41 : f32 to vector<8x64xf32>
    %121 = arith.mulf %120, %119 : vector<8x64xf32>
    %cst_42 = arith.constant 4.471500e-02 : f32
    %122 = vector.broadcast %cst_42 : f32 to vector<8x64xf32>
    %123 = arith.mulf %122, %119 : vector<8x64xf32>
    %124 = arith.mulf %123, %119 : vector<8x64xf32>
    %125 = arith.mulf %124, %119 : vector<8x64xf32>
    %126 = arith.addf %119, %125 : vector<8x64xf32>
    %cst_43 = arith.constant 0.797884583 : f32
    %127 = vector.broadcast %cst_43 : f32 to vector<8x64xf32>
    %128 = arith.mulf %127, %126 : vector<8x64xf32>
    %129 = math.tanh %128 : vector<8x64xf32>
    %cst_44 = arith.constant 1.000000e+00 : f32
    %130 = vector.broadcast %cst_44 : f32 to vector<8x64xf32>
    %131 = arith.addf %130, %129 : vector<8x64xf32>
    %132 = arith.mulf %121, %131 : vector<8x64xf32>
    %c0_45 = arith.constant 0 : index
    %c0_46 = arith.constant 0 : index
    %c0_47 = arith.constant 0 : index
    %133 = vector.load %arg14[%c0_45, %c0_46, %c0_47] : memref<1x64x32xf32, #tpu.memory_space<vmem>>, vector<1x64x32xf32>
    %134 = vector.shape_cast %133 : vector<1x64x32xf32> to vector<64x32xf32>
    %135 = arith.truncf %132 : vector<8x64xf32> to vector<8x64xbf16>
    %136 = arith.truncf %134 : vector<64x32xf32> to vector<64x32xbf16>
    %cst_48 = arith.constant dense<0.000000e+00> : vector<8x32xf32>
    %137 = tpu.matmul %135, %136, %cst_48 {dimension_numbers = #tpu.dot_dimension_numbers<[1], [0], [0], [1], [0, 0, 1, 1], [], []>} : vector<8x64xbf16>, vector<64x32xbf16>, vector<8x32xf32> -> vector<8x32xf32>
    %c0_49 = arith.constant 0 : index
    %c0_50 = arith.constant 0 : index
    %c0_51 = arith.constant 0 : index
    %138 = vector.load %arg15[%c0_49, %c0_50, %c0_51] : memref<1x1x32xf32, #tpu.memory_space<vmem>>, vector<1x1x32xf32>
    %139 = vector.shape_cast %138 : vector<1x1x32xf32> to vector<1x32xf32>
    %140 = vector.broadcast %139 : vector<1x32xf32> to vector<8x32xf32>
    %141 = arith.addf %137, %140 : vector<8x32xf32>
    %142 = arith.addf %141, %110 : vector<8x32xf32>
    %c0_52 = arith.constant 0 : index
    %c0_53 = arith.constant 0 : index
    %c0_54 = arith.constant 0 : index
    %143 = vector.load %arg16[%c0_52, %c0_53, %c0_54] : memref<1x1x32xf32, #tpu.memory_space<vmem>>, vector<1x1x32xf32>
    %144 = vector.shape_cast %143 : vector<1x1x32xf32> to vector<1x32xf32>
    %c0_55 = arith.constant 0 : index
    %c0_56 = arith.constant 0 : index
    %c0_57 = arith.constant 0 : index
    %145 = vector.load %arg17[%c0_55, %c0_56, %c0_57] : memref<1x1x32xf32, #tpu.memory_space<vmem>>, vector<1x1x32xf32>
    %146 = vector.shape_cast %145 : vector<1x1x32xf32> to vector<1x32xf32>
    %cst_58 = arith.constant dense<0.000000e+00> : vector<8xf32>
    %147 = vector.multi_reduction <add>, %142, %cst_58 [1] : vector<8x32xf32> to vector<8xf32>
    %148 = vector.shape_cast %147 : vector<8xf32> to vector<8x1xf32>
    %cst_59 = arith.constant 3.200000e+01 : f32
    %149 = vector.broadcast %cst_59 : f32 to vector<8x1xf32>
    %150 = arith.divf %148, %149 : vector<8x1xf32>
    %151 = vector.broadcast %150 : vector<8x1xf32> to vector<8x32xf32>
    %152 = arith.subf %142, %151 : vector<8x32xf32>
    %153 = arith.mulf %152, %152 : vector<8x32xf32>
    %cst_60 = arith.constant dense<0.000000e+00> : vector<8xf32>
    %154 = vector.multi_reduction <add>, %153, %cst_60 [1] : vector<8x32xf32> to vector<8xf32>
    %155 = vector.shape_cast %154 : vector<8xf32> to vector<8x1xf32>
    %cst_61 = arith.constant 3.200000e+01 : f32
    %156 = vector.broadcast %cst_61 : f32 to vector<8x1xf32>
    %157 = arith.divf %155, %156 : vector<8x1xf32>
    %158 = vector.broadcast %150 : vector<8x1xf32> to vector<8x32xf32>
    %159 = arith.subf %142, %158 : vector<8x32xf32>
    %cst_62 = arith.constant 9.99999996E-13 : f32
    %160 = vector.broadcast %cst_62 : f32 to vector<8x1xf32>
    %161 = arith.addf %157, %160 : vector<8x1xf32>
    %162 = math.rsqrt %161 : vector<8x1xf32>
    %163 = vector.broadcast %162 : vector<8x1xf32> to vector<8x32xf32>
    %164 = arith.mulf %159, %163 : vector<8x32xf32>
    %165 = vector.broadcast %144 : vector<1x32xf32> to vector<8x32xf32>
    %166 = arith.mulf %164, %165 : vector<8x32xf32>
    %167 = vector.broadcast %146 : vector<1x32xf32> to vector<8x32xf32>
    %168 = arith.addf %166, %167 : vector<8x32xf32>
    %c0_63 = arith.constant 0 : index
    %c0_64 = arith.constant 0 : index
    %169 = vector.load %arg19[%c0_63, %c0_64] : memref<8x32xf32, #tpu.memory_space<vmem>>, vector<8x32xf32>
    tpu.vector_store %arg19[%c0_63, %c0_64], %168 {strides = array<i32>} : memref<8x32xf32, #tpu.memory_space<vmem>>, vector<8x32xf32>,
    %c1_i32 = arith.constant 1 : i32
    %170 = arith.cmpi eq, %arg1, %c1_i32 : i32
    %171 = arith.extui %170 : i1 to i32
    %c0_i32_65 = arith.constant 0 : i32
    %172 = arith.cmpi ne, %171, %c0_i32_65 : i32
    scf.if %172 {
      %c0_66 = arith.constant 0 : index
      %c0_67 = arith.constant 0 : index
      %c0_68 = arith.constant 0 : index
      %173 = vector.load %arg18[%c0_66, %c0_67, %c0_68] : memref<1x8x32xf32, #tpu.memory_space<vmem>>, vector<1x8x32xf32>
      %174 = vector.shape_cast %173 : vector<1x8x32xf32> to vector<8x32xf32>
      %175 = vector.shape_cast %168 : vector<8x32xf32> to vector<1x8x32xf32>
      tpu.vector_store %arg18[%c0_66, %c0_67, %c0_68], %175 {strides = array<i32>} : memref<1x8x32xf32, #tpu.memory_space<vmem>>, vector<1x8x32xf32>,
    } else {
    }
    return
  }
  func.func @transform_0(%arg0: i32, %arg1: i32) -> (i32, i32, i32) {
    %c0_i32 = arith.constant 0 : i32
    %c0_i32_0 = arith.constant 0 : i32
    %c0_i32_1 = arith.constant 0 : i32
    return %arg0, %c0_i32, %c0_i32_0 : i32, i32, i32
  }
  func.func @transform_1(%arg0: i32, %arg1: i32) -> (i32, i32, i32) {
    %c0_i32 = arith.constant 0 : i32
    %c0_i32_0 = arith.constant 0 : i32
    %c0_i32_1 = arith.constant 0 : i32
    return %arg0, %c0_i32, %c0_i32_0 : i32, i32, i32
  }
  func.func @transform_2(%arg0: i32, %arg1: i32) -> (i32, i32) {
    %c0_i32 = arith.constant 0 : i32
    %c0_i32_0 = arith.constant 0 : i32
    %c0_i32_1 = arith.constant 0 : i32
    return %c0_i32, %c0_i32_0 : i32, i32
  }
  func.func @transform_3(%arg0: i32, %arg1: i32) -> (i32, i32) {
    %c0_i32 = arith.constant 0 : i32
    %c0_i32_0 = arith.constant 0 : i32
    %c0_i32_1 = arith.constant 0 : i32
    return %c0_i32, %c0_i32_0 : i32, i32
  }
  func.func @transform_4(%arg0: i32, %arg1: i32) -> (i32, i32, i32) {
    %c0_i32 = arith.constant 0 : i32
    %c0_i32_0 = arith.constant 0 : i32
    %c0_i32_1 = arith.constant 0 : i32
    return %arg1, %c0_i32, %c0_i32_0 : i32, i32, i32
  }
  func.func @transform_5(%arg0: i32, %arg1: i32) -> (i32, i32, i32) {
    %c0_i32 = arith.constant 0 : i32
    %c0_i32_0 = arith.constant 0 : i32
    %c0_i32_1 = arith.constant 0 : i32
    return %arg1, %c0_i32, %c0_i32_0 : i32, i32, i32
  }
  func.func @transform_6(%arg0: i32, %arg1: i32) -> (i32, i32, i32) {
    %c0_i32 = arith.constant 0 : i32
    %c0_i32_0 = arith.constant 0 : i32
    %c0_i32_1 = arith.constant 0 : i32
    return %arg1, %c0_i32, %c0_i32_0 : i32, i32, i32
  }
  func.func @transform_7(%arg0: i32, %arg1: i32) -> (i32, i32, i32) {
    %c0_i32 = arith.constant 0 : i32
    %c0_i32_0 = arith.constant 0 : i32
    %c0_i32_1 = arith.constant 0 : i32
    return %arg1, %c0_i32, %c0_i32_0 : i32, i32, i32
  }
  func.func @transform_8(%arg0: i32, %arg1: i32) -> (i32, i32, i32) {
    %c0_i32 = arith.constant 0 : i32
    %c0_i32_0 = arith.constant 0 : i32
    %c0_i32_1 = arith.constant 0 : i32
    return %arg1, %c0_i32, %c0_i32_0 : i32, i32, i32
  }
  func.func @transform_9(%arg0: i32, %arg1: i32) -> (i32, i32, i32) {
    %c0_i32 = arith.constant 0 : i32
    %c0_i32_0 = arith.constant 0 : i32
    %c0_i32_1 = arith.constant 0 : i32
    return %arg1, %c0_i32, %c0_i32_0 : i32, i32, i32
  }
  func.func @transform_10(%arg0: i32, %arg1: i32) -> (i32, i32, i32) {
    %c0_i32 = arith.constant 0 : i32
    %c0_i32_0 = arith.constant 0 : i32
    %c0_i32_1 = arith.constant 0 : i32
    return %arg1, %c0_i32, %c0_i32_0 : i32, i32, i32
  }
  func.func @transform_11(%arg0: i32, %arg1: i32) -> (i32, i32, i32) {
    %c0_i32 = arith.constant 0 : i32
    %c0_i32_0 = arith.constant 0 : i32
    %c0_i32_1 = arith.constant 0 : i32
    return %arg1, %c0_i32, %c0_i32_0 : i32, i32, i32
  }
  func.func @transform_12(%arg0: i32, %arg1: i32) -> (i32, i32, i32) {
    %c0_i32 = arith.constant 0 : i32
    %c0_i32_0 = arith.constant 0 : i32
    %c0_i32_1 = arith.constant 0 : i32
    return %arg1, %c0_i32, %c0_i32_0 : i32, i32, i32
  }
  func.func @transform_13(%arg0: i32, %arg1: i32) -> (i32, i32, i32) {
    %c0_i32 = arith.constant 0 : i32
    %c0_i32_0 = arith.constant 0 : i32
    %c0_i32_1 = arith.constant 0 : i32
    return %arg1, %c0_i32, %c0_i32_0 : i32, i32, i32
  }
  func.func @transform_14(%arg0: i32, %arg1: i32) -> (i32, i32, i32) {
    %c0_i32 = arith.constant 0 : i32
    %c0_i32_0 = arith.constant 0 : i32
    %c0_i32_1 = arith.constant 0 : i32
    return %arg1, %c0_i32, %c0_i32_0 : i32, i32, i32
  }
  func.func @transform_15(%arg0: i32, %arg1: i32) -> (i32, i32, i32) {
    %c0_i32 = arith.constant 0 : i32
    %c0_i32_0 = arith.constant 0 : i32
    %c0_i32_1 = arith.constant 0 : i32
    return %arg1, %c0_i32, %c0_i32_0 : i32, i32, i32
  }
  func.func @transform_16(%arg0: i32, %arg1: i32) -> (i32, i32, i32) {
    %c0_i32 = arith.constant 0 : i32
    %c0_i32_0 = arith.constant 0 : i32
    %c0_i32_1 = arith.constant 0 : i32
    return %arg0, %c0_i32, %c0_i32_0 : i32, i32, i32
  }
}

module attributes {stable_mosaic.version = 11 : i64} {
  func.func @_dec_stack_kernel(%arg0: i32, %arg1: i32, %arg2: memref<1x8x32xf32, #tpu.memory_space<vmem>>, %arg3: memref<1x8x32xf32, #tpu.memory_space<vmem>>, %arg4: memref<1x8x8xf32, #tpu.memory_space<vmem>>, %arg5: memref<1x1x8xf32, #tpu.memory_space<vmem>>, %arg6: memref<1x32xf32, #tpu.memory_space<vmem>>, %arg7: memref<1x32xf32, #tpu.memory_space<vmem>>, %arg8: memref<1x32x96xf32, #tpu.memory_space<vmem>>, %arg9: memref<1x1x96xf32, #tpu.memory_space<vmem>>, %arg10: memref<1x32x32xf32, #tpu.memory_space<vmem>>, %arg11: memref<1x1x32xf32, #tpu.memory_space<vmem>>, %arg12: memref<1x1x32xf32, #tpu.memory_space<vmem>>, %arg13: memref<1x1x32xf32, #tpu.memory_space<vmem>>, %arg14: memref<1x32x32xf32, #tpu.memory_space<vmem>>, %arg15: memref<1x1x32xf32, #tpu.memory_space<vmem>>, %arg16: memref<1x32x64xf32, #tpu.memory_space<vmem>>, %arg17: memref<1x1x64xf32, #tpu.memory_space<vmem>>, %arg18: memref<1x32x32xf32, #tpu.memory_space<vmem>>, %arg19: memref<1x1x32xf32, #tpu.memory_space<vmem>>, %arg20: memref<1x1x32xf32, #tpu.memory_space<vmem>>, %arg21: memref<1x1x32xf32, #tpu.memory_space<vmem>>, %arg22: memref<1x32x64xf32, #tpu.memory_space<vmem>>, %arg23: memref<1x1x64xf32, #tpu.memory_space<vmem>>, %arg24: memref<1x64x32xf32, #tpu.memory_space<vmem>>, %arg25: memref<1x1x32xf32, #tpu.memory_space<vmem>>, %arg26: memref<1x1x32xf32, #tpu.memory_space<vmem>>, %arg27: memref<1x1x32xf32, #tpu.memory_space<vmem>>, %arg28: memref<32x128xf32, #tpu.memory_space<vmem>>, %arg29: memref<1x128xf32, #tpu.memory_space<vmem>>, %arg30: memref<1x8x128xf32, #tpu.memory_space<vmem>>, %arg31: memref<8x32xf32, #tpu.memory_space<vmem>>) attributes {dimension_semantics = [#tpu.dimension_semantics<parallel>, #tpu.dimension_semantics<arbitrary>], iteration_bounds = array<i64: 2, 2>, scalar_prefetch = 0 : i64, scratch_operands = 1 : i64, tpu.core_type = #tpu.core_type<tc>, window_params = [{transform_indices = @transform_0, window_bounds = array<i64: 1, 8, 32>}, {transform_indices = @transform_1, window_bounds = array<i64: 1, 8, 32>}, {transform_indices = @transform_2, window_bounds = array<i64: 1, 8, 8>}, {transform_indices = @transform_3, window_bounds = array<i64: 1, 1, 8>}, {pipeline_mode = #tpu.pipeline_mode<synchronous>, transform_indices = @transform_4, window_bounds = array<i64: 1, 32>}, {pipeline_mode = #tpu.pipeline_mode<synchronous>, transform_indices = @transform_5, window_bounds = array<i64: 1, 32>}, {transform_indices = @transform_6, window_bounds = array<i64: 1, 32, 96>}, {transform_indices = @transform_7, window_bounds = array<i64: 1, 1, 96>}, {transform_indices = @transform_8, window_bounds = array<i64: 1, 32, 32>}, {transform_indices = @transform_9, window_bounds = array<i64: 1, 1, 32>}, {transform_indices = @transform_10, window_bounds = array<i64: 1, 1, 32>}, {transform_indices = @transform_11, window_bounds = array<i64: 1, 1, 32>}, {transform_indices = @transform_12, window_bounds = array<i64: 1, 32, 32>}, {transform_indices = @transform_13, window_bounds = array<i64: 1, 1, 32>}, {transform_indices = @transform_14, window_bounds = array<i64: 1, 32, 64>}, {transform_indices = @transform_15, window_bounds = array<i64: 1, 1, 64>}, {transform_indices = @transform_16, window_bounds = array<i64: 1, 32, 32>}, {transform_indices = @transform_17, window_bounds = array<i64: 1, 1, 32>}, {transform_indices = @transform_18, window_bounds = array<i64: 1, 1, 32>}, {transform_indices = @transform_19, window_bounds = array<i64: 1, 1, 32>}, {transform_indices = @transform_20, window_bounds = array<i64: 1, 32, 64>}, {transform_indices = @transform_21, window_bounds = array<i64: 1, 1, 64>}, {transform_indices = @transform_22, window_bounds = array<i64: 1, 64, 32>}, {transform_indices = @transform_23, window_bounds = array<i64: 1, 1, 32>}, {transform_indices = @transform_24, window_bounds = array<i64: 1, 1, 32>}, {transform_indices = @transform_25, window_bounds = array<i64: 1, 1, 32>}, {pipeline_mode = #tpu.pipeline_mode<synchronous>, transform_indices = @transform_26, window_bounds = array<i64: 32, 128>}, {pipeline_mode = #tpu.pipeline_mode<synchronous>, transform_indices = @transform_27, window_bounds = array<i64: 1, 128>}, {transform_indices = @transform_28, window_bounds = array<i64: 1, 8, 128>}]} {
    %c0_i32 = arith.constant 0 : i32
    %0 = arith.cmpi eq, %arg1, %c0_i32 : i32
    %1 = arith.extui %0 : i1 to i32
    %c0_i32_0 = arith.constant 0 : i32
    %2 = arith.cmpi ne, %1, %c0_i32_0 : i32
    scf.if %2 {
      %c0_109 = arith.constant 0 : index
      %c0_110 = arith.constant 0 : index
      %c0_111 = arith.constant 0 : index
      %290 = vector.load %arg2[%c0_109, %c0_110, %c0_111] : memref<1x8x32xf32, #tpu.memory_space<vmem>>, vector<1x8x32xf32>
      %291 = vector.shape_cast %290 : vector<1x8x32xf32> to vector<8x32xf32>
      %c0_112 = arith.constant 0 : index
      %c0_113 = arith.constant 0 : index
      %292 = vector.load %arg6[%c0_112, %c0_113] : memref<1x32xf32, #tpu.memory_space<vmem>>, vector<1x32xf32>
      %c0_114 = arith.constant 0 : index
      %c0_115 = arith.constant 0 : index
      %293 = vector.load %arg7[%c0_114, %c0_115] : memref<1x32xf32, #tpu.memory_space<vmem>>, vector<1x32xf32>
      %cst_116 = arith.constant dense<0.000000e+00> : vector<8xf32>
      %294 = vector.multi_reduction <add>, %291, %cst_116 [1] : vector<8x32xf32> to vector<8xf32>
      %295 = vector.shape_cast %294 : vector<8xf32> to vector<8x1xf32>
      %cst_117 = arith.constant 3.200000e+01 : f32
      %296 = vector.broadcast %cst_117 : f32 to vector<8x1xf32>
      %297 = arith.divf %295, %296 : vector<8x1xf32>
      %298 = vector.broadcast %297 : vector<8x1xf32> to vector<8x32xf32>
      %299 = arith.subf %291, %298 : vector<8x32xf32>
      %300 = arith.mulf %299, %299 : vector<8x32xf32>
      %cst_118 = arith.constant dense<0.000000e+00> : vector<8xf32>
      %301 = vector.multi_reduction <add>, %300, %cst_118 [1] : vector<8x32xf32> to vector<8xf32>
      %302 = vector.shape_cast %301 : vector<8xf32> to vector<8x1xf32>
      %cst_119 = arith.constant 3.200000e+01 : f32
      %303 = vector.broadcast %cst_119 : f32 to vector<8x1xf32>
      %304 = arith.divf %302, %303 : vector<8x1xf32>
      %305 = vector.broadcast %297 : vector<8x1xf32> to vector<8x32xf32>
      %306 = arith.subf %291, %305 : vector<8x32xf32>
      %cst_120 = arith.constant 9.99999996E-13 : f32
      %307 = vector.broadcast %cst_120 : f32 to vector<8x1xf32>
      %308 = arith.addf %304, %307 : vector<8x1xf32>
      %309 = math.rsqrt %308 : vector<8x1xf32>
      %310 = vector.broadcast %309 : vector<8x1xf32> to vector<8x32xf32>
      %311 = arith.mulf %306, %310 : vector<8x32xf32>
      %312 = vector.broadcast %292 : vector<1x32xf32> to vector<8x32xf32>
      %313 = arith.mulf %311, %312 : vector<8x32xf32>
      %314 = vector.broadcast %293 : vector<1x32xf32> to vector<8x32xf32>
      %315 = arith.addf %313, %314 : vector<8x32xf32>
      %c0_121 = arith.constant 0 : index
      %c0_122 = arith.constant 0 : index
      %316 = vector.load %arg31[%c0_121, %c0_122] : memref<8x32xf32, #tpu.memory_space<vmem>>, vector<8x32xf32>
      tpu.vector_store %arg31[%c0_121, %c0_122], %315 {strides = array<i32>} : memref<8x32xf32, #tpu.memory_space<vmem>>, vector<8x32xf32>,
    } else {
    }
    %c0 = arith.constant 0 : index
    %c0_1 = arith.constant 0 : index
    %3 = vector.load %arg31[%c0, %c0_1] : memref<8x32xf32, #tpu.memory_space<vmem>>, vector<8x32xf32>
    %c0_2 = arith.constant 0 : index
    %c0_3 = arith.constant 0 : index
    %c0_4 = arith.constant 0 : index
    %4 = vector.load %arg3[%c0_2, %c0_3, %c0_4] : memref<1x8x32xf32, #tpu.memory_space<vmem>>, vector<1x8x32xf32>
    %5 = vector.shape_cast %4 : vector<1x8x32xf32> to vector<8x32xf32>
    %c0_5 = arith.constant 0 : index
    %c0_6 = arith.constant 0 : index
    %c0_7 = arith.constant 0 : index
    %6 = vector.load %arg8[%c0_5, %c0_6, %c0_7] : memref<1x32x96xf32, #tpu.memory_space<vmem>>, vector<1x32x96xf32>
    %7 = vector.shape_cast %6 : vector<1x32x96xf32> to vector<32x96xf32>
    %8 = arith.truncf %3 : vector<8x32xf32> to vector<8x32xbf16>
    %9 = arith.truncf %7 : vector<32x96xf32> to vector<32x96xbf16>
    %cst = arith.constant dense<0.000000e+00> : vector<8x96xf32>
    %10 = tpu.matmul %8, %9, %cst {dimension_numbers = #tpu.dot_dimension_numbers<[1], [0], [0], [1], [0, 0, 1, 1], [], []>} : vector<8x32xbf16>, vector<32x96xbf16>, vector<8x96xf32> -> vector<8x96xf32>
    %c0_8 = arith.constant 0 : index
    %c0_9 = arith.constant 0 : index
    %c0_10 = arith.constant 0 : index
    %11 = vector.load %arg9[%c0_8, %c0_9, %c0_10] : memref<1x1x96xf32, #tpu.memory_space<vmem>>, vector<1x1x96xf32>
    %12 = vector.shape_cast %11 : vector<1x1x96xf32> to vector<1x96xf32>
    %13 = vector.broadcast %12 : vector<1x96xf32> to vector<8x96xf32>
    %14 = arith.addf %10, %13 : vector<8x96xf32>
    %15 = vector.extract_strided_slice %14 {offsets = [0, 0], sizes = [8, 32], strides = [1, 1]} : vector<8x96xf32> to vector<8x32xf32>
    %16 = vector.extract_strided_slice %15 {offsets = [0, 0], sizes = [8, 8], strides = [1, 1]} : vector<8x32xf32> to vector<8x8xf32>
    %17 = vector.shape_cast %16 : vector<8x8xf32> to vector<1x8x8xf32>
    %18 = vector.extract_strided_slice %15 {offsets = [0, 8], sizes = [8, 8], strides = [1, 1]} : vector<8x32xf32> to vector<8x8xf32>
    %19 = vector.shape_cast %18 : vector<8x8xf32> to vector<1x8x8xf32>
    %20 = vector.extract_strided_slice %15 {offsets = [0, 16], sizes = [8, 8], strides = [1, 1]} : vector<8x32xf32> to vector<8x8xf32>
    %21 = vector.shape_cast %20 : vector<8x8xf32> to vector<1x8x8xf32>
    %22 = vector.extract_strided_slice %15 {offsets = [0, 24], sizes = [8, 8], strides = [1, 1]} : vector<8x32xf32> to vector<8x8xf32>
    %23 = vector.shape_cast %22 : vector<8x8xf32> to vector<1x8x8xf32>
    %24 = tpu.concatenate %17, %19, %21, %23 in 0 : vector<1x8x8xf32>, vector<1x8x8xf32>, vector<1x8x8xf32>, vector<1x8x8xf32> -> vector<4x8x8xf32>
    %25 = vector.extract_strided_slice %14 {offsets = [0, 32], sizes = [8, 32], strides = [1, 1]} : vector<8x96xf32> to vector<8x32xf32>
    %26 = vector.extract_strided_slice %25 {offsets = [0, 0], sizes = [8, 8], strides = [1, 1]} : vector<8x32xf32> to vector<8x8xf32>
    %27 = vector.shape_cast %26 : vector<8x8xf32> to vector<1x8x8xf32>
    %28 = vector.extract_strided_slice %25 {offsets = [0, 8], sizes = [8, 8], strides = [1, 1]} : vector<8x32xf32> to vector<8x8xf32>
    %29 = vector.shape_cast %28 : vector<8x8xf32> to vector<1x8x8xf32>
    %30 = vector.extract_strided_slice %25 {offsets = [0, 16], sizes = [8, 8], strides = [1, 1]} : vector<8x32xf32> to vector<8x8xf32>
    %31 = vector.shape_cast %30 : vector<8x8xf32> to vector<1x8x8xf32>
    %32 = vector.extract_strided_slice %25 {offsets = [0, 24], sizes = [8, 8], strides = [1, 1]} : vector<8x32xf32> to vector<8x8xf32>
    %33 = vector.shape_cast %32 : vector<8x8xf32> to vector<1x8x8xf32>
    %34 = tpu.concatenate %27, %29, %31, %33 in 0 : vector<1x8x8xf32>, vector<1x8x8xf32>, vector<1x8x8xf32>, vector<1x8x8xf32> -> vector<4x8x8xf32>
    %35 = vector.extract_strided_slice %14 {offsets = [0, 64], sizes = [8, 32], strides = [1, 1]} : vector<8x96xf32> to vector<8x32xf32>
    %36 = vector.extract_strided_slice %35 {offsets = [0, 0], sizes = [8, 8], strides = [1, 1]} : vector<8x32xf32> to vector<8x8xf32>
    %37 = vector.shape_cast %36 : vector<8x8xf32> to vector<1x8x8xf32>
    %38 = vector.extract_strided_slice %35 {offsets = [0, 8], sizes = [8, 8], strides = [1, 1]} : vector<8x32xf32> to vector<8x8xf32>
    %39 = vector.shape_cast %38 : vector<8x8xf32> to vector<1x8x8xf32>
    %40 = vector.extract_strided_slice %35 {offsets = [0, 16], sizes = [8, 8], strides = [1, 1]} : vector<8x32xf32> to vector<8x8xf32>
    %41 = vector.shape_cast %40 : vector<8x8xf32> to vector<1x8x8xf32>
    %42 = vector.extract_strided_slice %35 {offsets = [0, 24], sizes = [8, 8], strides = [1, 1]} : vector<8x32xf32> to vector<8x8xf32>
    %43 = vector.shape_cast %42 : vector<8x8xf32> to vector<1x8x8xf32>
    %44 = tpu.concatenate %37, %39, %41, %43 in 0 : vector<1x8x8xf32>, vector<1x8x8xf32>, vector<1x8x8xf32>, vector<1x8x8xf32> -> vector<4x8x8xf32>
    %c0_11 = arith.constant 0 : index
    %c0_12 = arith.constant 0 : index
    %c0_13 = arith.constant 0 : index
    %45 = vector.load %arg4[%c0_11, %c0_12, %c0_13] : memref<1x8x8xf32, #tpu.memory_space<vmem>>, vector<1x8x8xf32>
    %46 = vector.shape_cast %45 : vector<1x8x8xf32> to vector<8x8xf32>
    %47 = arith.truncf %24 : vector<4x8x8xf32> to vector<4x8x8xbf16>
    %48 = arith.truncf %34 : vector<4x8x8xf32> to vector<4x8x8xbf16>
    "tpu.trace_start"() <{level = 10 : i32, message = "hqd,hkd->hqk"}> : () -> ()
    %cst_14 = arith.constant dense<0.000000e+00> : vector<4x8x8xf32>
    %49 = tpu.matmul %47, %48, %cst_14 {dimension_numbers = #tpu.dot_dimension_numbers<[2], [2], [1], [1], [0, 0, 0, 1, 1, 1], [0], [0]>} : vector<4x8x8xbf16>, vector<4x8x8xbf16>, vector<4x8x8xf32> -> vector<4x8x8xf32>
    "tpu.trace_stop"() : () -> ()
    %cst_15 = arith.constant 0.353553385 : f32
    %50 = vector.broadcast %cst_15 : f32 to vector<4x8x8xf32>
    %51 = arith.mulf %49, %50 : vector<4x8x8xf32>
    %52 = vector.shape_cast %46 : vector<8x8xf32> to vector<1x8x8xf32>
    %53 = vector.broadcast %52 : vector<1x8x8xf32> to vector<4x8x8xf32>
    %54 = arith.addf %51, %53 : vector<4x8x8xf32>
    %cst_16 = arith.constant dense<0xFF800000> : vector<4x8xf32>
    %55 = vector.multi_reduction <maximumf>, %54, %cst_16 [2] : vector<4x8x8xf32> to vector<4x8xf32>
    %56 = vector.shape_cast %55 : vector<4x8xf32> to vector<4x8x1xf32>
    %57 = vector.broadcast %56 : vector<4x8x1xf32> to vector<4x8x8xf32>
    %58 = arith.subf %54, %57 : vector<4x8x8xf32>
    %59 = math.exp %58 : vector<4x8x8xf32>
    %cst_17 = arith.constant dense<0.000000e+00> : vector<4x8xf32>
    %60 = vector.multi_reduction <add>, %59, %cst_17 [2] : vector<4x8x8xf32> to vector<4x8xf32>
    %61 = vector.shape_cast %60 : vector<4x8xf32> to vector<4x8x1xf32>
    %62 = tpu.reciprocal %61 {approx = true} : vector<4x8x1xf32> -> vector<4x8x1xf32>
    %63 = vector.broadcast %62 : vector<4x8x1xf32> to vector<4x8x8xf32>
    %64 = arith.mulf %59, %63 : vector<4x8x8xf32>
    %65 = arith.truncf %64 : vector<4x8x8xf32> to vector<4x8x8xbf16>
    %66 = arith.truncf %44 : vector<4x8x8xf32> to vector<4x8x8xbf16>
    "tpu.trace_start"() <{level = 10 : i32, message = "hqk,hkd->hqd"}> : () -> ()
    %cst_18 = arith.constant dense<0.000000e+00> : vector<4x8x8xf32>
    %67 = tpu.matmul %65, %66, %cst_18 {dimension_numbers = #tpu.dot_dimension_numbers<[2], [1], [1], [2], [0, 0, 0, 1, 1, 2], [0], [0]>} : vector<4x8x8xbf16>, vector<4x8x8xbf16>, vector<4x8x8xf32> -> vector<4x8x8xf32>
    "tpu.trace_stop"() : () -> ()
    %68 = vector.extract_strided_slice %67 {offsets = [0, 0, 0], sizes = [1, 8, 8], strides = [1, 1, 1]} : vector<4x8x8xf32> to vector<1x8x8xf32>
    %69 = vector.shape_cast %68 : vector<1x8x8xf32> to vector<8x8xf32>
    %70 = vector.extract_strided_slice %67 {offsets = [1, 0, 0], sizes = [1, 8, 8], strides = [1, 1, 1]} : vector<4x8x8xf32> to vector<1x8x8xf32>
    %71 = vector.shape_cast %70 : vector<1x8x8xf32> to vector<8x8xf32>
    %72 = vector.extract_strided_slice %67 {offsets = [2, 0, 0], sizes = [1, 8, 8], strides = [1, 1, 1]} : vector<4x8x8xf32> to vector<1x8x8xf32>
    %73 = vector.shape_cast %72 : vector<1x8x8xf32> to vector<8x8xf32>
    %74 = vector.extract_strided_slice %67 {offsets = [3, 0, 0], sizes = [1, 8, 8], strides = [1, 1, 1]} : vector<4x8x8xf32> to vector<1x8x8xf32>
    %75 = vector.shape_cast %74 : vector<1x8x8xf32> to vector<8x8xf32>
    %76 = tpu.concatenate %69, %71, %73, %75 in 1 : vector<8x8xf32>, vector<8x8xf32>, vector<8x8xf32>, vector<8x8xf32> -> vector<8x32xf32>
    %c0_19 = arith.constant 0 : index
    %c0_20 = arith.constant 0 : index
    %c0_21 = arith.constant 0 : index
    %77 = vector.load %arg10[%c0_19, %c0_20, %c0_21] : memref<1x32x32xf32, #tpu.memory_space<vmem>>, vector<1x32x32xf32>
    %78 = vector.shape_cast %77 : vector<1x32x32xf32> to vector<32x32xf32>
    %79 = arith.truncf %76 : vector<8x32xf32> to vector<8x32xbf16>
    %80 = arith.truncf %78 : vector<32x32xf32> to vector<32x32xbf16>
    %cst_22 = arith.constant dense<0.000000e+00> : vector<8x32xf32>
    %81 = tpu.matmul %79, %80, %cst_22 {dimension_numbers = #tpu.dot_dimension_numbers<[1], [0], [0], [1], [0, 0, 1, 1], [], []>} : vector<8x32xbf16>, vector<32x32xbf16>, vector<8x32xf32> -> vector<8x32xf32>
    %c0_23 = arith.constant 0 : index
    %c0_24 = arith.constant 0 : index
    %c0_25 = arith.constant 0 : index
    %82 = vector.load %arg11[%c0_23, %c0_24, %c0_25] : memref<1x1x32xf32, #tpu.memory_space<vmem>>, vector<1x1x32xf32>
    %83 = vector.shape_cast %82 : vector<1x1x32xf32> to vector<1x32xf32>
    %84 = vector.broadcast %83 : vector<1x32xf32> to vector<8x32xf32>
    %85 = arith.addf %81, %84 : vector<8x32xf32>
    %86 = arith.addf %85, %3 : vector<8x32xf32>
    %c0_26 = arith.constant 0 : index
    %c0_27 = arith.constant 0 : index
    %c0_28 = arith.constant 0 : index
    %87 = vector.load %arg12[%c0_26, %c0_27, %c0_28] : memref<1x1x32xf32, #tpu.memory_space<vmem>>, vector<1x1x32xf32>
    %88 = vector.shape_cast %87 : vector<1x1x32xf32> to vector<1x32xf32>
    %c0_29 = arith.constant 0 : index
    %c0_30 = arith.constant 0 : index
    %c0_31 = arith.constant 0 : index
    %89 = vector.load %arg13[%c0_29, %c0_30, %c0_31] : memref<1x1x32xf32, #tpu.memory_space<vmem>>, vector<1x1x32xf32>
    %90 = vector.shape_cast %89 : vector<1x1x32xf32> to vector<1x32xf32>
    %cst_32 = arith.constant dense<0.000000e+00> : vector<8xf32>
    %91 = vector.multi_reduction <add>, %86, %cst_32 [1] : vector<8x32xf32> to vector<8xf32>
    %92 = vector.shape_cast %91 : vector<8xf32> to vector<8x1xf32>
    %cst_33 = arith.constant 3.200000e+01 : f32
    %93 = vector.broadcast %cst_33 : f32 to vector<8x1xf32>
    %94 = arith.divf %92, %93 : vector<8x1xf32>
    %95 = vector.broadcast %94 : vector<8x1xf32> to vector<8x32xf32>
    %96 = arith.subf %86, %95 : vector<8x32xf32>
    %97 = arith.mulf %96, %96 : vector<8x32xf32>
    %cst_34 = arith.constant dense<0.000000e+00> : vector<8xf32>
    %98 = vector.multi_reduction <add>, %97, %cst_34 [1] : vector<8x32xf32> to vector<8xf32>
    %99 = vector.shape_cast %98 : vector<8xf32> to vector<8x1xf32>
    %cst_35 = arith.constant 3.200000e+01 : f32
    %100 = vector.broadcast %cst_35 : f32 to vector<8x1xf32>
    %101 = arith.divf %99, %100 : vector<8x1xf32>
    %102 = vector.broadcast %94 : vector<8x1xf32> to vector<8x32xf32>
    %103 = arith.subf %86, %102 : vector<8x32xf32>
    %cst_36 = arith.constant 9.99999996E-13 : f32
    %104 = vector.broadcast %cst_36 : f32 to vector<8x1xf32>
    %105 = arith.addf %101, %104 : vector<8x1xf32>
    %106 = math.rsqrt %105 : vector<8x1xf32>
    %107 = vector.broadcast %106 : vector<8x1xf32> to vector<8x32xf32>
    %108 = arith.mulf %103, %107 : vector<8x32xf32>
    %109 = vector.broadcast %88 : vector<1x32xf32> to vector<8x32xf32>
    %110 = arith.mulf %108, %109 : vector<8x32xf32>
    %111 = vector.broadcast %90 : vector<1x32xf32> to vector<8x32xf32>
    %112 = arith.addf %110, %111 : vector<8x32xf32>
    %c0_37 = arith.constant 0 : index
    %c0_38 = arith.constant 0 : index
    %c0_39 = arith.constant 0 : index
    %113 = vector.load %arg14[%c0_37, %c0_38, %c0_39] : memref<1x32x32xf32, #tpu.memory_space<vmem>>, vector<1x32x32xf32>
    %114 = vector.shape_cast %113 : vector<1x32x32xf32> to vector<32x32xf32>
    %115 = arith.truncf %112 : vector<8x32xf32> to vector<8x32xbf16>
    %116 = arith.truncf %114 : vector<32x32xf32> to vector<32x32xbf16>
    %cst_40 = arith.constant dense<0.000000e+00> : vector<8x32xf32>
    %117 = tpu.matmul %115, %116, %cst_40 {dimension_numbers = #tpu.dot_dimension_numbers<[1], [0], [0], [1], [0, 0, 1, 1], [], []>} : vector<8x32xbf16>, vector<32x32xbf16>, vector<8x32xf32> -> vector<8x32xf32>
    %c0_41 = arith.constant 0 : index
    %c0_42 = arith.constant 0 : index
    %c0_43 = arith.constant 0 : index
    %118 = vector.load %arg15[%c0_41, %c0_42, %c0_43] : memref<1x1x32xf32, #tpu.memory_space<vmem>>, vector<1x1x32xf32>
    %119 = vector.shape_cast %118 : vector<1x1x32xf32> to vector<1x32xf32>
    %120 = vector.broadcast %119 : vector<1x32xf32> to vector<8x32xf32>
    %121 = arith.addf %117, %120 : vector<8x32xf32>
    %c0_44 = arith.constant 0 : index
    %c0_45 = arith.constant 0 : index
    %c0_46 = arith.constant 0 : index
    %122 = vector.load %arg16[%c0_44, %c0_45, %c0_46] : memref<1x32x64xf32, #tpu.memory_space<vmem>>, vector<1x32x64xf32>
    %123 = vector.shape_cast %122 : vector<1x32x64xf32> to vector<32x64xf32>
    %124 = arith.truncf %5 : vector<8x32xf32> to vector<8x32xbf16>
    %125 = arith.truncf %123 : vector<32x64xf32> to vector<32x64xbf16>
    %cst_47 = arith.constant dense<0.000000e+00> : vector<8x64xf32>
    %126 = tpu.matmul %124, %125, %cst_47 {dimension_numbers = #tpu.dot_dimension_numbers<[1], [0], [0], [1], [0, 0, 1, 1], [], []>} : vector<8x32xbf16>, vector<32x64xbf16>, vector<8x64xf32> -> vector<8x64xf32>
    %c0_48 = arith.constant 0 : index
    %c0_49 = arith.constant 0 : index
    %c0_50 = arith.constant 0 : index
    %127 = vector.load %arg17[%c0_48, %c0_49, %c0_50] : memref<1x1x64xf32, #tpu.memory_space<vmem>>, vector<1x1x64xf32>
    %128 = vector.shape_cast %127 : vector<1x1x64xf32> to vector<1x64xf32>
    %129 = vector.broadcast %128 : vector<1x64xf32> to vector<8x64xf32>
    %130 = arith.addf %126, %129 : vector<8x64xf32>
    %131 = vector.extract_strided_slice %121 {offsets = [0, 0], sizes = [8, 8], strides = [1, 1]} : vector<8x32xf32> to vector<8x8xf32>
    %132 = vector.shape_cast %131 : vector<8x8xf32> to vector<1x8x8xf32>
    %133 = vector.extract_strided_slice %121 {offsets = [0, 8], sizes = [8, 8], strides = [1, 1]} : vector<8x32xf32> to vector<8x8xf32>
    %134 = vector.shape_cast %133 : vector<8x8xf32> to vector<1x8x8xf32>
    %135 = vector.extract_strided_slice %121 {offsets = [0, 16], sizes = [8, 8], strides = [1, 1]} : vector<8x32xf32> to vector<8x8xf32>
    %136 = vector.shape_cast %135 : vector<8x8xf32> to vector<1x8x8xf32>
    %137 = vector.extract_strided_slice %121 {offsets = [0, 24], sizes = [8, 8], strides = [1, 1]} : vector<8x32xf32> to vector<8x8xf32>
    %138 = vector.shape_cast %137 : vector<8x8xf32> to vector<1x8x8xf32>
    %139 = tpu.concatenate %132, %134, %136, %138 in 0 : vector<1x8x8xf32>, vector<1x8x8xf32>, vector<1x8x8xf32>, vector<1x8x8xf32> -> vector<4x8x8xf32>
    %140 = vector.extract_strided_slice %130 {offsets = [0, 0], sizes = [8, 32], strides = [1, 1]} : vector<8x64xf32> to vector<8x32xf32>
    %141 = vector.extract_strided_slice %140 {offsets = [0, 0], sizes = [8, 8], strides = [1, 1]} : vector<8x32xf32> to vector<8x8xf32>
    %142 = vector.shape_cast %141 : vector<8x8xf32> to vector<1x8x8xf32>
    %143 = vector.extract_strided_slice %140 {offsets = [0, 8], sizes = [8, 8], strides = [1, 1]} : vector<8x32xf32> to vector<8x8xf32>
    %144 = vector.shape_cast %143 : vector<8x8xf32> to vector<1x8x8xf32>
    %145 = vector.extract_strided_slice %140 {offsets = [0, 16], sizes = [8, 8], strides = [1, 1]} : vector<8x32xf32> to vector<8x8xf32>
    %146 = vector.shape_cast %145 : vector<8x8xf32> to vector<1x8x8xf32>
    %147 = vector.extract_strided_slice %140 {offsets = [0, 24], sizes = [8, 8], strides = [1, 1]} : vector<8x32xf32> to vector<8x8xf32>
    %148 = vector.shape_cast %147 : vector<8x8xf32> to vector<1x8x8xf32>
    %149 = tpu.concatenate %142, %144, %146, %148 in 0 : vector<1x8x8xf32>, vector<1x8x8xf32>, vector<1x8x8xf32>, vector<1x8x8xf32> -> vector<4x8x8xf32>
    %150 = vector.extract_strided_slice %130 {offsets = [0, 32], sizes = [8, 32], strides = [1, 1]} : vector<8x64xf32> to vector<8x32xf32>
    %151 = vector.extract_strided_slice %150 {offsets = [0, 0], sizes = [8, 8], strides = [1, 1]} : vector<8x32xf32> to vector<8x8xf32>
    %152 = vector.shape_cast %151 : vector<8x8xf32> to vector<1x8x8xf32>
    %153 = vector.extract_strided_slice %150 {offsets = [0, 8], sizes = [8, 8], strides = [1, 1]} : vector<8x32xf32> to vector<8x8xf32>
    %154 = vector.shape_cast %153 : vector<8x8xf32> to vector<1x8x8xf32>
    %155 = vector.extract_strided_slice %150 {offsets = [0, 16], sizes = [8, 8], strides = [1, 1]} : vector<8x32xf32> to vector<8x8xf32>
    %156 = vector.shape_cast %155 : vector<8x8xf32> to vector<1x8x8xf32>
    %157 = vector.extract_strided_slice %150 {offsets = [0, 24], sizes = [8, 8], strides = [1, 1]} : vector<8x32xf32> to vector<8x8xf32>
    %158 = vector.shape_cast %157 : vector<8x8xf32> to vector<1x8x8xf32>
    %159 = tpu.concatenate %152, %154, %156, %158 in 0 : vector<1x8x8xf32>, vector<1x8x8xf32>, vector<1x8x8xf32>, vector<1x8x8xf32> -> vector<4x8x8xf32>
    %c0_51 = arith.constant 0 : index
    %c0_52 = arith.constant 0 : index
    %c0_53 = arith.constant 0 : index
    %160 = vector.load %arg5[%c0_51, %c0_52, %c0_53] : memref<1x1x8xf32, #tpu.memory_space<vmem>>, vector<1x1x8xf32>
    %161 = vector.shape_cast %160 : vector<1x1x8xf32> to vector<1x8xf32>
    %162 = arith.truncf %139 : vector<4x8x8xf32> to vector<4x8x8xbf16>
    %163 = arith.truncf %149 : vector<4x8x8xf32> to vector<4x8x8xbf16>
    "tpu.trace_start"() <{level = 10 : i32, message = "hqd,hkd->hqk"}> : () -> ()
    %cst_54 = arith.constant dense<0.000000e+00> : vector<4x8x8xf32>
    %164 = tpu.matmul %162, %163, %cst_54 {dimension_numbers = #tpu.dot_dimension_numbers<[2], [2], [1], [1], [0, 0, 0, 1, 1, 1], [0], [0]>} : vector<4x8x8xbf16>, vector<4x8x8xbf16>, vector<4x8x8xf32> -> vector<4x8x8xf32>
    "tpu.trace_stop"() : () -> ()
    %cst_55 = arith.constant 0.353553385 : f32
    %165 = vector.broadcast %cst_55 : f32 to vector<4x8x8xf32>
    %166 = arith.mulf %164, %165 : vector<4x8x8xf32>
    %167 = vector.shape_cast %161 : vector<1x8xf32> to vector<1x1x8xf32>
    %168 = vector.broadcast %167 : vector<1x1x8xf32> to vector<4x8x8xf32>
    %169 = arith.addf %166, %168 : vector<4x8x8xf32>
    %cst_56 = arith.constant dense<0xFF800000> : vector<4x8xf32>
    %170 = vector.multi_reduction <maximumf>, %169, %cst_56 [2] : vector<4x8x8xf32> to vector<4x8xf32>
    %171 = vector.shape_cast %170 : vector<4x8xf32> to vector<4x8x1xf32>
    %172 = vector.broadcast %171 : vector<4x8x1xf32> to vector<4x8x8xf32>
    %173 = arith.subf %169, %172 : vector<4x8x8xf32>
    %174 = math.exp %173 : vector<4x8x8xf32>
    %cst_57 = arith.constant dense<0.000000e+00> : vector<4x8xf32>
    %175 = vector.multi_reduction <add>, %174, %cst_57 [2] : vector<4x8x8xf32> to vector<4x8xf32>
    %176 = vector.shape_cast %175 : vector<4x8xf32> to vector<4x8x1xf32>
    %177 = tpu.reciprocal %176 {approx = true} : vector<4x8x1xf32> -> vector<4x8x1xf32>
    %178 = vector.broadcast %177 : vector<4x8x1xf32> to vector<4x8x8xf32>
    %179 = arith.mulf %174, %178 : vector<4x8x8xf32>
    %180 = arith.truncf %179 : vector<4x8x8xf32> to vector<4x8x8xbf16>
    %181 = arith.truncf %159 : vector<4x8x8xf32> to vector<4x8x8xbf16>
    "tpu.trace_start"() <{level = 10 : i32, message = "hqk,hkd->hqd"}> : () -> ()
    %cst_58 = arith.constant dense<0.000000e+00> : vector<4x8x8xf32>
    %182 = tpu.matmul %180, %181, %cst_58 {dimension_numbers = #tpu.dot_dimension_numbers<[2], [1], [1], [2], [0, 0, 0, 1, 1, 2], [0], [0]>} : vector<4x8x8xbf16>, vector<4x8x8xbf16>, vector<4x8x8xf32> -> vector<4x8x8xf32>
    "tpu.trace_stop"() : () -> ()
    %183 = vector.extract_strided_slice %182 {offsets = [0, 0, 0], sizes = [1, 8, 8], strides = [1, 1, 1]} : vector<4x8x8xf32> to vector<1x8x8xf32>
    %184 = vector.shape_cast %183 : vector<1x8x8xf32> to vector<8x8xf32>
    %185 = vector.extract_strided_slice %182 {offsets = [1, 0, 0], sizes = [1, 8, 8], strides = [1, 1, 1]} : vector<4x8x8xf32> to vector<1x8x8xf32>
    %186 = vector.shape_cast %185 : vector<1x8x8xf32> to vector<8x8xf32>
    %187 = vector.extract_strided_slice %182 {offsets = [2, 0, 0], sizes = [1, 8, 8], strides = [1, 1, 1]} : vector<4x8x8xf32> to vector<1x8x8xf32>
    %188 = vector.shape_cast %187 : vector<1x8x8xf32> to vector<8x8xf32>
    %189 = vector.extract_strided_slice %182 {offsets = [3, 0, 0], sizes = [1, 8, 8], strides = [1, 1, 1]} : vector<4x8x8xf32> to vector<1x8x8xf32>
    %190 = vector.shape_cast %189 : vector<1x8x8xf32> to vector<8x8xf32>
    %191 = tpu.concatenate %184, %186, %188, %190 in 1 : vector<8x8xf32>, vector<8x8xf32>, vector<8x8xf32>, vector<8x8xf32> -> vector<8x32xf32>
    %c0_59 = arith.constant 0 : index
    %c0_60 = arith.constant 0 : index
    %c0_61 = arith.constant 0 : index
    %192 = vector.load %arg18[%c0_59, %c0_60, %c0_61] : memref<1x32x32xf32, #tpu.memory_space<vmem>>, vector<1x32x32xf32>
    %193 = vector.shape_cast %192 : vector<1x32x32xf32> to vector<32x32xf32>
    %194 = arith.truncf %191 : vector<8x32xf32> to vector<8x32xbf16>
    %195 = arith.truncf %193 : vector<32x32xf32> to vector<32x32xbf16>
    %cst_62 = arith.constant dense<0.000000e+00> : vector<8x32xf32>
    %196 = tpu.matmul %194, %195, %cst_62 {dimension_numbers = #tpu.dot_dimension_numbers<[1], [0], [0], [1], [0, 0, 1, 1], [], []>} : vector<8x32xbf16>, vector<32x32xbf16>, vector<8x32xf32> -> vector<8x32xf32>
    %c0_63 = arith.constant 0 : index
    %c0_64 = arith.constant 0 : index
    %c0_65 = arith.constant 0 : index
    %197 = vector.load %arg19[%c0_63, %c0_64, %c0_65] : memref<1x1x32xf32, #tpu.memory_space<vmem>>, vector<1x1x32xf32>
    %198 = vector.shape_cast %197 : vector<1x1x32xf32> to vector<1x32xf32>
    %199 = vector.broadcast %198 : vector<1x32xf32> to vector<8x32xf32>
    %200 = arith.addf %196, %199 : vector<8x32xf32>
    %201 = arith.addf %200, %112 : vector<8x32xf32>
    %c0_66 = arith.constant 0 : index
    %c0_67 = arith.constant 0 : index
    %c0_68 = arith.constant 0 : index
    %202 = vector.load %arg20[%c0_66, %c0_67, %c0_68] : memref<1x1x32xf32, #tpu.memory_space<vmem>>, vector<1x1x32xf32>
    %203 = vector.shape_cast %202 : vector<1x1x32xf32> to vector<1x32xf32>
    %c0_69 = arith.constant 0 : index
    %c0_70 = arith.constant 0 : index
    %c0_71 = arith.constant 0 : index
    %204 = vector.load %arg21[%c0_69, %c0_70, %c0_71] : memref<1x1x32xf32, #tpu.memory_space<vmem>>, vector<1x1x32xf32>
    %205 = vector.shape_cast %204 : vector<1x1x32xf32> to vector<1x32xf32>
    %cst_72 = arith.constant dense<0.000000e+00> : vector<8xf32>
    %206 = vector.multi_reduction <add>, %201, %cst_72 [1] : vector<8x32xf32> to vector<8xf32>
    %207 = vector.shape_cast %206 : vector<8xf32> to vector<8x1xf32>
    %cst_73 = arith.constant 3.200000e+01 : f32
    %208 = vector.broadcast %cst_73 : f32 to vector<8x1xf32>
    %209 = arith.divf %207, %208 : vector<8x1xf32>
    %210 = vector.broadcast %209 : vector<8x1xf32> to vector<8x32xf32>
    %211 = arith.subf %201, %210 : vector<8x32xf32>
    %212 = arith.mulf %211, %211 : vector<8x32xf32>
    %cst_74 = arith.constant dense<0.000000e+00> : vector<8xf32>
    %213 = vector.multi_reduction <add>, %212, %cst_74 [1] : vector<8x32xf32> to vector<8xf32>
    %214 = vector.shape_cast %213 : vector<8xf32> to vector<8x1xf32>
    %cst_75 = arith.constant 3.200000e+01 : f32
    %215 = vector.broadcast %cst_75 : f32 to vector<8x1xf32>
    %216 = arith.divf %214, %215 : vector<8x1xf32>
    %217 = vector.broadcast %209 : vector<8x1xf32> to vector<8x32xf32>
    %218 = arith.subf %201, %217 : vector<8x32xf32>
    %cst_76 = arith.constant 9.99999996E-13 : f32
    %219 = vector.broadcast %cst_76 : f32 to vector<8x1xf32>
    %220 = arith.addf %216, %219 : vector<8x1xf32>
    %221 = math.rsqrt %220 : vector<8x1xf32>
    %222 = vector.broadcast %221 : vector<8x1xf32> to vector<8x32xf32>
    %223 = arith.mulf %218, %222 : vector<8x32xf32>
    %224 = vector.broadcast %203 : vector<1x32xf32> to vector<8x32xf32>
    %225 = arith.mulf %223, %224 : vector<8x32xf32>
    %226 = vector.broadcast %205 : vector<1x32xf32> to vector<8x32xf32>
    %227 = arith.addf %225, %226 : vector<8x32xf32>
    %c0_77 = arith.constant 0 : index
    %c0_78 = arith.constant 0 : index
    %c0_79 = arith.constant 0 : index
    %228 = vector.load %arg22[%c0_77, %c0_78, %c0_79] : memref<1x32x64xf32, #tpu.memory_space<vmem>>, vector<1x32x64xf32>
    %229 = vector.shape_cast %228 : vector<1x32x64xf32> to vector<32x64xf32>
    %230 = arith.truncf %227 : vector<8x32xf32> to vector<8x32xbf16>
    %231 = arith.truncf %229 : vector<32x64xf32> to vector<32x64xbf16>
    %cst_80 = arith.constant dense<0.000000e+00> : vector<8x64xf32>
    %232 = tpu.matmul %230, %231, %cst_80 {dimension_numbers = #tpu.dot_dimension_numbers<[1], [0], [0], [1], [0, 0, 1, 1], [], []>} : vector<8x32xbf16>, vector<32x64xbf16>, vector<8x64xf32> -> vector<8x64xf32>
    %c0_81 = arith.constant 0 : index
    %c0_82 = arith.constant 0 : index
    %c0_83 = arith.constant 0 : index
    %233 = vector.load %arg23[%c0_81, %c0_82, %c0_83] : memref<1x1x64xf32, #tpu.memory_space<vmem>>, vector<1x1x64xf32>
    %234 = vector.shape_cast %233 : vector<1x1x64xf32> to vector<1x64xf32>
    %235 = vector.broadcast %234 : vector<1x64xf32> to vector<8x64xf32>
    %236 = arith.addf %232, %235 : vector<8x64xf32>
    %cst_84 = arith.constant 5.000000e-01 : f32
    %237 = vector.broadcast %cst_84 : f32 to vector<8x64xf32>
    %238 = arith.mulf %237, %236 : vector<8x64xf32>
    %cst_85 = arith.constant 4.471500e-02 : f32
    %239 = vector.broadcast %cst_85 : f32 to vector<8x64xf32>
    %240 = arith.mulf %239, %236 : vector<8x64xf32>
    %241 = arith.mulf %240, %236 : vector<8x64xf32>
    %242 = arith.mulf %241, %236 : vector<8x64xf32>
    %243 = arith.addf %236, %242 : vector<8x64xf32>
    %cst_86 = arith.constant 0.797884583 : f32
    %244 = vector.broadcast %cst_86 : f32 to vector<8x64xf32>
    %245 = arith.mulf %244, %243 : vector<8x64xf32>
    %246 = math.tanh %245 : vector<8x64xf32>
    %cst_87 = arith.constant 1.000000e+00 : f32
    %247 = vector.broadcast %cst_87 : f32 to vector<8x64xf32>
    %248 = arith.addf %247, %246 : vector<8x64xf32>
    %249 = arith.mulf %238, %248 : vector<8x64xf32>
    %c0_88 = arith.constant 0 : index
    %c0_89 = arith.constant 0 : index
    %c0_90 = arith.constant 0 : index
    %250 = vector.load %arg24[%c0_88, %c0_89, %c0_90] : memref<1x64x32xf32, #tpu.memory_space<vmem>>, vector<1x64x32xf32>
    %251 = vector.shape_cast %250 : vector<1x64x32xf32> to vector<64x32xf32>
    %252 = arith.truncf %249 : vector<8x64xf32> to vector<8x64xbf16>
    %253 = arith.truncf %251 : vector<64x32xf32> to vector<64x32xbf16>
    %cst_91 = arith.constant dense<0.000000e+00> : vector<8x32xf32>
    %254 = tpu.matmul %252, %253, %cst_91 {dimension_numbers = #tpu.dot_dimension_numbers<[1], [0], [0], [1], [0, 0, 1, 1], [], []>} : vector<8x64xbf16>, vector<64x32xbf16>, vector<8x32xf32> -> vector<8x32xf32>
    %c0_92 = arith.constant 0 : index
    %c0_93 = arith.constant 0 : index
    %c0_94 = arith.constant 0 : index
    %255 = vector.load %arg25[%c0_92, %c0_93, %c0_94] : memref<1x1x32xf32, #tpu.memory_space<vmem>>, vector<1x1x32xf32>
    %256 = vector.shape_cast %255 : vector<1x1x32xf32> to vector<1x32xf32>
    %257 = vector.broadcast %256 : vector<1x32xf32> to vector<8x32xf32>
    %258 = arith.addf %254, %257 : vector<8x32xf32>
    %259 = arith.addf %258, %227 : vector<8x32xf32>
    %c0_95 = arith.constant 0 : index
    %c0_96 = arith.constant 0 : index
    %c0_97 = arith.constant 0 : index
    %260 = vector.load %arg26[%c0_95, %c0_96, %c0_97] : memref<1x1x32xf32, #tpu.memory_space<vmem>>, vector<1x1x32xf32>
    %261 = vector.shape_cast %260 : vector<1x1x32xf32> to vector<1x32xf32>
    %c0_98 = arith.constant 0 : index
    %c0_99 = arith.constant 0 : index
    %c0_100 = arith.constant 0 : index
    %262 = vector.load %arg27[%c0_98, %c0_99, %c0_100] : memref<1x1x32xf32, #tpu.memory_space<vmem>>, vector<1x1x32xf32>
    %263 = vector.shape_cast %262 : vector<1x1x32xf32> to vector<1x32xf32>
    %cst_101 = arith.constant dense<0.000000e+00> : vector<8xf32>
    %264 = vector.multi_reduction <add>, %259, %cst_101 [1] : vector<8x32xf32> to vector<8xf32>
    %265 = vector.shape_cast %264 : vector<8xf32> to vector<8x1xf32>
    %cst_102 = arith.constant 3.200000e+01 : f32
    %266 = vector.broadcast %cst_102 : f32 to vector<8x1xf32>
    %267 = arith.divf %265, %266 : vector<8x1xf32>
    %268 = vector.broadcast %267 : vector<8x1xf32> to vector<8x32xf32>
    %269 = arith.subf %259, %268 : vector<8x32xf32>
    %270 = arith.mulf %269, %269 : vector<8x32xf32>
    %cst_103 = arith.constant dense<0.000000e+00> : vector<8xf32>
    %271 = vector.multi_reduction <add>, %270, %cst_103 [1] : vector<8x32xf32> to vector<8xf32>
    %272 = vector.shape_cast %271 : vector<8xf32> to vector<8x1xf32>
    %cst_104 = arith.constant 3.200000e+01 : f32
    %273 = vector.broadcast %cst_104 : f32 to vector<8x1xf32>
    %274 = arith.divf %272, %273 : vector<8x1xf32>
    %275 = vector.broadcast %267 : vector<8x1xf32> to vector<8x32xf32>
    %276 = arith.subf %259, %275 : vector<8x32xf32>
    %cst_105 = arith.constant 9.99999996E-13 : f32
    %277 = vector.broadcast %cst_105 : f32 to vector<8x1xf32>
    %278 = arith.addf %274, %277 : vector<8x1xf32>
    %279 = math.rsqrt %278 : vector<8x1xf32>
    %280 = vector.broadcast %279 : vector<8x1xf32> to vector<8x32xf32>
    %281 = arith.mulf %276, %280 : vector<8x32xf32>
    %282 = vector.broadcast %261 : vector<1x32xf32> to vector<8x32xf32>
    %283 = arith.mulf %281, %282 : vector<8x32xf32>
    %284 = vector.broadcast %263 : vector<1x32xf32> to vector<8x32xf32>
    %285 = arith.addf %283, %284 : vector<8x32xf32>
    %c0_106 = arith.constant 0 : index
    %c0_107 = arith.constant 0 : index
    %286 = vector.load %arg31[%c0_106, %c0_107] : memref<8x32xf32, #tpu.memory_space<vmem>>, vector<8x32xf32>
    tpu.vector_store %arg31[%c0_106, %c0_107], %285 {strides = array<i32>} : memref<8x32xf32, #tpu.memory_space<vmem>>, vector<8x32xf32>,
    %c1_i32 = arith.constant 1 : i32
    %287 = arith.cmpi eq, %arg1, %c1_i32 : i32
    %288 = arith.extui %287 : i1 to i32
    %c0_i32_108 = arith.constant 0 : i32
    %289 = arith.cmpi ne, %288, %c0_i32_108 : i32
    scf.if %289 {
      %c0_109 = arith.constant 0 : index
      %c0_110 = arith.constant 0 : index
      %290 = vector.load %arg28[%c0_109, %c0_110] : memref<32x128xf32, #tpu.memory_space<vmem>>, vector<32x128xf32>
      %291 = arith.truncf %285 : vector<8x32xf32> to vector<8x32xbf16>
      %292 = arith.truncf %290 : vector<32x128xf32> to vector<32x128xbf16>
      %cst_111 = arith.constant dense<0.000000e+00> : vector<8x128xf32>
      %293 = tpu.matmul %291, %292, %cst_111 {dimension_numbers = #tpu.dot_dimension_numbers<[1], [0], [0], [1], [0, 0, 1, 1], [], []>} : vector<8x32xbf16>, vector<32x128xbf16>, vector<8x128xf32> -> vector<8x128xf32>
      %c0_112 = arith.constant 0 : index
      %c0_113 = arith.constant 0 : index
      %294 = vector.load %arg29[%c0_112, %c0_113] : memref<1x128xf32, #tpu.memory_space<vmem>>, vector<1x128xf32>
      %295 = vector.broadcast %294 : vector<1x128xf32> to vector<8x128xf32>
      %296 = arith.addf %293, %295 : vector<8x128xf32>
      %c0_114 = arith.constant 0 : index
      %c0_115 = arith.constant 0 : index
      %c0_116 = arith.constant 0 : index
      %297 = vector.load %arg30[%c0_114, %c0_115, %c0_116] : memref<1x8x128xf32, #tpu.memory_space<vmem>>, vector<1x8x128xf32>
      %298 = vector.shape_cast %297 : vector<1x8x128xf32> to vector<8x128xf32>
      %299 = vector.shape_cast %296 : vector<8x128xf32> to vector<1x8x128xf32>
      tpu.vector_store %arg30[%c0_114, %c0_115, %c0_116], %299 {strides = array<i32>} : memref<1x8x128xf32, #tpu.memory_space<vmem>>, vector<1x8x128xf32>,
    } else {
    }
    return
  }
  func.func @transform_0(%arg0: i32, %arg1: i32) -> (i32, i32, i32) {
    %c0_i32 = arith.constant 0 : i32
    %c0_i32_0 = arith.constant 0 : i32
    %c0_i32_1 = arith.constant 0 : i32
    return %arg0, %c0_i32, %c0_i32_0 : i32, i32, i32
  }
  func.func @transform_1(%arg0: i32, %arg1: i32) -> (i32, i32, i32) {
    %c0_i32 = arith.constant 0 : i32
    %c0_i32_0 = arith.constant 0 : i32
    %c0_i32_1 = arith.constant 0 : i32
    return %arg0, %c0_i32, %c0_i32_0 : i32, i32, i32
  }
  func.func @transform_2(%arg0: i32, %arg1: i32) -> (i32, i32, i32) {
    %c0_i32 = arith.constant 0 : i32
    %c0_i32_0 = arith.constant 0 : i32
    %c0_i32_1 = arith.constant 0 : i32
    return %arg0, %c0_i32, %c0_i32_0 : i32, i32, i32
  }
  func.func @transform_3(%arg0: i32, %arg1: i32) -> (i32, i32, i32) {
    %c0_i32 = arith.constant 0 : i32
    %c0_i32_0 = arith.constant 0 : i32
    %c0_i32_1 = arith.constant 0 : i32
    return %arg0, %c0_i32, %c0_i32_0 : i32, i32, i32
  }
  func.func @transform_4(%arg0: i32, %arg1: i32) -> (i32, i32) {
    %c0_i32 = arith.constant 0 : i32
    %c0_i32_0 = arith.constant 0 : i32
    %c0_i32_1 = arith.constant 0 : i32
    return %c0_i32, %c0_i32_0 : i32, i32
  }
  func.func @transform_5(%arg0: i32, %arg1: i32) -> (i32, i32) {
    %c0_i32 = arith.constant 0 : i32
    %c0_i32_0 = arith.constant 0 : i32
    %c0_i32_1 = arith.constant 0 : i32
    return %c0_i32, %c0_i32_0 : i32, i32
  }
  func.func @transform_6(%arg0: i32, %arg1: i32) -> (i32, i32, i32) {
    %c0_i32 = arith.constant 0 : i32
    %c0_i32_0 = arith.constant 0 : i32
    %c0_i32_1 = arith.constant 0 : i32
    return %arg1, %c0_i32, %c0_i32_0 : i32, i32, i32
  }
  func.func @transform_7(%arg0: i32, %arg1: i32) -> (i32, i32, i32) {
    %c0_i32 = arith.constant 0 : i32
    %c0_i32_0 = arith.constant 0 : i32
    %c0_i32_1 = arith.constant 0 : i32
    return %arg1, %c0_i32, %c0_i32_0 : i32, i32, i32
  }
  func.func @transform_8(%arg0: i32, %arg1: i32) -> (i32, i32, i32) {
    %c0_i32 = arith.constant 0 : i32
    %c0_i32_0 = arith.constant 0 : i32
    %c0_i32_1 = arith.constant 0 : i32
    return %arg1, %c0_i32, %c0_i32_0 : i32, i32, i32
  }
  func.func @transform_9(%arg0: i32, %arg1: i32) -> (i32, i32, i32) {
    %c0_i32 = arith.constant 0 : i32
    %c0_i32_0 = arith.constant 0 : i32
    %c0_i32_1 = arith.constant 0 : i32
    return %arg1, %c0_i32, %c0_i32_0 : i32, i32, i32
  }
  func.func @transform_10(%arg0: i32, %arg1: i32) -> (i32, i32, i32) {
    %c0_i32 = arith.constant 0 : i32
    %c0_i32_0 = arith.constant 0 : i32
    %c0_i32_1 = arith.constant 0 : i32
    return %arg1, %c0_i32, %c0_i32_0 : i32, i32, i32
  }
  func.func @transform_11(%arg0: i32, %arg1: i32) -> (i32, i32, i32) {
    %c0_i32 = arith.constant 0 : i32
    %c0_i32_0 = arith.constant 0 : i32
    %c0_i32_1 = arith.constant 0 : i32
    return %arg1, %c0_i32, %c0_i32_0 : i32, i32, i32
  }
  func.func @transform_12(%arg0: i32, %arg1: i32) -> (i32, i32, i32) {
    %c0_i32 = arith.constant 0 : i32
    %c0_i32_0 = arith.constant 0 : i32
    %c0_i32_1 = arith.constant 0 : i32
    return %arg1, %c0_i32, %c0_i32_0 : i32, i32, i32
  }
  func.func @transform_13(%arg0: i32, %arg1: i32) -> (i32, i32, i32) {
    %c0_i32 = arith.constant 0 : i32
    %c0_i32_0 = arith.constant 0 : i32
    %c0_i32_1 = arith.constant 0 : i32
    return %arg1, %c0_i32, %c0_i32_0 : i32, i32, i32
  }
  func.func @transform_14(%arg0: i32, %arg1: i32) -> (i32, i32, i32) {
    %c0_i32 = arith.constant 0 : i32
    %c0_i32_0 = arith.constant 0 : i32
    %c0_i32_1 = arith.constant 0 : i32
    return %arg1, %c0_i32, %c0_i32_0 : i32, i32, i32
  }
  func.func @transform_15(%arg0: i32, %arg1: i32) -> (i32, i32, i32) {
    %c0_i32 = arith.constant 0 : i32
    %c0_i32_0 = arith.constant 0 : i32
    %c0_i32_1 = arith.constant 0 : i32
    return %arg1, %c0_i32, %c0_i32_0 : i32, i32, i32
  }
  func.func @transform_16(%arg0: i32, %arg1: i32) -> (i32, i32, i32) {
    %c0_i32 = arith.constant 0 : i32
    %c0_i32_0 = arith.constant 0 : i32
    %c0_i32_1 = arith.constant 0 : i32
    return %arg1, %c0_i32, %c0_i32_0 : i32, i32, i32
  }
  func.func @transform_17(%arg0: i32, %arg1: i32) -> (i32, i32, i32) {
    %c0_i32 = arith.constant 0 : i32
    %c0_i32_0 = arith.constant 0 : i32
    %c0_i32_1 = arith.constant 0 : i32
    return %arg1, %c0_i32, %c0_i32_0 : i32, i32, i32
  }
  func.func @transform_18(%arg0: i32, %arg1: i32) -> (i32, i32, i32) {
    %c0_i32 = arith.constant 0 : i32
    %c0_i32_0 = arith.constant 0 : i32
    %c0_i32_1 = arith.constant 0 : i32
    return %arg1, %c0_i32, %c0_i32_0 : i32, i32, i32
  }
  func.func @transform_19(%arg0: i32, %arg1: i32) -> (i32, i32, i32) {
    %c0_i32 = arith.constant 0 : i32
    %c0_i32_0 = arith.constant 0 : i32
    %c0_i32_1 = arith.constant 0 : i32
    return %arg1, %c0_i32, %c0_i32_0 : i32, i32, i32
  }
  func.func @transform_20(%arg0: i32, %arg1: i32) -> (i32, i32, i32) {
    %c0_i32 = arith.constant 0 : i32
    %c0_i32_0 = arith.constant 0 : i32
    %c0_i32_1 = arith.constant 0 : i32
    return %arg1, %c0_i32, %c0_i32_0 : i32, i32, i32
  }
  func.func @transform_21(%arg0: i32, %arg1: i32) -> (i32, i32, i32) {
    %c0_i32 = arith.constant 0 : i32
    %c0_i32_0 = arith.constant 0 : i32
    %c0_i32_1 = arith.constant 0 : i32
    return %arg1, %c0_i32, %c0_i32_0 : i32, i32, i32
  }
  func.func @transform_22(%arg0: i32, %arg1: i32) -> (i32, i32, i32) {
    %c0_i32 = arith.constant 0 : i32
    %c0_i32_0 = arith.constant 0 : i32
    %c0_i32_1 = arith.constant 0 : i32
    return %arg1, %c0_i32, %c0_i32_0 : i32, i32, i32
  }
  func.func @transform_23(%arg0: i32, %arg1: i32) -> (i32, i32, i32) {
    %c0_i32 = arith.constant 0 : i32
    %c0_i32_0 = arith.constant 0 : i32
    %c0_i32_1 = arith.constant 0 : i32
    return %arg1, %c0_i32, %c0_i32_0 : i32, i32, i32
  }
  func.func @transform_24(%arg0: i32, %arg1: i32) -> (i32, i32, i32) {
    %c0_i32 = arith.constant 0 : i32
    %c0_i32_0 = arith.constant 0 : i32
    %c0_i32_1 = arith.constant 0 : i32
    return %arg1, %c0_i32, %c0_i32_0 : i32, i32, i32
  }
  func.func @transform_25(%arg0: i32, %arg1: i32) -> (i32, i32, i32) {
    %c0_i32 = arith.constant 0 : i32
    %c0_i32_0 = arith.constant 0 : i32
    %c0_i32_1 = arith.constant 0 : i32
    return %arg1, %c0_i32, %c0_i32_0 : i32, i32, i32
  }
  func.func @transform_26(%arg0: i32, %arg1: i32) -> (i32, i32) {
    %c0_i32 = arith.constant 0 : i32
    %c0_i32_0 = arith.constant 0 : i32
    %c0_i32_1 = arith.constant 0 : i32
    return %c0_i32, %c0_i32_0 : i32, i32
  }
  func.func @transform_27(%arg0: i32, %arg1: i32) -> (i32, i32) {
    %c0_i32 = arith.constant 0 : i32
    %c0_i32_0 = arith.constant 0 : i32
    %c0_i32_1 = arith.constant 0 : i32
    return %c0_i32, %c0_i32_0 : i32, i32
  }
  func.func @transform_28(%arg0: i32, %arg1: i32) -> (i32, i32, i32) {
    %c0_i32 = arith.constant 0 : i32
    %c0_i32_0 = arith.constant 0 : i32
    %c0_i32_1 = arith.constant 0 : i32
    return %arg0, %c0_i32, %c0_i32_0 : i32, i32, i32
  }
}

</mosaic_0001>

<llo_original>
// kernel: rrs_forward.2
$region0: #{rrs_forward.2}
  #allocation0 [shape = 'u32[]', space=smem, size = 0x4, offset = 0x4, fixed_abs, tag = 'smem constant byte address 0x4 - core index']
  #allocation1 [shape = 'u32[144,128]{1,0:T(1,128)}', space=vmem, size = 0x12000, scoped, tag = 'internal scratch']
  #allocation2 [shape = 'f32[8,32]{1,0:T(8,128)}', space=vmem, size = 0x1000, scoped, tag = 'scratch operand']
  %s0 = inlined_call_operand.vmem [shape: f32[2,8,32], index: 0, kind: input, shape index: {}]
  %s1 = inlined_call_operand.vmem [shape: f32[2,1,8], index: 1, kind: input, shape index: {}]
  %s2 = inlined_call_operand.vmem [shape: f32[1,32], index: 2, kind: input, shape index: {}]
  %s3 = inlined_call_operand.vmem [shape: f32[1,32], index: 3, kind: input, shape index: {}]
  %s4 = inlined_call_operand.vmem [shape: f32[2,32,96], index: 4, kind: input, shape index: {}]
  %s5 = inlined_call_operand.vmem [shape: f32[2,1,96], index: 5, kind: input, shape index: {}]
  %s6 = inlined_call_operand.vmem [shape: f32[2,32,32], index: 6, kind: input, shape index: {}]
  %s7 = inlined_call_operand.vmem [shape: f32[2,1,32], index: 7, kind: input, shape index: {}]
  %s8 = inlined_call_operand.vmem [shape: f32[2,1,32], index: 8, kind: input, shape index: {}]
  %s9 = inlined_call_operand.vmem [shape: f32[2,1,32], index: 9, kind: input, shape index: {}]
  %s10 = inlined_call_operand.vmem [shape: f32[2,32,64], index: 10, kind: input, shape index: {}]
  %s11 = inlined_call_operand.vmem [shape: f32[2,1,64], index: 11, kind: input, shape index: {}]
  %s12 = inlined_call_operand.vmem [shape: f32[2,64,32], index: 12, kind: input, shape index: {}]
  %s13 = inlined_call_operand.vmem [shape: f32[2,1,32], index: 13, kind: input, shape index: {}]
  %s14 = inlined_call_operand.vmem [shape: f32[2,1,32], index: 14, kind: input, shape index: {}]
  %s15 = inlined_call_operand.vmem [shape: f32[2,1,32], index: 15, kind: input, shape index: {}]
  %s16 = inlined_call_operand.vmem [shape: f32[2,8,32], index: 16, kind: output, shape index: {}]
  %s17 = sld [smem:[#allocation0]]
  $region105: #{rrs_forward.2} parent=0
    _
  %s19 = ssub.s32 1, %s17
  %s20 = scalar_select 0, %s19, %s17
  loop: start=0, step=1, limit=6
  $region2: #{rrs_forward.2} parent=0 // loop_pre_header
    _
  $region3: #{rrs_forward.2} parent=0 // loop_header
    %s22 = sphi 0, %s26
    %p23 = scmp.ge.s32.totalorder %s22, 6
    %s29 = sphi 0, %s41
    %s30 = sphi 0, %s37
    %s31 = sphi 0, %s29
    %s32 = sphi 0, %s30
    %s33 = sphi 0, %s31
    %s34 = sphi 0, %s32
    %s44 = sphi 0, %s46
    %s47 = sphi 0, %s44
    %s48 = sphi 0, %s47
    %s64 = sphi 0, %s48
    %s70 = sphi 0, %s72
    %s73 = sphi 0, %s70
    %s74 = sphi 0, %s73
    %s90 = sphi 0, %s74
    %s94 = sphi 0, %s94
    %s96 = sphi 0, %s94
    %s97 = sphi 0, %s96
    %s111 = sphi 0, %s97
    %s115 = sphi 0, %s115
    %s117 = sphi 0, %s115
    %s118 = sphi 0, %s117
    %s132 = sphi 0, %s118
    %s138 = sphi 0, %s140
    %s141 = sphi 0, %s138
    %s142 = sphi 0, %s141
    %s158 = sphi 0, %s142
    %s164 = sphi 0, %s166
    %s167 = sphi 0, %s164
    %s168 = sphi 0, %s167
    %s184 = sphi 0, %s168
    %s190 = sphi 0, %s192
    %s193 = sphi 0, %s190
    %s194 = sphi 0, %s193
    %s210 = sphi 0, %s194
    %s216 = sphi 0, %s218
    %s219 = sphi 0, %s216
    %s220 = sphi 0, %s219
    %s236 = sphi 0, %s220
    %s242 = sphi 0, %s244
    %s245 = sphi 0, %s242
    %s246 = sphi 0, %s245
    %s262 = sphi 0, %s246
    %s268 = sphi 0, %s270
    %s271 = sphi 0, %s268
    %s272 = sphi 0, %s271
    %s288 = sphi 0, %s272
    %s294 = sphi 0, %s296
    %s297 = sphi 0, %s294
    %s298 = sphi 0, %s297
    %s314 = sphi 0, %s298
    %s320 = sphi 0, %s322
    %s323 = sphi 0, %s320
    %s324 = sphi 0, %s323
    %s340 = sphi 0, %s324
    %s346 = sphi 0, %s348
    %s349 = sphi 0, %s346
    %s350 = sphi 0, %s349
    %s366 = sphi 0, %s350
    %s372 = sphi 0, %s374
    %s375 = sphi 0, %s372
    %s376 = sphi 0, %s375
    %s392 = sphi 0, %s376
    %s398 = sphi 0, %s400
    %s401 = sphi 0, %s398
    %s402 = sphi 0, %s401
    %s418 = sphi 0, %s402
    %s424 = sphi 0, %s426
    %s427 = sphi 0, %s424
    %s428 = sphi 0, %s427
    %s444 = sphi 0, %s428
    %s450 = sphi 0, %s452
    %s453 = sphi 0, %s450
    %s454 = sphi 0, %s453
    %s470 = sphi 0, %s454
  $region4: #{rrs_forward.2} parent=0 // loop_header_branch
    %25 = sbr.rel (%p23) target = $region8
  $region5: #{rrs_forward.2} parent=0 // loop_body
    %s27 = ssub.s32 %s22, 1
    %s28 = ssub.s32 %s22, 2
    %s35 = sadd.s32 1, %s30
    %p36 = scmp.ge.s32.totalorder %s35, 2
    %s37 = scalar_select %p36, 0, %s35
    %s38 = sadd.s32 1, %s29
    %s39 = scalar_select %p36, %s38, %s29
    %p40 = scmp.ge.s32.totalorder %s39, 2
    %s41 = scalar_select %p40, 0, %s39
    %s42 = ssub.s32 %s29, %s41
    %p43 = scmp.eq.s32.totalorder %s42, 0
    %s45 = sadd.s32 %s44, 1
    %s46 = scalar_select %p43, %s44, %s45
    %p49 = pneg %p43
    %p50 = scmp.eq.s32.totalorder %s22, 3
    %p51 = por %p49, %p50
    %p52 = scmp.ne.s32.totalorder %s44, %s47
    %p53 = scmp.eq.s32.totalorder %s22, 0
    %p54 = por %p52, %p53
    %p55 = scmp.ne.s32.totalorder %s44, %s47
    %p56 = scmp.eq.s32.totalorder %s27, 3
    %p57 = por %p55, %p56
    %p58 = scmp.ne.s32.totalorder %s47, %s48
    %p59 = scmp.eq.s32.totalorder %s27, 0
    %p60 = por %p58, %p59
    %p61 = scmp.ne.s32.totalorder %s47, %s48
    %p62 = scmp.eq.s32.totalorder %s28, 3
    %p63 = por %p61, %p62
    %p65 = scmp.ne.s32.totalorder %s48, %s64
    %p66 = scmp.eq.s32.totalorder %s28, 0
    %p67 = por %p65, %p66
    %s68 = ssub.s32 %s29, %s41
    %p69 = scmp.eq.s32.totalorder %s68, 0
    %s71 = sadd.s32 %s70, 1
    %s72 = scalar_select %p69, %s70, %s71
    %p75 = pneg %p69
    %p76 = scmp.eq.s32.totalorder %s22, 3
    %p77 = por %p75, %p76
    %p78 = scmp.ne.s32.totalorder %s70, %s73
    %p79 = scmp.eq.s32.totalorder %s22, 0
    %p80 = por %p78, %p79
    %p81 = scmp.ne.s32.totalorder %s70, %s73
    %p82 = scmp.eq.s32.totalorder %s27, 3
    %p83 = por %p81, %p82
    %p84 = scmp.ne.s32.totalorder %s73, %s74
    %p85 = scmp.eq.s32.totalorder %s27, 0
    %p86 = por %p84, %p85
    %p87 = scmp.ne.s32.totalorder %s73, %s74
    %p88 = scmp.eq.s32.totalorder %s28, 3
    %p89 = por %p87, %p88
    %p91 = scmp.ne.s32.totalorder %s74, %s90
    %p92 = scmp.eq.s32.totalorder %s28, 0
    %p93 = por %p91, %p92
    %s95 = sadd.s32 %s94, 1
    %p98 = scmp.eq.s32.totalorder %s22, 3
    %p99 = scmp.ne.s32.totalorder %s94, %s96
    %p100 = scmp.eq.s32.totalorder %s22, 0
    %p101 = por %p99, %p100
    %p102 = scmp.ne.s32.totalorder %s94, %s96
    %p103 = scmp.eq.s32.totalorder %s27, 3
    %p104 = por %p102, %p103
    %p105 = scmp.ne.s32.totalorder %s96, %s97
    %p106 = scmp.eq.s32.totalorder %s27, 0
    %p107 = por %p105, %p106
    %p108 = scmp.ne.s32.totalorder %s96, %s97
    %p109 = scmp.eq.s32.totalorder %s28, 3
    %p110 = por %p108, %p109
    %p112 = scmp.ne.s32.totalorder %s97, %s111
    %p113 = scmp.eq.s32.totalorder %s28, 0
    %p114 = por %p112, %p113
    %s116 = sadd.s32 %s115, 1
    %p119 = scmp.eq.s32.totalorder %s22, 3
    %p120 = scmp.ne.s32.totalorder %s115, %s117
    %p121 = scmp.eq.s32.totalorder %s22, 0
    %p122 = por %p120, %p121
    %p123 = scmp.ne.s32.totalorder %s115, %s117
    %p124 = scmp.eq.s32.totalorder %s27, 3
    %p125 = por %p123, %p124
    %p126 = scmp.ne.s32.totalorder %s117, %s118
    %p127 = scmp.eq.s32.totalorder %s27, 0
    %p128 = por %p126, %p127
    %p129 = scmp.ne.s32.totalorder %s117, %s118
    %p130 = scmp.eq.s32.totalorder %s28, 3
    %p131 = por %p129, %p130
    %p133 = scmp.ne.s32.totalorder %s118, %s132
    %p134 = scmp.eq.s32.totalorder %s28, 0
    %p135 = por %p133, %p134
    %s136 = ssub.s32 %s30, %s37
    %p137 = scmp.eq.s32.totalorder %s136, 0
    %s139 = sadd.s32 %s138, 1
    %s140 = scalar_select %p137, %s138, %s139
    %p143 = pneg %p137
    %p144 = scmp.eq.s32.totalorder %s22, 3
    %p145 = por %p143, %p144
    %p146 = scmp.ne.s32.totalorder %s138, %s141
    %p147 = scmp.eq.s32.totalorder %s22, 0
    %p148 = por %p146, %p147
    %p149 = scmp.ne.s32.totalorder %s138, %s141
    %p150 = scmp.eq.s32.totalorder %s27, 3
    %p151 = por %p149, %p150
    %p152 = scmp.ne.s32.totalorder %s141, %s142
    %p153 = scmp.eq.s32.totalorder %s27, 0
    %p154 = por %p152, %p153
    %p155 = scmp.ne.s32.totalorder %s141, %s142
    %p156 = scmp.eq.s32.totalorder %s28, 3
    %p157 = por %p155, %p156
    %p159 = scmp.ne.s32.totalorder %s142, %s158
    %p160 = scmp.eq.s32.totalorder %s28, 0
    %p161 = por %p159, %p160
    %s162 = ssub.s32 %s30, %s37
    %p163 = scmp.eq.s32.totalorder %s162, 0
    %s165 = sadd.s32 %s164, 1
    %s166 = scalar_select %p163, %s164, %s165
    %p169 = pneg %p163
    %p170 = scmp.eq.s32.totalorder %s22, 3
    %p171 = por %p169, %p170
    %p172 = scmp.ne.s32.totalorder %s164, %s167
    %p173 = scmp.eq.s32.totalorder %s22, 0
    %p174 = por %p172, %p173
    %p175 = scmp.ne.s32.totalorder %s164, %s167
    %p176 = scmp.eq.s32.totalorder %s27, 3
    %p177 = por %p175, %p176
    %p178 = scmp.ne.s32.totalorder %s167, %s168
    %p179 = scmp.eq.s32.totalorder %s27, 0
    %p180 = por %p178, %p179
    %p181 = scmp.ne.s32.totalorder %s167, %s168
    %p182 = scmp.eq.s32.totalorder %s28, 3
    %p183 = por %p181, %p182
    %p185 = scmp.ne.s32.totalorder %s168, %s184
    %p186 = scmp.eq.s32.totalorder %s28, 0
    %p187 = por %p185, %p186
    %s188 = ssub.s32 %s30, %s37
    %p189 = scmp.eq.s32.totalorder %s188, 0
    %s191 = sadd.s32 %s190, 1
    %s192 = scalar_select %p189, %s190, %s191
    %p195 = pneg %p189
    %p196 = scmp.eq.s32.totalorder %s22, 3
    %p197 = por %p195, %p196
    %p198 = scmp.ne.s32.totalorder %s190, %s193
    %p199 = scmp.eq.s32.totalorder %s22, 0
    %p200 = por %p198, %p199
    %p201 = scmp.ne.s32.totalorder %s190, %s193
    %p202 = scmp.eq.s32.totalorder %s27, 3
    %p203 = por %p201, %p202
    %p204 = scmp.ne.s32.totalorder %s193, %s194
    %p205 = scmp.eq.s32.totalorder %s27, 0
    %p206 = por %p204, %p205
    %p207 = scmp.ne.s32.totalorder %s193, %s194
    %p208 = scmp.eq.s32.totalorder %s28, 3
    %p209 = por %p207, %p208
    %p211 = scmp.ne.s32.totalorder %s194, %s210
    %p212 = scmp.eq.s32.totalorder %s28, 0
    %p213 = por %p211, %p212
    %s214 = ssub.s32 %s30, %s37
    %p215 = scmp.eq.s32.totalorder %s214, 0
    %s217 = sadd.s32 %s216, 1
    %s218 = scalar_select %p215, %s216, %s217
    %p221 = pneg %p215
    %p222 = scmp.eq.s32.totalorder %s22, 3
    %p223 = por %p221, %p222
    %p224 = scmp.ne.s32.totalorder %s216, %s219
    %p225 = scmp.eq.s32.totalorder %s22, 0
    %p226 = por %p224, %p225
    %p227 = scmp.ne.s32.totalorder %s216, %s219
    %p228 = scmp.eq.s32.totalorder %s27, 3
    %p229 = por %p227, %p228
    %p230 = scmp.ne.s32.totalorder %s219, %s220
    %p231 = scmp.eq.s32.totalorder %s27, 0
    %p232 = por %p230, %p231
    %p233 = scmp.ne.s32.totalorder %s219, %s220
    %p234 = scmp.eq.s32.totalorder %s28, 3
    %p235 = por %p233, %p234
    %p237 = scmp.ne.s32.totalorder %s220, %s236
    %p238 = scmp.eq.s32.totalorder %s28, 0
    %p239 = por %p237, %p238
    %s240 = ssub.s32 %s30, %s37
    %p241 = scmp.eq.s32.totalorder %s240, 0
    %s243 = sadd.s32 %s242, 1
    %s244 = scalar_select %p241, %s242, %s243
    %p247 = pneg %p241
    %p248 = scmp.eq.s32.totalorder %s22, 3
    %p249 = por %p247, %p248
    %p250 = scmp.ne.s32.totalorder %s242, %s245
    %p251 = scmp.eq.s32.totalorder %s22, 0
    %p252 = por %p250, %p251
    %p253 = scmp.ne.s32.totalorder %s242, %s245
    %p254 = scmp.eq.s32.totalorder %s27, 3
    %p255 = por %p253, %p254
    %p256 = scmp.ne.s32.totalorder %s245, %s246
    %p257 = scmp.eq.s32.totalorder %s27, 0
    %p258 = por %p256, %p257
    %p259 = scmp.ne.s32.totalorder %s245, %s246
    %p260 = scmp.eq.s32.totalorder %s28, 3
    %p261 = por %p259, %p260
    %p263 = scmp.ne.s32.totalorder %s246, %s262
    %p264 = scmp.eq.s32.totalorder %s28, 0
    %p265 = por %p263, %p264
    %s266 = ssub.s32 %s30, %s37
    %p267 = scmp.eq.s32.totalorder %s266, 0
    %s269 = sadd.s32 %s268, 1
    %s270 = scalar_select %p267, %s268, %s269
    %p273 = pneg %p267
    %p274 = scmp.eq.s32.totalorder %s22, 3
    %p275 = por %p273, %p274
    %p276 = scmp.ne.s32.totalorder %s268, %s271
    %p277 = scmp.eq.s32.totalorder %s22, 0
    %p278 = por %p276, %p277
    %p279 = scmp.ne.s32.totalorder %s268, %s271
    %p280 = scmp.eq.s32.totalorder %s27, 3
    %p281 = por %p279, %p280
    %p282 = scmp.ne.s32.totalorder %s271, %s272
    %p283 = scmp.eq.s32.totalorder %s27, 0
    %p284 = por %p282, %p283
    %p285 = scmp.ne.s32.totalorder %s271, %s272
    %p286 = scmp.eq.s32.totalorder %s28, 3
    %p287 = por %p285, %p286
    %p289 = scmp.ne.s32.totalorder %s272, %s288
    %p290 = scmp.eq.s32.totalorder %s28, 0
    %p291 = por %p289, %p290
    %s292 = ssub.s32 %s30, %s37
    %p293 = scmp.eq.s32.totalorder %s292, 0
    %s295 = sadd.s32 %s294, 1
    %s296 = scalar_select %p293, %s294, %s295
    %p299 = pneg %p293
    %p300 = scmp.eq.s32.totalorder %s22, 3
    %p301 = por %p299, %p300
    %p302 = scmp.ne.s32.totalorder %s294, %s297
    %p303 = scmp.eq.s32.totalorder %s22, 0
    %p304 = por %p302, %p303
    %p305 = scmp.ne.s32.totalorder %s294, %s297
    %p306 = scmp.eq.s32.totalorder %s27, 3
    %p307 = por %p305, %p306
    %p308 = scmp.ne.s32.totalorder %s297, %s298
    %p309 = scmp.eq.s32.totalorder %s27, 0
    %p310 = por %p308, %p309
    %p311 = scmp.ne.s32.totalorder %s297, %s298
    %p312 = scmp.eq.s32.totalorder %s28, 3
    %p313 = por %p311, %p312
    %p315 = scmp.ne.s32.totalorder %s298, %s314
    %p316 = scmp.eq.s32.totalorder %s28, 0
    %p317 = por %p315, %p316
    %s318 = ssub.s32 %s30, %s37
    %p319 = scmp.eq.s32.totalorder %s318, 0
    %s321 = sadd.s32 %s320, 1
    %s322 = scalar_select %p319, %s320, %s321
    %p325 = pneg %p319
    %p326 = scmp.eq.s32.totalorder %s22, 3
    %p327 = por %p325, %p326
    %p328 = scmp.ne.s32.totalorder %s320, %s323
    %p329 = scmp.eq.s32.totalorder %s22, 0
    %p330 = por %p328, %p329
    %p331 = scmp.ne.s32.totalorder %s320, %s323
    %p332 = scmp.eq.s32.totalorder %s27, 3
    %p333 = por %p331, %p332
    %p334 = scmp.ne.s32.totalorder %s323, %s324
    %p335 = scmp.eq.s32.totalorder %s27, 0
    %p336 = por %p334, %p335
    %p337 = scmp.ne.s32.totalorder %s323, %s324
    %p338 = scmp.eq.s32.totalorder %s28, 3
    %p339 = por %p337, %p338
    %p341 = scmp.ne.s32.totalorder %s324, %s340
    %p342 = scmp.eq.s32.totalorder %s28, 0
    %p343 = por %p341, %p342
    %s344 = ssub.s32 %s30, %s37
    %p345 = scmp.eq.s32.totalorder %s344, 0
    %s347 = sadd.s32 %s346, 1
    %s348 = scalar_select %p345, %s346, %s347
    %p351 = pneg %p345
    %p352 = scmp.eq.s32.totalorder %s22, 3
    %p353 = por %p351, %p352
    %p354 = scmp.ne.s32.totalorder %s346, %s349
    %p355 = scmp.eq.s32.totalorder %s22, 0
    %p356 = por %p354, %p355
    %p357 = scmp.ne.s32.totalorder %s346, %s349
    %p358 = scmp.eq.s32.totalorder %s27, 3
    %p359 = por %p357, %p358
    %p360 = scmp.ne.s32.totalorder %s349, %s350
    %p361 = scmp.eq.s32.totalorder %s27, 0
    %p362 = por %p360, %p361
    %p363 = scmp.ne.s32.totalorder %s349, %s350
    %p364 = scmp.eq.s32.totalorder %s28, 3
    %p365 = por %p363, %p364
    %p367 = scmp.ne.s32.totalorder %s350, %s366
    %p368 = scmp.eq.s32.totalorder %s28, 0
    %p369 = por %p367, %p368
    %s370 = ssub.s32 %s30, %s37
    %p371 = scmp.eq.s32.totalorder %s370, 0
    %s373 = sadd.s32 %s372, 1
    %s374 = scalar_select %p371, %s372, %s373
    %p377 = pneg %p371
    %p378 = scmp.eq.s32.totalorder %s22, 3
    %p379 = por %p377, %p378
    %p380 = scmp.ne.s32.totalorder %s372, %s375
    %p381 = scmp.eq.s32.totalorder %s22, 0
    %p382 = por %p380, %p381
    %p383 = scmp.ne.s32.totalorder %s372, %s375
    %p384 = scmp.eq.s32.totalorder %s27, 3
    %p385 = por %p383, %p384
    %p386 = scmp.ne.s32.totalorder %s375, %s376
    %p387 = scmp.eq.s32.totalorder %s27, 0
    %p388 = por %p386, %p387
    %p389 = scmp.ne.s32.totalorder %s375, %s376
    %p390 = scmp.eq.s32.totalorder %s28, 3
    %p391 = por %p389, %p390
    %p393 = scmp.ne.s32.totalorder %s376, %s392
    %p394 = scmp.eq.s32.totalorder %s28, 0
    %p395 = por %p393, %p394
    %s396 = ssub.s32 %s30, %s37
    %p397 = scmp.eq.s32.totalorder %s396, 0
    %s399 = sadd.s32 %s398, 1
    %s400 = scalar_select %p397, %s398, %s399
    %p403 = pneg %p397
    %p404 = scmp.eq.s32.totalorder %s22, 3
    %p405 = por %p403, %p404
    %p406 = scmp.ne.s32.totalorder %s398, %s401
    %p407 = scmp.eq.s32.totalorder %s22, 0
    %p408 = por %p406, %p407
    %p409 = scmp.ne.s32.totalorder %s398, %s401
    %p410 = scmp.eq.s32.totalorder %s27, 3
    %p411 = por %p409, %p410
    %p412 = scmp.ne.s32.totalorder %s401, %s402
    %p413 = scmp.eq.s32.totalorder %s27, 0
    %p414 = por %p412, %p413
    %p415 = scmp.ne.s32.totalorder %s401, %s402
    %p416 = scmp.eq.s32.totalorder %s28, 3
    %p417 = por %p415, %p416
    %p419 = scmp.ne.s32.totalorder %s402, %s418
    %p420 = scmp.eq.s32.totalorder %s28, 0
    %p421 = por %p419, %p420
    %s422 = ssub.s32 %s30, %s37
    %p423 = scmp.eq.s32.totalorder %s422, 0
    %s425 = sadd.s32 %s424, 1
    %s426 = scalar_select %p423, %s424, %s425
    %p429 = pneg %p423
    %p430 = scmp.eq.s32.totalorder %s22, 3
    %p431 = por %p429, %p430
    %p432 = scmp.ne.s32.totalorder %s424, %s427
    %p433 = scmp.eq.s32.totalorder %s22, 0
    %p434 = por %p432, %p433
    %p435 = scmp.ne.s32.totalorder %s424, %s427
    %p436 = scmp.eq.s32.totalorder %s27, 3
    %p437 = por %p435, %p436
    %p438 = scmp.ne.s32.totalorder %s427, %s428
    %p439 = scmp.eq.s32.totalorder %s27, 0
    %p440 = por %p438, %p439
    %p441 = scmp.ne.s32.totalorder %s427, %s428
    %p442 = scmp.eq.s32.totalorder %s28, 3
    %p443 = por %p441, %p442
    %p445 = scmp.ne.s32.totalorder %s428, %s444
    %p446 = scmp.eq.s32.totalorder %s28, 0
    %p447 = por %p445, %p446
    %s448 = ssub.s32 %s29, %s41
    %p449 = scmp.eq.s32.totalorder %s448, 0
    %s451 = sadd.s32 %s450, 1
    %s452 = scalar_select %p449, %s450, %s451
    %p455 = pneg %p449
    %p456 = scmp.eq.s32.totalorder %s22, 3
    %p457 = por %p455, %p456
    %p458 = scmp.ne.s32.totalorder %s450, %s453
    %p459 = scmp.eq.s32.totalorder %s22, 0
    %p460 = por %p458, %p459
    %p461 = scmp.ne.s32.totalorder %s450, %s453
    %p462 = scmp.eq.s32.totalorder %s27, 3
    %p463 = por %p461, %p462
    %p464 = scmp.ne.s32.totalorder %s453, %s454
    %p465 = scmp.eq.s32.totalorder %s27, 0
    %p466 = por %p464, %p465
    %p467 = scmp.ne.s32.totalorder %s453, %s454
    %p468 = scmp.eq.s32.totalorder %s28, 3
    %p469 = por %p467, %p468
    %p471 = scmp.ne.s32.totalorder %s454, %s470
    %p472 = scmp.eq.s32.totalorder %s28, 0
    %p473 = por %p471, %p472
    %p474 = scmp.le.s32.totalorder 1, %s22
    %p475 = scmp.lt.s32.totalorder %s22, 5
    %p476 = pnand %p474, %p475
    %p477 = pneg %p476
    // Predicated region
    $region9: #{rrs_forward.2} parent=5 // pred_check
      _
    $region10: #{rrs_forward.2} parent=5 // pred_check_branch
      %479 = sbr.rel (%p476) target = $region12
    $region11: #{rrs_forward.2} parent=5 // pred_region
      %s480 = ssub.s32 %s22, 1
      // Predicated region
      $region13: #{rrs_forward.2} parent=11 // pred_check
        %p481 = pneg %p107
      $region14: #{rrs_forward.2} parent=11 // pred_check_branch
        %483 = sbr.rel (%p481) target = $region16
      $region15: #{rrs_forward.2} parent=11 // pred_region
        _
      $region16: #{rrs_forward.2} parent=11 // pred_fallthru
        _
      // Predicated region
      $region17: #{rrs_forward.2} parent=11 // pred_check
        %p484 = pneg %p128
      $region18: #{rrs_forward.2} parent=11 // pred_check_branch
        %486 = sbr.rel (%p484) target = $region20
      $region19: #{rrs_forward.2} parent=11 // pred_region
        _
      $region20: #{rrs_forward.2} parent=11 // pred_fallthru
        _
    $region12: #{rrs_forward.2} parent=5 // pred_fallthru
      _
    %p487 = scmp.lt.s32.totalorder %s22, 4
    // Predicated region
    $region21: #{rrs_forward.2} parent=5 // pred_check
      %p488 = pneg %p487
    $region22: #{rrs_forward.2} parent=5 // pred_check_branch
      %490 = sbr.rel (%p488) target = $region24
    $region23: #{rrs_forward.2} parent=5 // pred_region
      // Predicated region
      $region25: #{rrs_forward.2} parent=23 // pred_check
        %p491 = pneg %p54
      $region26: #{rrs_forward.2} parent=23 // pred_check_branch
        %493 = sbr.rel (%p491) target = $region28
      $region27: #{rrs_forward.2} parent=23 // pred_region
        %p494 = scmp.lt.s32.totalorder %s29, 1
        %s495 = scalar_select %p494, %s29, 1
        %s496 = smul.addr %s495, 8
        %s497 = scalar_lea.vmem %s0, %s496
      $region28: #{rrs_forward.2} parent=23 // pred_fallthru
        _
      // Predicated region
      $region29: #{rrs_forward.2} parent=23 // pred_check
        %p498 = pneg %p80
      $region30: #{rrs_forward.2} parent=23 // pred_check_branch
        %500 = sbr.rel (%p498) target = $region32
      $region31: #{rrs_forward.2} parent=23 // pred_region
        %p501 = scmp.lt.s32.totalorder %s29, 1
        %s502 = scalar_select %p501, %s29, 1
        %s503 = scalar_lea.vmem %s1, %s502
      $region32: #{rrs_forward.2} parent=23 // pred_fallthru
        _
      // Predicated region
      $region33: #{rrs_forward.2} parent=23 // pred_check
        %p504 = pneg %p148
      $region34: #{rrs_forward.2} parent=23 // pred_check_branch
        %506 = sbr.rel (%p504) target = $region36
      $region35: #{rrs_forward.2} parent=23 // pred_region
        %p507 = scmp.lt.s32.totalorder %s30, 1
        %s508 = scalar_select %p507, %s30, 1
        %s509 = smul.addr %s508, 4
        %s510 = smul.addr %s509, 8
        %s511 = scalar_lea.vmem %s4, %s510
      $region36: #{rrs_forward.2} parent=23 // pred_fallthru
        _
      // Predicated region
      $region37: #{rrs_forward.2} parent=23 // pred_check
        %p512 = pneg %p174
      $region38: #{rrs_forward.2} parent=23 // pred_check_branch
        %514 = sbr.rel (%p512) target = $region40
      $region39: #{rrs_forward.2} parent=23 // pred_region
        %p515 = scmp.lt.s32.totalorder %s30, 1
        %s516 = scalar_select %p515, %s30, 1
        %s517 = scalar_lea.vmem %s5, %s516
      $region40: #{rrs_forward.2} parent=23 // pred_fallthru
        _
      // Predicated region
      $region41: #{rrs_forward.2} parent=23 // pred_check
        %p518 = pneg %p200
      $region42: #{rrs_forward.2} parent=23 // pred_check_branch
        %520 = sbr.rel (%p518) target = $region44
      $region43: #{rrs_forward.2} parent=23 // pred_region
        %p521 = scmp.lt.s32.totalorder %s30, 1
        %s522 = scalar_select %p521, %s30, 1
        %s523 = smul.addr %s522, 4
        %s524 = smul.addr %s523, 8
        %s525 = scalar_lea.vmem %s6, %s524
      $region44: #{rrs_forward.2} parent=23 // pred_fallthru
        _
      // Predicated region
      $region45: #{rrs_forward.2} parent=23 // pred_check
        %p526 = pneg %p226
      $region46: #{rrs_forward.2} parent=23 // pred_check_branch
        %528 = sbr.rel (%p526) target = $region48
      $region47: #{rrs_forward.2} parent=23 // pred_region
        %p529 = scmp.lt.s32.totalorder %s30, 1
        %s530 = scalar_select %p529, %s30, 1
        %s531 = scalar_lea.vmem %s7, %s530
      $region48: #{rrs_forward.2} parent=23 // pred_fallthru
        _
      // Predicated region
      $region49: #{rrs_forward.2} parent=23 // pred_check
        %p532 = pneg %p252
      $region50: #{rrs_forward.2} parent=23 // pred_check_branch
        %534 = sbr.rel (%p532) target = $region52
      $region51: #{rrs_forward.2} parent=23 // pred_region
        %p535 = scmp.lt.s32.totalorder %s30, 1
        %s536 = scalar_select %p535, %s30, 1
        %s537 = scalar_lea.vmem %s8, %s536
      $region52: #{rrs_forward.2} parent=23 // pred_fallthru
        _
      // Predicated region
      $region53: #{rrs_forward.2} parent=23 // pred_check
        %p538 = pneg %p278
      $region54: #{rrs_forward.2} parent=23 // pred_check_branch
        %540 = sbr.rel (%p538) target = $region56
      $region55: #{rrs_forward.2} parent=23 // pred_region
        %p541 = scmp.lt.s32.totalorder %s30, 1
        %s542 = scalar_select %p541, %s30, 1
        %s543 = scalar_lea.vmem %s9, %s542
      $region56: #{rrs_forward.2} parent=23 // pred_fallthru
        _
      // Predicated region
      $region57: #{rrs_forward.2} parent=23 // pred_check
        %p544 = pneg %p304
      $region58: #{rrs_forward.2} parent=23 // pred_check_branch
        %546 = sbr.rel (%p544) target = $region60
      $region59: #{rrs_forward.2} parent=23 // pred_region
        %p547 = scmp.lt.s32.totalorder %s30, 1
        %s548 = scalar_select %p547, %s30, 1
        %s549 = smul.addr %s548, 4
        %s550 = smul.addr %s549, 8
        %s551 = scalar_lea.vmem %s10, %s550
      $region60: #{rrs_forward.2} parent=23 // pred_fallthru
        _
      // Predicated region
      $region61: #{rrs_forward.2} parent=23 // pred_check
        %p552 = pneg %p330
      $region62: #{rrs_forward.2} parent=23 // pred_check_branch
        %554 = sbr.rel (%p552) target = $region64
      $region63: #{rrs_forward.2} parent=23 // pred_region
        %p555 = scmp.lt.s32.totalorder %s30, 1
        %s556 = scalar_select %p555, %s30, 1
        %s557 = scalar_lea.vmem %s11, %s556
      $region64: #{rrs_forward.2} parent=23 // pred_fallthru
        _
      // Predicated region
      $region65: #{rrs_forward.2} parent=23 // pred_check
        %p558 = pneg %p356
      $region66: #{rrs_forward.2} parent=23 // pred_check_branch
        %560 = sbr.rel (%p558) target = $region68
      $region67: #{rrs_forward.2} parent=23 // pred_region
        %p561 = scmp.lt.s32.totalorder %s30, 1
        %s562 = scalar_select %p561, %s30, 1
        %s563 = smul.addr %s562, 8
        %s564 = smul.addr %s563, 8
        %s565 = scalar_lea.vmem %s12, %s564
      $region68: #{rrs_forward.2} parent=23 // pred_fallthru
        _
      // Predicated region
      $region69: #{rrs_forward.2} parent=23 // pred_check
        %p566 = pneg %p382
      $region70: #{rrs_forward.2} parent=23 // pred_check_branch
        %568 = sbr.rel (%p566) target = $region72
      $region71: #{rrs_forward.2} parent=23 // pred_region
        %p569 = scmp.lt.s32.totalorder %s30, 1
        %s570 = scalar_select %p569, %s30, 1
        %s571 = scalar_lea.vmem %s13, %s570
      $region72: #{rrs_forward.2} parent=23 // pred_fallthru
        _
      // Predicated region
      $region73: #{rrs_forward.2} parent=23 // pred_check
        %p572 = pneg %p408
      $region74: #{rrs_forward.2} parent=23 // pred_check_branch
        %574 = sbr.rel (%p572) target = $region76
      $region75: #{rrs_forward.2} parent=23 // pred_region
        %p575 = scmp.lt.s32.totalorder %s30, 1
        %s576 = scalar_select %p575, %s30, 1
        %s577 = scalar_lea.vmem %s14, %s576
      $region76: #{rrs_forward.2} parent=23 // pred_fallthru
        _
      // Predicated region
      $region77: #{rrs_forward.2} parent=23 // pred_check
        %p578 = pneg %p434
      $region78: #{rrs_forward.2} parent=23 // pred_check_branch
        %580 = sbr.rel (%p578) target = $region80
      $region79: #{rrs_forward.2} parent=23 // pred_region
        %p581 = scmp.lt.s32.totalorder %s30, 1
        %s582 = scalar_select %p581, %s30, 1
        %s583 = scalar_lea.vmem %s15, %s582
      $region80: #{rrs_forward.2} parent=23 // pred_fallthru
        _
    $region24: #{rrs_forward.2} parent=5 // pred_fallthru
      _
    %p584 = scmp.le.s32.totalorder 1, %s22
    %p585 = scmp.lt.s32.totalorder %s22, 5
    %p586 = pnand %p584, %p585
    %p587 = pneg %p586
    // Predicated region
    $region81: #{rrs_forward.2} parent=5 // pred_check
      _
    $region82: #{rrs_forward.2} parent=5 // pred_check_branch
      %589 = sbr.rel (%p586) target = $region84
    $region83: #{rrs_forward.2} parent=5 // pred_region
      %s590 = ssub.s32 %s22, 1
      %p591 = scmp.lt.s32.totalorder %s31, 1
      %s592 = scalar_select %p591, %s31, 1
      %s593 = smul.addr %s592, 8
      %s594 = scalar_lea.vmem %s0, %s593
      %p595 = pneg %p60
      %p596 = pneg %p57
      %p597 = scmp.lt.s32.totalorder %s31, 1
      %s598 = scalar_select %p597, %s31, 1
      %s599 = scalar_lea.vmem %s1, %s598
      %p600 = pneg %p86
      %p601 = pneg %p83
      %p602 = pneg %p107
      %p603 = pneg %p104
      %p604 = pneg %p128
      %p605 = pneg %p125
      %p606 = scmp.lt.s32.totalorder %s32, 1
      %s607 = scalar_select %p606, %s32, 1
      %s608 = smul.addr %s607, 4
      %s609 = smul.addr %s608, 8
      %s610 = scalar_lea.vmem %s4, %s609
      %p611 = pneg %p154
      %p612 = pneg %p151
      %p613 = scmp.lt.s32.totalorder %s32, 1
      %s614 = scalar_select %p613, %s32, 1
      %s615 = scalar_lea.vmem %s5, %s614
      %p616 = pneg %p180
      %p617 = pneg %p177
      %p618 = scmp.lt.s32.totalorder %s32, 1
      %s619 = scalar_select %p618, %s32, 1
      %s620 = smul.addr %s619, 4
      %s621 = smul.addr %s620, 8
      %s622 = scalar_lea.vmem %s6, %s621
      %p623 = pneg %p206
      %p624 = pneg %p203
      %p625 = scmp.lt.s32.totalorder %s32, 1
      %s626 = scalar_select %p625, %s32, 1
      %s627 = scalar_lea.vmem %s7, %s626
      %p628 = pneg %p232
      %p629 = pneg %p229
      %p630 = scmp.lt.s32.totalorder %s32, 1
      %s631 = scalar_select %p630, %s32, 1
      %s632 = scalar_lea.vmem %s8, %s631
      %p633 = pneg %p258
      %p634 = pneg %p255
      %p635 = scmp.lt.s32.totalorder %s32, 1
      %s636 = scalar_select %p635, %s32, 1
      %s637 = scalar_lea.vmem %s9, %s636
      %p638 = pneg %p284
      %p639 = pneg %p281
      %p640 = scmp.lt.s32.totalorder %s32, 1
      %s641 = scalar_select %p640, %s32, 1
      %s642 = smul.addr %s641, 4
      %s643 = smul.addr %s642, 8
      %s644 = scalar_lea.vmem %s10, %s643
      %p645 = pneg %p310
      %p646 = pneg %p307
      %p647 = scmp.lt.s32.totalorder %s32, 1
      %s648 = scalar_select %p647, %s32, 1
      %s649 = scalar_lea.vmem %s11, %s648
      %p650 = pneg %p336
      %p651 = pneg %p333
      %p652 = scmp.lt.s32.totalorder %s32, 1
      %s653 = scalar_select %p652, %s32, 1
      %s654 = smul.addr %s653, 8
      %s655 = smul.addr %s654, 8
      %s656 = scalar_lea.vmem %s12, %s655
      %p657 = pneg %p362
      %p658 = pneg %p359
      %p659 = scmp.lt.s32.totalorder %s32, 1
      %s660 = scalar_select %p659, %s32, 1
      %s661 = scalar_lea.vmem %s13, %s660
      %p662 = pneg %p388
      %p663 = pneg %p385
      %p664 = scmp.lt.s32.totalorder %s32, 1
      %s665 = scalar_select %p664, %s32, 1
      %s666 = scalar_lea.vmem %s14, %s665
      %p667 = pneg %p414
      %p668 = pneg %p411
      %p669 = scmp.lt.s32.totalorder %s32, 1
      %s670 = scalar_select %p669, %s32, 1
      %s671 = scalar_lea.vmem %s15, %s670
      %p672 = pneg %p440
      %p673 = pneg %p437
      %p674 = pneg %p466
      %p675 = pneg %p463
      %p676 = scmp.lt.s32.totalorder %s31, 1
      %s677 = scalar_select %p676, %s31, 1
      %s678 = smul.addr %s677, 8
      %s679 = scalar_lea.vmem %s16, %s678
      %p680 = scmp.lt.s32.totalorder %s31, 1
      %s681 = scalar_select %p680, %s31, 1
      %s682 = smul.addr %s681, 8
      %s683 = scalar_lea.vmem %s0, %s682
      %p684 = scmp.lt.s32.totalorder %s31, 1
      %s685 = scalar_select %p684, %s31, 1
      %s686 = scalar_lea.vmem %s1, %s685
      %p687 = scmp.lt.s32.totalorder %s32, 1
      %s688 = scalar_select %p687, %s32, 1
      %s689 = smul.addr %s688, 4
      %s690 = smul.addr %s689, 8
      %s691 = scalar_lea.vmem %s4, %s690
      %p692 = scmp.lt.s32.totalorder %s32, 1
      %s693 = scalar_select %p692, %s32, 1
      %s694 = scalar_lea.vmem %s5, %s693
      %p695 = scmp.lt.s32.totalorder %s32, 1
      %s696 = scalar_select %p695, %s32, 1
      %s697 = smul.addr %s696, 4
      %s698 = smul.addr %s697, 8
      %s699 = scalar_lea.vmem %s6, %s698
      %p700 = scmp.lt.s32.totalorder %s32, 1
      %s701 = scalar_select %p700, %s32, 1
      %s702 = scalar_lea.vmem %s7, %s701
      %p703 = scmp.lt.s32.totalorder %s32, 1
      %s704 = scalar_select %p703, %s32, 1
      %s705 = scalar_lea.vmem %s8, %s704
      %p706 = scmp.lt.s32.totalorder %s32, 1
      %s707 = scalar_select %p706, %s32, 1
      %s708 = scalar_lea.vmem %s9, %s707
      %p709 = scmp.lt.s32.totalorder %s32, 1
      %s710 = scalar_select %p709, %s32, 1
      %s711 = smul.addr %s710, 4
      %s712 = smul.addr %s711, 8
      %s713 = scalar_lea.vmem %s10, %s712
      %p714 = scmp.lt.s32.totalorder %s32, 1
      %s715 = scalar_select %p714, %s32, 1
      %s716 = scalar_lea.vmem %s11, %s715
      %p717 = scmp.lt.s32.totalorder %s32, 1
      %s718 = scalar_select %p717, %s32, 1
      %s719 = smul.addr %s718, 8
      %s720 = smul.addr %s719, 8
      %s721 = scalar_lea.vmem %s12, %s720
      %p722 = scmp.lt.s32.totalorder %s32, 1
      %s723 = scalar_select %p722, %s32, 1
      %s724 = scalar_lea.vmem %s13, %s723
      %p725 = scmp.lt.s32.totalorder %s32, 1
      %s726 = scalar_select %p725, %s32, 1
      %s727 = scalar_lea.vmem %s14, %s726
      %p728 = scmp.lt.s32.totalorder %s32, 1
      %s729 = scalar_select %p728, %s32, 1
      %s730 = scalar_lea.vmem %s15, %s729
      %p731 = scmp.lt.s32.totalorder %s31, 1
      %s732 = scalar_select %p731, %s31, 1
      %s733 = smul.addr %s732, 8
      %s734 = scalar_lea.vmem %s16, %s733
      %p736 = scmp.eq.s32.totalorder %s32, 0
      // Predicated region
      $region85: #{rrs_forward.2} parent=83 // pred_check
        %p737 = pneg %p736
      $region86: #{rrs_forward.2} parent=83 // pred_check_branch
        %739 = sbr.rel (%p737) target = $region88
      $region87: #{rrs_forward.2} parent=83 // pred_region
        %v740 = vld [vmem:[%s683] sm:$0xff]
        %v741 = vld [vmem:[%s2] sm:$0x1]
        %v742 = vld [vmem:[%s3] sm:$0x1]
        %vm743 = vcmask 261120
        %v744 = vsel %vm743, %v740, 0.0
        %745 = vadd.xlane.f32.xlu0 %v744
        %v746 = vpop.xlane.xlu0 %745
        %v747 = vrcp.pop 32.0
        %v748 = vmul.f32 %v746, %v747
        %v749 = vsub.f32 %v740, %v748
        %v750 = vmul.f32 %v749, %v749
        %v751 = vsel %vm743, %v750, 0.0
        %752 = vadd.xlane.f32.xlu0 %v751
        %v753 = vpop.xlane.xlu0 %752
        %v754 = vmul.f32 %v753, %v747
        %v755 = vadd.f32 %v754, 1e-12
        %v756 = vrsqrt.pop %v755
        %v757 = vmul.f32 %v749, %v756
        %v759 = vlaneseq
        %v760 = vshrl.u32 %v759, 7
        %v761 = vsub.s32 0, %v760
        %v762 = vrot.slane %v741, %v761
        %v764 = vmul.f32 %v757, %v762
        %v766 = vlaneseq
        %v767 = vshrl.u32 %v766, 7
        %v768 = vsub.s32 0, %v767
        %v769 = vrot.slane %v742, %v768
        %v771 = vadd.f32 %v764, %v769
        %772 = vst.msk [vmem:[#allocation2] sm:$0xff] %vm743, %v771
      $region88: #{rrs_forward.2} parent=83 // pred_fallthru
        _
      %v773 = vld [vmem:[#allocation2] sm:$0xff]
      %v774 = vld [vmem:[%s686] sm:$0x1]
      %v775 = vld [vmem:[%s691] sm:$0xff]
      %v776 = vld [vmem:[%s691 + $0x8] sm:$0xff]
      %v777 = vld [vmem:[%s691 + $0x10] sm:$0xff]
      %v778 = vld [vmem:[%s691 + $0x18] sm:$0xff]
      %v779 = vpack.c.bf16 %v773, %v773
      %v780 = vpack.c.bf16 %v776, %v775
      %v781 = vpack.c.bf16 %v778, %v777
      %v782 = vld [vmem:[%s694] sm:$0x1]
      %v784 = vlaneseq
      %v785 = vshrl.u32 %v784, 7
      %v786 = vsub.s32 0, %v785
      %v787 = vrot.slane %v782, %v786
      %vm789 = vcmask 261120
      %v791 = vsel %vm789, %v779, 0
      %793 = vmatprep.subr.bf16.mxu0 0
      %794 = vmatpush1.bf16.msra.mxu0 %v780
      %795 = vmatprep.subr.bf16.mxu0 0
      %796 = vmatpush1.bf16.msra.mxu0 %v781
      %797 = vmatprep.subr.bf16.mxu0 0
      %798 = vmatpush1.bf16.msra.mxu0 0
      %799 = vmatprep.subr.bf16.mxu0 0
      %800 = vmatpush1.bf16.msra.mxu0 0
      %801 = vmatprep.subr.bf16.mxu0 0
      %802 = vmatpush1.bf16.msra.mxu0 0
      %803 = vmatprep.subr.bf16.mxu0 0
      %804 = vmatpush1.bf16.msra.mxu0 0
      %805 = vmatprep.subr.bf16.mxu0 0
      %806 = vmatpush1.bf16.msra.mxu0 0
      %807 = vmatprep.subr.bf16.mxu0 0
      %808 = vmatpush1.bf16.msra.mxu0 0
      %809 = vmatprep.subr.bf16.mxu0 0
      %810 = vmatpush1.bf16.msra.mxu0 0
      %811 = vmatprep.subr.bf16.mxu0 0
      %812 = vmatpush1.bf16.msra.mxu0 0
      %813 = vmatprep.subr.bf16.mxu0 0
      %814 = vmatpush1.bf16.msra.mxu0 0
      %815 = vmatprep.subr.bf16.mxu0 0
      %816 = vmatpush1.bf16.msra.mxu0 0
      %817 = vmatprep.subr.bf16.mxu0 0
      %818 = vmatpush1.bf16.msra.mxu0 0
      %819 = vmatprep.subr.bf16.mxu0 0
      %820 = vmatpush1.bf16.msra.mxu0 0
      %821 = vmatprep.subr.bf16.mxu0 0
      %822 = vmatpush1.bf16.msra.mxu0 0
      %823 = vmatprep.subr.bf16.mxu0 0
      %824 = vmatpush1.bf16.msra.mxu0 0
      %825 = vmatprep.mubr.bf16.mxu0 0
      %826 = vmatmul.mubr.bf16.gmra.mrb[0].mxu0 %v791
      %v827 = vpop.f32.mrb[0].mxu0
      %v828 = vadd.f32 %v787, %v827
      %v829 = vpop.f32.mrb[0].mxu0
      %v830 = vpop.f32.mrb[0].mxu0
      %v831 = vpop.f32.mrb[0].mxu0
      %832 = vdwg.mxu0
      %834 = vrot.lane.b32.xlu0 %v828, 120
      %v835 = vpop.permute.xlu0 %834
      %837 = vrot.lane.b32.xlu0 %v828, 112
      %v838 = vpop.permute.xlu0 %837
      %840 = vrot.lane.b32.xlu0 %v828, 104
      %v841 = vpop.permute.xlu0 %840
      %v843 = vpack.c.bf16 %v828, %v828
      %v844 = vpack.c.bf16 %v835, %v835
      %v845 = vpack.c.bf16 %v838, %v838
      %v846 = vpack.c.bf16 %v841, %v841
      %848 = vrot.lane.b32.xlu0 %v843, 96
      %v849 = vpop.permute.xlu0 %848
      %vm850 = vcmask 64512
      %v852 = vsel %vm850, %v843, 0
      %v855 = vsel %vm850, %v849, 0
      %857 = vmatprep.subr.bf16.mxu0 0
      %858 = vmatpush1.bf16.xpose.msra.mxu0 %v855
      %859 = vmatprep.subr.bf16.mxu0 0
      %860 = vmatpush1.bf16.xpose.msra.mxu0 0
      %861 = vmatprep.subr.bf16.mxu0 0
      %862 = vmatpush1.bf16.xpose.msra.mxu0 0
      %863 = vmatprep.subr.bf16.mxu0 0
      %864 = vmatpush1.bf16.xpose.msra.mxu0 0
      %865 = vmatprep.subr.bf16.mxu0 0
      %866 = vmatpush1.bf16.xpose.msra.mxu0 0
      %867 = vmatprep.subr.bf16.mxu0 0
      %868 = vmatpush1.bf16.xpose.msra.mxu0 0
      %869 = vmatprep.subr.bf16.mxu0 0
      %870 = vmatpush1.bf16.xpose.msra.mxu0 0
      %871 = vmatprep.subr.bf16.mxu0 0
      %872 = vmatpush1.bf16.xpose.msra.mxu0 0
      %873 = vmatprep.subr.bf16.mxu0 0
      %874 = vmatpush1.bf16.xpose.msra.mxu0 0
      %875 = vmatprep.subr.bf16.mxu0 0
      %876 = vmatpush1.bf16.xpose.msra.mxu0 0
      %877 = vmatprep.subr.bf16.mxu0 0
      %878 = vmatpush1.bf16.xpose.msra.mxu0 0
      %879 = vmatprep.subr.bf16.mxu0 0
      %880 = vmatpush1.bf16.xpose.msra.mxu0 0
      %881 = vmatprep.subr.bf16.mxu0 0
      %882 = vmatpush1.bf16.xpose.msra.mxu0 0
      %883 = vmatprep.subr.bf16.mxu0 0
      %884 = vmatpush1.bf16.xpose.msra.mxu0 0
      %885 = vmatprep.subr.bf16.mxu0 0
      %886 = vmatpush1.bf16.xpose.msra.mxu0 0
      %887 = vmatprep.subr.bf16.mxu0 0
      %888 = vmatpush1.bf16.xpose.msra.mxu0 0
      %889 = vmatprep.mubr.bf16.mxu0 0
      %890 = vmatmul.mubr.bf16.gmra.mrb[0].mxu0 %v852
      %v891 = vpop.f32.mrb[0].mxu0
      %v892 = vadd.f32 0.0, %v891
      %v893 = vpop.f32.mrb[0].mxu0
      %v894 = vpop.f32.mrb[0].mxu0
      %v895 = vpop.f32.mrb[0].mxu0
      %896 = vdwg.mxu0
      %898 = vrot.lane.b32.xlu0 %v844, 96
      %v899 = vpop.permute.xlu0 %898
      %v901 = vsel %vm850, %v844, 0
      %v904 = vsel %vm850, %v899, 0
      %906 = vmatprep.subr.bf16.mxu0 0
      %907 = vmatpush1.bf16.xpose.msra.mxu0 %v904
      %908 = vmatprep.subr.bf16.mxu0 0
      %909 = vmatpush1.bf16.xpose.msra.mxu0 0
      %910 = vmatprep.subr.bf16.mxu0 0
      %911 = vmatpush1.bf16.xpose.msra.mxu0 0
      %912 = vmatprep.subr.bf16.mxu0 0
      %913 = vmatpush1.bf16.xpose.msra.mxu0 0
      %914 = vmatprep.subr.bf16.mxu0 0
      %915 = vmatpush1.bf16.xpose.msra.mxu0 0
      %916 = vmatprep.subr.bf16.mxu0 0
      %917 = vmatpush1.bf16.xpose.msra.mxu0 0
      %918 = vmatprep.subr.bf16.mxu0 0
      %919 = vmatpush1.bf16.xpose.msra.mxu0 0
      %920 = vmatprep.subr.bf16.mxu0 0
      %921 = vmatpush1.bf16.xpose.msra.mxu0 0
      %922 = vmatprep.subr.bf16.mxu0 0
      %923 = vmatpush1.bf16.xpose.msra.mxu0 0
      %924 = vmatprep.subr.bf16.mxu0 0
      %925 = vmatpush1.bf16.xpose.msra.mxu0 0
      %926 = vmatprep.subr.bf16.mxu0 0
      %927 = vmatpush1.bf16.xpose.msra.mxu0 0
      %928 = vmatprep.subr.bf16.mxu0 0
      %929 = vmatpush1.bf16.xpose.msra.mxu0 0
      %930 = vmatprep.subr.bf16.mxu0 0
      %931 = vmatpush1.bf16.xpose.msra.mxu0 0
      %932 = vmatprep.subr.bf16.mxu0 0
      %933 = vmatpush1.bf16.xpose.msra.mxu0 0
      %934 = vmatprep.subr.bf16.mxu0 0
      %935 = vmatpush1.bf16.xpose.msra.mxu0 0
      %936 = vmatprep.subr.bf16.mxu0 0
      %937 = vmatpush1.bf16.xpose.msra.mxu0 0
      %938 = vmatprep.mubr.bf16.mxu0 0
      %939 = vmatmul.mubr.bf16.gmra.mrb[0].mxu0 %v901
      %v940 = vpop.f32.mrb[0].mxu0
      %v941 = vadd.f32 0.0, %v940
      %v942 = vpop.f32.mrb[0].mxu0
      %v943 = vpop.f32.mrb[0].mxu0
      %v944 = vpop.f32.mrb[0].mxu0
      %945 = vdwg.mxu0
      %947 = vrot.lane.b32.xlu0 %v845, 96
      %v948 = vpop.permute.xlu0 %947
      %v950 = vsel %vm850, %v845, 0
      %v953 = vsel %vm850, %v948, 0
      %955 = vmatprep.subr.bf16.mxu0 0
      %956 = vmatpush1.bf16.xpose.msra.mxu0 %v953
      %957 = vmatprep.subr.bf16.mxu0 0
      %958 = vmatpush1.bf16.xpose.msra.mxu0 0
      %959 = vmatprep.subr.bf16.mxu0 0
      %960 = vmatpush1.bf16.xpose.msra.mxu0 0
      %961 = vmatprep.subr.bf16.mxu0 0
      %962 = vmatpush1.bf16.xpose.msra.mxu0 0
      %963 = vmatprep.subr.bf16.mxu0 0
      %964 = vmatpush1.bf16.xpose.msra.mxu0 0
      %965 = vmatprep.subr.bf16.mxu0 0
      %966 = vmatpush1.bf16.xpose.msra.mxu0 0
      %967 = vmatprep.subr.bf16.mxu0 0
      %968 = vmatpush1.bf16.xpose.msra.mxu0 0
      %969 = vmatprep.subr.bf16.mxu0 0
      %970 = vmatpush1.bf16.xpose.msra.mxu0 0
      %971 = vmatprep.subr.bf16.mxu0 0
      %972 = vmatpush1.bf16.xpose.msra.mxu0 0
      %973 = vmatprep.subr.bf16.mxu0 0
      %974 = vmatpush1.bf16.xpose.msra.mxu0 0
      %975 = vmatprep.subr.bf16.mxu0 0
      %976 = vmatpush1.bf16.xpose.msra.mxu0 0
      %977 = vmatprep.subr.bf16.mxu0 0
      %978 = vmatpush1.bf16.xpose.msra.mxu0 0
      %979 = vmatprep.subr.bf16.mxu0 0
      %980 = vmatpush1.bf16.xpose.msra.mxu0 0
      %981 = vmatprep.subr.bf16.mxu0 0
      %982 = vmatpush1.bf16.xpose.msra.mxu0 0
      %983 = vmatprep.subr.bf16.mxu0 0
      %984 = vmatpush1.bf16.xpose.msra.mxu0 0
      %985 = vmatprep.subr.bf16.mxu0 0
      %986 = vmatpush1.bf16.xpose.msra.mxu0 0
      %987 = vmatprep.mubr.bf16.mxu0 0
      %988 = vmatmul.mubr.bf16.gmra.mrb[0].mxu0 %v950
      %v989 = vpop.f32.mrb[0].mxu0
      %v990 = vadd.f32 0.0, %v989
      %v991 = vpop.f32.mrb[0].mxu0
      %v992 = vpop.f32.mrb[0].mxu0
      %v993 = vpop.f32.mrb[0].mxu0
      %994 = vdwg.mxu0
      %996 = vrot.lane.b32.xlu0 %v846, 96
      %v997 = vpop.permute.xlu0 %996
      %v999 = vsel %vm850, %v846, 0
      %v1002 = vsel %vm850, %v997, 0
      %1004 = vmatprep.subr.bf16.mxu0 0
      %1005 = vmatpush1.bf16.xpose.msra.mxu0 %v1002
      %1006 = vmatprep.subr.bf16.mxu0 0
      %1007 = vmatpush1.bf16.xpose.msra.mxu0 0
      %1008 = vmatprep.subr.bf16.mxu0 0
      %1009 = vmatpush1.bf16.xpose.msra.mxu0 0
      %1010 = vmatprep.subr.bf16.mxu0 0
      %1011 = vmatpush1.bf16.xpose.msra.mxu0 0
      %1012 = vmatprep.subr.bf16.mxu0 0
      %1013 = vmatpush1.bf16.xpose.msra.mxu0 0
      %1014 = vmatprep.subr.bf16.mxu0 0
      %1015 = vmatpush1.bf16.xpose.msra.mxu0 0
      %1016 = vmatprep.subr.bf16.mxu0 0
      %1017 = vmatpush1.bf16.xpose.msra.mxu0 0
      %1018 = vmatprep.subr.bf16.mxu0 0
      %1019 = vmatpush1.bf16.xpose.msra.mxu0 0
      %1020 = vmatprep.subr.bf16.mxu0 0
      %1021 = vmatpush1.bf16.xpose.msra.mxu0 0
      %1022 = vmatprep.subr.bf16.mxu0 0
      %1023 = vmatpush1.bf16.xpose.msra.mxu0 0
      %1024 = vmatprep.subr.bf16.mxu0 0
      %1025 = vmatpush1.bf16.xpose.msra.mxu0 0
      %1026 = vmatprep.subr.bf16.mxu0 0
      %1027 = vmatpush1.bf16.xpose.msra.mxu0 0
      %1028 = vmatprep.subr.bf16.mxu0 0
      %1029 = vmatpush1.bf16.xpose.msra.mxu0 0
      %1030 = vmatprep.subr.bf16.mxu0 0
      %1031 = vmatpush1.bf16.xpose.msra.mxu0 0
      %1032 = vmatprep.subr.bf16.mxu0 0
      %1033 = vmatpush1.bf16.xpose.msra.mxu0 0
      %1034 = vmatprep.subr.bf16.mxu0 0
      %1035 = vmatpush1.bf16.xpose.msra.mxu0 0
      %1036 = vmatprep.mubr.bf16.mxu0 0
      %1037 = vmatmul.mubr.bf16.gmra.mrb[0].mxu0 %v999
      %v1038 = vpop.f32.mrb[0].mxu0
      %v1039 = vadd.f32 0.0, %v1038
      %v1040 = vpop.f32.mrb[0].mxu0
      %v1041 = vpop.f32.mrb[0].mxu0
      %v1042 = vpop.f32.mrb[0].mxu0
      %1043 = vdwg.mxu0
      %v1044 = vmul.f32 %v892, 0.35355338
      %v1045 = vmul.f32 %v941, 0.35355338
      %v1046 = vmul.f32 %v990, 0.35355338
      %v1047 = vmul.f32 %v1039, 0.35355338
      %v1049 = vlaneseq
      %v1050 = vshrl.u32 %v1049, 7
      %v1051 = vsub.s32 0, %v1050
      %v1052 = vrot.slane %v774, %v1051
      %v1054 = vadd.f32 %v1044, %v1052
      %v1055 = vadd.f32 %v1045, %v1052
      %v1056 = vadd.f32 %v1046, %v1052
      %v1057 = vadd.f32 %v1047, %v1052
      %v1058 = vsel %vm850, %v1054, -inf
      %1059 = vmax.xlane.f32.xlu0 %v1058
      %v1060 = vpop.xlane.xlu0 %1059
      %v1061 = vsel %vm850, %v1055, -inf
      %1062 = vmax.xlane.f32.xlu0 %v1061
      %v1063 = vpop.xlane.xlu0 %1062
      %v1064 = vsel %vm850, %v1056, -inf
      %1065 = vmax.xlane.f32.xlu0 %v1064
      %v1066 = vpop.xlane.xlu0 %1065
      %v1067 = vsel %vm850, %v1057, -inf
      %1068 = vmax.xlane.f32.xlu0 %v1067
      %v1069 = vpop.xlane.xlu0 %1068
      %v1070 = vsub.f32 %v1054, %v1060
      %v1071 = vsub.f32 %v1055, %v1063
      %v1072 = vsub.f32 %v1056, %v1066
      %v1073 = vsub.f32 %v1057, %v1069
      %v1074 = vmul.f32 %v1070, 1.442695
      %v1075 = vpow.pop %v1074
      %v1076 = vmul.f32 %v1071, 1.442695
      %v1077 = vpow.pop %v1076
      %v1078 = vmul.f32 %v1072, 1.442695
      %v1079 = vpow.pop %v1078
      %v1080 = vmul.f32 %v1073, 1.442695
      %v1081 = vpow.pop %v1080
      %v1082 = vsel %vm850, %v1075, 0.0
      %1083 = vadd.xlane.f32.xlu0 %v1082
      %v1084 = vpop.xlane.xlu0 %1083
      %v1085 = vsel %vm850, %v1077, 0.0
      %1086 = vadd.xlane.f32.xlu0 %v1085
      %v1087 = vpop.xlane.xlu0 %1086
      %v1088 = vsel %vm850, %v1079, 0.0
      %1089 = vadd.xlane.f32.xlu0 %v1088
      %v1090 = vpop.xlane.xlu0 %1089
      %v1091 = vsel %vm850, %v1081, 0.0
      %1092 = vadd.xlane.f32.xlu0 %v1091
      %v1093 = vpop.xlane.xlu0 %1092
      %v1094 = vrcp.pop %v1084
      %v1095 = vrcp.pop %v1087
      %v1096 = vrcp.pop %v1090
      %v1097 = vrcp.pop %v1093
      %v1098 = vmul.f32 %v1075, %v1094
      %v1099 = vmul.f32 %v1077, %v1095
      %v1100 = vmul.f32 %v1079, %v1096
      %v1101 = vmul.f32 %v1081, %v1097
      %v1102 = vpack.c.bf16 %v1098, %v1098
      %v1103 = vpack.c.bf16 %v1099, %v1099
      %v1104 = vpack.c.bf16 %v1100, %v1100
      %v1105 = vpack.c.bf16 %v1101, %v1101
      %1106 = vrot.lane.b32.xlu0 %v843, 64
      %v1107 = vpop.permute.xlu0 %1106
      %v1109 = vsel %vm850, %v1102, 0
      %vm1111 = vcmask 1043456
      %v1113 = vsel %vm1111, %v1107, 0
      %1115 = vmatprep.subr.bf16.mxu0 0
      %1116 = vmatpush1.bf16.msra.mxu0 %v1113
      %1117 = vmatprep.subr.bf16.mxu0 0
      %1118 = vmatpush1.bf16.msra.mxu0 0
      %1119 = vmatprep.subr.bf16.mxu0 0
      %1120 = vmatpush1.bf16.msra.mxu0 0
      %1121 = vmatprep.subr.bf16.mxu0 0
      %1122 = vmatpush1.bf16.msra.mxu0 0
      %1123 = vmatprep.subr.bf16.mxu0 0
      %1124 = vmatpush1.bf16.msra.mxu0 0
      %1125 = vmatprep.subr.bf16.mxu0 0
      %1126 = vmatpush1.bf16.msra.mxu0 0
      %1127 = vmatprep.subr.bf16.mxu0 0
      %1128 = vmatpush1.bf16.msra.mxu0 0
      %1129 = vmatprep.subr.bf16.mxu0 0
      %1130 = vmatpush1.bf16.msra.mxu0 0
      %1131 = vmatprep.subr.bf16.mxu0 0
      %1132 = vmatpush1.bf16.msra.mxu0 0
      %1133 = vmatprep.subr.bf16.mxu0 0
      %1134 = vmatpush1.bf16.msra.mxu0 0
      %1135 = vmatprep.subr.bf16.mxu0 0
      %1136 = vmatpush1.bf16.msra.mxu0 0
      %1137 = vmatprep.subr.bf16.mxu0 0
      %1138 = vmatpush1.bf16.msra.mxu0 0
      %1139 = vmatprep.subr.bf16.mxu0 0
      %1140 = vmatpush1.bf16.msra.mxu0 0
      %1141 = vmatprep.subr.bf16.mxu0 0
      %1142 = vmatpush1.bf16.msra.mxu0 0
      %1143 = vmatprep.subr.bf16.mxu0 0
      %1144 = vmatpush1.bf16.msra.mxu0 0
      %1145 = vmatprep.subr.bf16.mxu0 0
      %1146 = vmatpush1.bf16.msra.mxu0 0
      %1147 = vmatprep.mubr.bf16.mxu0 0
      %1148 = vmatmul.mubr.bf16.gmra.mrb[0].mxu0 %v1109
      %v1149 = vpop.f32.mrb[0].mxu0
      %v1150 = vadd.f32 0.0, %v1149
      %v1151 = vpop.f32.mrb[0].mxu0
      %v1152 = vpop.f32.mrb[0].mxu0
      %v1153 = vpop.f32.mrb[0].mxu0
      %1154 = vdwg.mxu0
      %1155 = vrot.lane.b32.xlu0 %v844, 64
      %v1156 = vpop.permute.xlu0 %1155
      %v1158 = vsel %vm850, %v1103, 0
      %v1161 = vsel %vm1111, %v1156, 0
      %1163 = vmatprep.subr.bf16.mxu0 0
      %1164 = vmatpush1.bf16.msra.mxu0 %v1161
      %1165 = vmatprep.subr.bf16.mxu0 0
      %1166 = vmatpush1.bf16.msra.mxu0 0
      %1167 = vmatprep.subr.bf16.mxu0 0
      %1168 = vmatpush1.bf16.msra.mxu0 0
      %1169 = vmatprep.subr.bf16.mxu0 0
      %1170 = vmatpush1.bf16.msra.mxu0 0
      %1171 = vmatprep.subr.bf16.mxu0 0
      %1172 = vmatpush1.bf16.msra.mxu0 0
      %1173 = vmatprep.subr.bf16.mxu0 0
      %1174 = vmatpush1.bf16.msra.mxu0 0
      %1175 = vmatprep.subr.bf16.mxu0 0
      %1176 = vmatpush1.bf16.msra.mxu0 0
      %1177 = vmatprep.subr.bf16.mxu0 0
      %1178 = vmatpush1.bf16.msra.mxu0 0
      %1179 = vmatprep.subr.bf16.mxu0 0
      %1180 = vmatpush1.bf16.msra.mxu0 0
      %1181 = vmatprep.subr.bf16.mxu0 0
      %1182 = vmatpush1.bf16.msra.mxu0 0
      %1183 = vmatprep.subr.bf16.mxu0 0
      %1184 = vmatpush1.bf16.msra.mxu0 0
      %1185 = vmatprep.subr.bf16.mxu0 0
      %1186 = vmatpush1.bf16.msra.mxu0 0
      %1187 = vmatprep.subr.bf16.mxu0 0
      %1188 = vmatpush1.bf16.msra.mxu0 0
      %1189 = vmatprep.subr.bf16.mxu0 0
      %1190 = vmatpush1.bf16.msra.mxu0 0
      %1191 = vmatprep.subr.bf16.mxu0 0
      %1192 = vmatpush1.bf16.msra.mxu0 0
      %1193 = vmatprep.subr.bf16.mxu0 0
      %1194 = vmatpush1.bf16.msra.mxu0 0
      %1195 = vmatprep.mubr.bf16.mxu0 0
      %1196 = vmatmul.mubr.bf16.gmra.mrb[0].mxu0 %v1158
      %v1197 = vpop.f32.mrb[0].mxu0
      %v1198 = vadd.f32 0.0, %v1197
      %v1199 = vpop.f32.mrb[0].mxu0
      %v1200 = vpop.f32.mrb[0].mxu0
      %v1201 = vpop.f32.mrb[0].mxu0
      %1202 = vdwg.mxu0
      %1203 = vrot.lane.b32.xlu0 %v845, 64
      %v1204 = vpop.permute.xlu0 %1203
      %v1206 = vsel %vm850, %v1104, 0
      %v1209 = vsel %vm1111, %v1204, 0
      %1211 = vmatprep.subr.bf16.mxu0 0
      %1212 = vmatpush1.bf16.msra.mxu0 %v1209
      %1213 = vmatprep.subr.bf16.mxu0 0
      %1214 = vmatpush1.bf16.msra.mxu0 0
      %1215 = vmatprep.subr.bf16.mxu0 0
      %1216 = vmatpush1.bf16.msra.mxu0 0
      %1217 = vmatprep.subr.bf16.mxu0 0
      %1218 = vmatpush1.bf16.msra.mxu0 0
      %1219 = vmatprep.subr.bf16.mxu0 0
      %1220 = vmatpush1.bf16.msra.mxu0 0
      %1221 = vmatprep.subr.bf16.mxu0 0
      %1222 = vmatpush1.bf16.msra.mxu0 0
      %1223 = vmatprep.subr.bf16.mxu0 0
      %1224 = vmatpush1.bf16.msra.mxu0 0
      %1225 = vmatprep.subr.bf16.mxu0 0
      %1226 = vmatpush1.bf16.msra.mxu0 0
      %1227 = vmatprep.subr.bf16.mxu0 0
      %1228 = vmatpush1.bf16.msra.mxu0 0
      %1229 = vmatprep.subr.bf16.mxu0 0
      %1230 = vmatpush1.bf16.msra.mxu0 0
      %1231 = vmatprep.subr.bf16.mxu0 0
      %1232 = vmatpush1.bf16.msra.mxu0 0
      %1233 = vmatprep.subr.bf16.mxu0 0
      %1234 = vmatpush1.bf16.msra.mxu0 0
      %1235 = vmatprep.subr.bf16.mxu0 0
      %1236 = vmatpush1.bf16.msra.mxu0 0
      %1237 = vmatprep.subr.bf16.mxu0 0
      %1238 = vmatpush1.bf16.msra.mxu0 0
      %1239 = vmatprep.subr.bf16.mxu0 0
      %1240 = vmatpush1.bf16.msra.mxu0 0
      %1241 = vmatprep.subr.bf16.mxu0 0
      %1242 = vmatpush1.bf16.msra.mxu0 0
      %1243 = vmatprep.mubr.bf16.mxu0 0
      %1244 = vmatmul.mubr.bf16.gmra.mrb[0].mxu0 %v1206
      %v1245 = vpop.f32.mrb[0].mxu0
      %v1246 = vadd.f32 0.0, %v1245
      %v1247 = vpop.f32.mrb[0].mxu0
      %v1248 = vpop.f32.mrb[0].mxu0
      %v1249 = vpop.f32.mrb[0].mxu0
      %1250 = vdwg.mxu0
      %1251 = vrot.lane.b32.xlu0 %v846, 64
      %v1252 = vpop.permute.xlu0 %1251
      %v1254 = vsel %vm850, %v1105, 0
      %v1257 = vsel %vm1111, %v1252, 0
      %1259 = vmatprep.subr.bf16.mxu0 0
      %1260 = vmatpush1.bf16.msra.mxu0 %v1257
      %1261 = vmatprep.subr.bf16.mxu0 0
      %1262 = vmatpush1.bf16.msra.mxu0 0
      %1263 = vmatprep.subr.bf16.mxu0 0
      %1264 = vmatpush1.bf16.msra.mxu0 0
      %1265 = vmatprep.subr.bf16.mxu0 0
      %1266 = vmatpush1.bf16.msra.mxu0 0
      %1267 = vmatprep.subr.bf16.mxu0 0
      %1268 = vmatpush1.bf16.msra.mxu0 0
      %1269 = vmatprep.subr.bf16.mxu0 0
      %1270 = vmatpush1.bf16.msra.mxu0 0
      %1271 = vmatprep.subr.bf16.mxu0 0
      %1272 = vmatpush1.bf16.msra.mxu0 0
      %1273 = vmatprep.subr.bf16.mxu0 0
      %1274 = vmatpush1.bf16.msra.mxu0 0
      %1275 = vmatprep.subr.bf16.mxu0 0
      %1276 = vmatpush1.bf16.msra.mxu0 0
      %1277 = vmatprep.subr.bf16.mxu0 0
      %1278 = vmatpush1.bf16.msra.mxu0 0
      %1279 = vmatprep.subr.bf16.mxu0 0
      %1280 = vmatpush1.bf16.msra.mxu0 0
      %1281 = vmatprep.subr.bf16.mxu0 0
      %1282 = vmatpush1.bf16.msra.mxu0 0
      %1283 = vmatprep.subr.bf16.mxu0 0
      %1284 = vmatpush1.bf16.msra.mxu0 0
      %1285 = vmatprep.subr.bf16.mxu0 0
      %1286 = vmatpush1.bf16.msra.mxu0 0
      %1287 = vmatprep.subr.bf16.mxu0 0
      %1288 = vmatpush1.bf16.msra.mxu0 0
      %1289 = vmatprep.subr.bf16.mxu0 0
      %1290 = vmatpush1.bf16.msra.mxu0 0
      %1291 = vmatprep.mubr.bf16.mxu0 0
      %1292 = vmatmul.mubr.bf16.gmra.mrb[0].mxu0 %v1254
      %v1293 = vpop.f32.mrb[0].mxu0
      %v1294 = vadd.f32 0.0, %v1293
      %v1295 = vpop.f32.mrb[0].mxu0
      %v1296 = vpop.f32.mrb[0].mxu0
      %v1297 = vpop.f32.mrb[0].mxu0
      %1298 = vdwg.mxu0
      %1300 = vrot.lane.b32.xlu0 %v1198, 8
      %v1301 = vpop.permute.xlu0 %1300
      %1304 = vrot.lane.b32.xlu0 %v1246, 16
      %v1305 = vpop.permute.xlu0 %1304
      %1308 = vrot.lane.b32.xlu0 %v1294, 24
      %v1309 = vpop.permute.xlu0 %1308
      %v1311 = vsel %vm850, %v1150, %v1301
      %vm1312 = vcmask 130048
      %v1313 = vsel %vm1312, %v1311, %v1305
      %vm1314 = vcmask 195584
      %v1315 = vsel %vm1314, %v1313, %v1309
      %v1316 = vld [vmem:[%s699] sm:$0xff]
      %v1317 = vld [vmem:[%s699 + $0x8] sm:$0xff]
      %v1318 = vld [vmem:[%s699 + $0x10] sm:$0xff]
      %v1319 = vld [vmem:[%s699 + $0x18] sm:$0xff]
      %v1320 = vpack.c.bf16 %v1315, %v1315
      %v1321 = vpack.c.bf16 %v1317, %v1316
      %v1322 = vpack.c.bf16 %v1319, %v1318
      %v1323 = vld [vmem:[%s702] sm:$0x1]
      %v1325 = vlaneseq
      %v1326 = vshrl.u32 %v1325, 7
      %v1327 = vsub.s32 0, %v1326
      %v1328 = vrot.slane %v1323, %v1327
      %v1331 = vsel %vm789, %v1320, 0
      %1333 = vmatprep.subr.bf16.mxu0 0
      %1334 = vmatpush1.bf16.msra.mxu0 %v1321
      %1335 = vmatprep.subr.bf16.mxu0 0
      %1336 = vmatpush1.bf16.msra.mxu0 %v1322
      %1337 = vmatprep.subr.bf16.mxu0 0
      %1338 = vmatpush1.bf16.msra.mxu0 0
      %1339 = vmatprep.subr.bf16.mxu0 0
      %1340 = vmatpush1.bf16.msra.mxu0 0
      %1341 = vmatprep.subr.bf16.mxu0 0
      %1342 = vmatpush1.bf16.msra.mxu0 0
      %1343 = vmatprep.subr.bf16.mxu0 0
      %1344 = vmatpush1.bf16.msra.mxu0 0
      %1345 = vmatprep.subr.bf16.mxu0 0
      %1346 = vmatpush1.bf16.msra.mxu0 0
      %1347 = vmatprep.subr.bf16.mxu0 0
      %1348 = vmatpush1.bf16.msra.mxu0 0
      %1349 = vmatprep.subr.bf16.mxu0 0
      %1350 = vmatpush1.bf16.msra.mxu0 0
      %1351 = vmatprep.subr.bf16.mxu0 0
      %1352 = vmatpush1.bf16.msra.mxu0 0
      %1353 = vmatprep.subr.bf16.mxu0 0
      %1354 = vmatpush1.bf16.msra.mxu0 0
      %1355 = vmatprep.subr.bf16.mxu0 0
      %1356 = vmatpush1.bf16.msra.mxu0 0
      %1357 = vmatprep.subr.bf16.mxu0 0
      %1358 = vmatpush1.bf16.msra.mxu0 0
      %1359 = vmatprep.subr.bf16.mxu0 0
      %1360 = vmatpush1.bf16.msra.mxu0 0
      %1361 = vmatprep.subr.bf16.mxu0 0
      %1362 = vmatpush1.bf16.msra.mxu0 0
      %1363 = vmatprep.subr.bf16.mxu0 0
      %1364 = vmatpush1.bf16.msra.mxu0 0
      %1365 = vmatprep.mubr.bf16.mxu0 0
      %1366 = vmatmul.mubr.bf16.gmra.mrb[0].mxu0 %v1331
      %v1367 = vpop.f32.mrb[0].mxu0
      %v1368 = vadd.f32 %v1328, %v1367
      %v1369 = vpop.f32.mrb[0].mxu0
      %v1370 = vpop.f32.mrb[0].mxu0
      %v1371 = vpop.f32.mrb[0].mxu0
      %1372 = vdwg.mxu0
      %v1373 = vadd.f32 %v1368, %v773
      %v1374 = vld [vmem:[%s705] sm:$0x1]
      %v1375 = vld [vmem:[%s708] sm:$0x1]
      %v1376 = vsel %vm789, %v1373, 0.0
      %1377 = vadd.xlane.f32.xlu0 %v1376
      %v1378 = vpop.xlane.xlu0 %1377
      %v1379 = vrcp.pop 32.0
      %v1380 = vmul.f32 %v1378, %v1379
      %v1381 = vsub.f32 %v1373, %v1380
      %v1382 = vmul.f32 %v1381, %v1381
      %v1383 = vsel %vm789, %v1382, 0.0
      %1384 = vadd.xlane.f32.xlu0 %v1383
      %v1385 = vpop.xlane.xlu0 %1384
      %v1386 = vmul.f32 %v1385, %v1379
      %v1387 = vadd.f32 %v1386, 1e-12
      %v1388 = vrsqrt.pop %v1387
      %v1389 = vmul.f32 %v1381, %v1388
      %v1391 = vlaneseq
      %v1392 = vshrl.u32 %v1391, 7
      %v1393 = vsub.s32 0, %v1392
      %v1394 = vrot.slane %v1374, %v1393
      %v1396 = vmul.f32 %v1389, %v1394
      %v1398 = vlaneseq
      %v1399 = vshrl.u32 %v1398, 7
      %v1400 = vsub.s32 0, %v1399
      %v1401 = vrot.slane %v1375, %v1400
      %v1403 = vadd.f32 %v1396, %v1401
      %v1404 = vld [vmem:[%s713] sm:$0xff]
      %v1405 = vld [vmem:[%s713 + $0x8] sm:$0xff]
      %v1406 = vld [vmem:[%s713 + $0x10] sm:$0xff]
      %v1407 = vld [vmem:[%s713 + $0x18] sm:$0xff]
      %v1408 = vpack.c.bf16 %v1403, %v1403
      %v1409 = vpack.c.bf16 %v1405, %v1404
      %v1410 = vpack.c.bf16 %v1407, %v1406
      %v1411 = vld [vmem:[%s716] sm:$0x1]
      %v1413 = vlaneseq
      %v1414 = vshrl.u32 %v1413, 7
      %v1415 = vsub.s32 0, %v1414
      %v1416 = vrot.slane %v1411, %v1415
      %v1419 = vsel %vm789, %v1408, 0
      %1421 = vmatprep.subr.bf16.mxu0 0
      %1422 = vmatpush1.bf16.msra.mxu0 %v1409
      %1423 = vmatprep.subr.bf16.mxu0 0
      %1424 = vmatpush1.bf16.msra.mxu0 %v1410
      %1425 = vmatprep.subr.bf16.mxu0 0
      %1426 = vmatpush1.bf16.msra.mxu0 0
      %1427 = vmatprep.subr.bf16.mxu0 0
      %1428 = vmatpush1.bf16.msra.mxu0 0
      %1429 = vmatprep.subr.bf16.mxu0 0
      %1430 = vmatpush1.bf16.msra.mxu0 0
      %1431 = vmatprep.subr.bf16.mxu0 0
      %1432 = vmatpush1.bf16.msra.mxu0 0
      %1433 = vmatprep.subr.bf16.mxu0 0
      %1434 = vmatpush1.bf16.msra.mxu0 0
      %1435 = vmatprep.subr.bf16.mxu0 0
      %1436 = vmatpush1.bf16.msra.mxu0 0
      %1437 = vmatprep.subr.bf16.mxu0 0
      %1438 = vmatpush1.bf16.msra.mxu0 0
      %1439 = vmatprep.subr.bf16.mxu0 0
      %1440 = vmatpush1.bf16.msra.mxu0 0
      %1441 = vmatprep.subr.bf16.mxu0 0
      %1442 = vmatpush1.bf16.msra.mxu0 0
      %1443 = vmatprep.subr.bf16.mxu0 0
      %1444 = vmatpush1.bf16.msra.mxu0 0
      %1445 = vmatprep.subr.bf16.mxu0 0
      %1446 = vmatpush1.bf16.msra.mxu0 0
      %1447 = vmatprep.subr.bf16.mxu0 0
      %1448 = vmatpush1.bf16.msra.mxu0 0
      %1449 = vmatprep.subr.bf16.mxu0 0
      %1450 = vmatpush1.bf16.msra.mxu0 0
      %1451 = vmatprep.subr.bf16.mxu0 0
      %1452 = vmatpush1.bf16.msra.mxu0 0
      %1453 = vmatprep.mubr.bf16.mxu0 0
      %1454 = vmatmul.mubr.bf16.gmra.mrb[0].mxu0 %v1419
      %v1455 = vpop.f32.mrb[0].mxu0
      %v1456 = vadd.f32 %v1416, %v1455
      %v1457 = vpop.f32.mrb[0].mxu0
      %v1458 = vpop.f32.mrb[0].mxu0
      %v1459 = vpop.f32.mrb[0].mxu0
      %1460 = vdwg.mxu0
      %v1461 = vmul.f32 %v1456, 0.5
      %v1462 = vmul.f32 %v1456, 0.044715
      %v1463 = vmul.f32 %v1462, %v1456
      %v1464 = vmul.f32 %v1463, %v1456
      %v1465 = vadd.f32 %v1456, %v1464
      %v1466 = vmul.f32 %v1465, 0.7978846
      %v1467 = vtanh.pop %v1466
      %v1468 = vadd.f32 %v1467, 1.0
      %v1469 = vmul.f32 %v1461, %v1468
      %v1470 = vld [vmem:[%s721] sm:$0xff]
      %v1471 = vld [vmem:[%s721 + $0x8] sm:$0xff]
      %v1472 = vld [vmem:[%s721 + $0x10] sm:$0xff]
      %v1473 = vld [vmem:[%s721 + $0x18] sm:$0xff]
      %v1474 = vld [vmem:[%s721 + $0x20] sm:$0xff]
      %v1475 = vld [vmem:[%s721 + $0x28] sm:$0xff]
      %v1476 = vld [vmem:[%s721 + $0x30] sm:$0xff]
      %v1477 = vld [vmem:[%s721 + $0x38] sm:$0xff]
      %v1478 = vpack.c.bf16 %v1469, %v1469
      %v1479 = vpack.c.bf16 %v1471, %v1470
      %v1480 = vpack.c.bf16 %v1473, %v1472
      %v1481 = vpack.c.bf16 %v1475, %v1474
      %v1482 = vpack.c.bf16 %v1477, %v1476
      %v1483 = vld [vmem:[%s724] sm:$0x1]
      %v1485 = vlaneseq
      %v1486 = vshrl.u32 %v1485, 7
      %v1487 = vsub.s32 0, %v1486
      %v1488 = vrot.slane %v1483, %v1487
      %vm1490 = vcmask 523264
      %v1492 = vsel %vm1490, %v1478, 0
      %1494 = vmatprep.subr.bf16.mxu0 0
      %1495 = vmatpush1.bf16.msra.mxu0 %v1479
      %1496 = vmatprep.subr.bf16.mxu0 0
      %1497 = vmatpush1.bf16.msra.mxu0 %v1480
      %1498 = vmatprep.subr.bf16.mxu0 0
      %1499 = vmatpush1.bf16.msra.mxu0 %v1481
      %1500 = vmatprep.subr.bf16.mxu0 0
      %1501 = vmatpush1.bf16.msra.mxu0 %v1482
      %1502 = vmatprep.subr.bf16.mxu0 0
      %1503 = vmatpush1.bf16.msra.mxu0 0
      %1504 = vmatprep.subr.bf16.mxu0 0
      %1505 = vmatpush1.bf16.msra.mxu0 0
      %1506 = vmatprep.subr.bf16.mxu0 0
      %1507 = vmatpush1.bf16.msra.mxu0 0
      %1508 = vmatprep.subr.bf16.mxu0 0
      %1509 = vmatpush1.bf16.msra.mxu0 0
      %1510 = vmatprep.subr.bf16.mxu0 0
      %1511 = vmatpush1.bf16.msra.mxu0 0
      %1512 = vmatprep.subr.bf16.mxu0 0
      %1513 = vmatpush1.bf16.msra.mxu0 0
      %1514 = vmatprep.subr.bf16.mxu0 0
      %1515 = vmatpush1.bf16.msra.mxu0 0
      %1516 = vmatprep.subr.bf16.mxu0 0
      %1517 = vmatpush1.bf16.msra.mxu0 0
      %1518 = vmatprep.subr.bf16.mxu0 0
      %1519 = vmatpush1.bf16.msra.mxu0 0
      %1520 = vmatprep.subr.bf16.mxu0 0
      %1521 = vmatpush1.bf16.msra.mxu0 0
      %1522 = vmatprep.subr.bf16.mxu0 0
      %1523 = vmatpush1.bf16.msra.mxu0 0
      %1524 = vmatprep.subr.bf16.mxu0 0
      %1525 = vmatpush1.bf16.msra.mxu0 0
      %1526 = vmatprep.mubr.bf16.mxu0 0
      %1527 = vmatmul.mubr.bf16.gmra.mrb[0].mxu0 %v1492
      %v1528 = vpop.f32.mrb[0].mxu0
      %v1529 = vadd.f32 %v1488, %v1528
      %v1530 = vpop.f32.mrb[0].mxu0
      %v1531 = vpop.f32.mrb[0].mxu0
      %v1532 = vpop.f32.mrb[0].mxu0
      %1533 = vdwg.mxu0
      %v1534 = vadd.f32 %v1529, %v1403
      %v1535 = vld [vmem:[%s727] sm:$0x1]
      %v1536 = vld [vmem:[%s730] sm:$0x1]
      %v1537 = vsel %vm789, %v1534, 0.0
      %1538 = vadd.xlane.f32.xlu0 %v1537
      %v1539 = vpop.xlane.xlu0 %1538
      %v1540 = vmul.f32 %v1539, %v1379
      %v1541 = vsub.f32 %v1534, %v1540
      %v1542 = vmul.f32 %v1541, %v1541
      %v1543 = vsel %vm789, %v1542, 0.0
      %1544 = vadd.xlane.f32.xlu0 %v1543
      %v1545 = vpop.xlane.xlu0 %1544
      %v1546 = vmul.f32 %v1545, %v1379
      %v1547 = vadd.f32 %v1546, 1e-12
      %v1548 = vrsqrt.pop %v1547
      %v1549 = vmul.f32 %v1541, %v1548
      %v1551 = vlaneseq
      %v1552 = vshrl.u32 %v1551, 7
      %v1553 = vsub.s32 0, %v1552
      %v1554 = vrot.slane %v1535, %v1553
      %v1556 = vmul.f32 %v1549, %v1554
      %v1558 = vlaneseq
      %v1559 = vshrl.u32 %v1558, 7
      %v1560 = vsub.s32 0, %v1559
      %v1561 = vrot.slane %v1536, %v1560
      %v1563 = vadd.f32 %v1556, %v1561
      %1564 = vst.msk [vmem:[#allocation2] sm:$0xff] %vm789, %v1563
      %p1565 = scmp.eq.s32.totalorder %s32, 1
      // Predicated region
      $region89: #{rrs_forward.2} parent=83 // pred_check
        %p1566 = pneg %p1565
      $region90: #{rrs_forward.2} parent=83 // pred_check_branch
        %1568 = sbr.rel (%p1566) target = $region92
      $region91: #{rrs_forward.2} parent=83 // pred_region
        %1569 = vst.msk [vmem:[%s734] sm:$0xff] %vm789, %v1563
      $region92: #{rrs_forward.2} parent=83 // pred_fallthru
        _
      %p1570 = scmp.lt.s32.totalorder %s31, 1
      %s1571 = scalar_select %p1570, %s31, 1
      %s1572 = smul.addr %s1571, 8
      %s1573 = scalar_lea.vmem %s16, %s1572
      // Predicated region
      $region93: #{rrs_forward.2} parent=83 // pred_check
        %p1574 = pneg %p463
      $region94: #{rrs_forward.2} parent=83 // pred_check_branch
        %1576 = sbr.rel (%p1574) target = $region96
      $region95: #{rrs_forward.2} parent=83 // pred_region
        _
      $region96: #{rrs_forward.2} parent=83 // pred_fallthru
        _
    $region84: #{rrs_forward.2} parent=5 // pred_fallthru
      _
    %p1577 = scmp.le.s32.totalorder 2, %s22
    // Predicated region
    $region97: #{rrs_forward.2} parent=5 // pred_check
      %p1578 = pneg %p1577
    $region98: #{rrs_forward.2} parent=5 // pred_check_branch
      %1580 = sbr.rel (%p1578) target = $region100
    $region99: #{rrs_forward.2} parent=5 // pred_region
      %s1581 = ssub.s32 %s22, 2
      // Predicated region
      $region101: #{rrs_forward.2} parent=99 // pred_check
        %p1582 = pneg %p469
      $region102: #{rrs_forward.2} parent=99 // pred_check_branch
        %1584 = sbr.rel (%p1582) target = $region104
      $region103: #{rrs_forward.2} parent=99 // pred_region
        %p1585 = scmp.lt.s32.totalorder %s33, 1
        %s1586 = scalar_select %p1585, %s33, 1
        %s1587 = smul.addr %s1586, 8
        %s1588 = scalar_lea.vmem %s16, %s1587
      $region104: #{rrs_forward.2} parent=99 // pred_fallthru
        _
    $region100: #{rrs_forward.2} parent=5 // pred_fallthru
      _
  $region6: #{rrs_forward.2} parent=0 // loop_footer
    %s26 = sadd.s32 1, %s22
  $region7: #{rrs_forward.2} parent=0 // loop_footer_branch
    %21 = sbr.rel target = $region3
  $region8: #{rrs_forward.2} parent=0 // loop_exit
    _

// kernel: rrs_forward.3
$region0: #{rrs_forward.3}
  #allocation0 [shape = 'u32[]', space=smem, size = 0x4, offset = 0x4, fixed_abs, tag = 'smem constant byte address 0x4 - core index']
  #allocation1 [shape = 'u32[144,128]{1,0:T(1,128)}', space=vmem, size = 0x12000, scoped, tag = 'internal scratch']
  #allocation2 [shape = 'f32[8,32]{1,0:T(8,128)}', space=vmem, size = 0x1000, scoped, tag = 'scratch operand']
  %s0 = inlined_call_operand.vmem [shape: f32[2,8,32], index: 0, kind: input, shape index: {}]
  %s1 = inlined_call_operand.vmem [shape: f32[2,8,32], index: 1, kind: input, shape index: {}]
  %s2 = inlined_call_operand.vmem [shape: f32[2,8,8], index: 2, kind: input, shape index: {}]
  %s3 = inlined_call_operand.vmem [shape: f32[2,1,8], index: 3, kind: input, shape index: {}]
  %s4 = inlined_call_operand.vmem [shape: f32[1,32], index: 4, kind: input, shape index: {}]
  %s5 = inlined_call_operand.vmem [shape: f32[1,32], index: 5, kind: input, shape index: {}]
  %s6 = inlined_call_operand.vmem [shape: f32[2,32,96], index: 6, kind: input, shape index: {}]
  %s7 = inlined_call_operand.vmem [shape: f32[2,1,96], index: 7, kind: input, shape index: {}]
  %s8 = inlined_call_operand.vmem [shape: f32[2,32,32], index: 8, kind: input, shape index: {}]
  %s9 = inlined_call_operand.vmem [shape: f32[2,1,32], index: 9, kind: input, shape index: {}]
  %s10 = inlined_call_operand.vmem [shape: f32[2,1,32], index: 10, kind: input, shape index: {}]
  %s11 = inlined_call_operand.vmem [shape: f32[2,1,32], index: 11, kind: input, shape index: {}]
  %s12 = inlined_call_operand.vmem [shape: f32[2,32,32], index: 12, kind: input, shape index: {}]
  %s13 = inlined_call_operand.vmem [shape: f32[2,1,32], index: 13, kind: input, shape index: {}]
  %s14 = inlined_call_operand.vmem [shape: f32[2,32,64], index: 14, kind: input, shape index: {}]
  %s15 = inlined_call_operand.vmem [shape: f32[2,1,64], index: 15, kind: input, shape index: {}]
  %s16 = inlined_call_operand.vmem [shape: f32[2,32,32], index: 16, kind: input, shape index: {}]
  %s17 = inlined_call_operand.vmem [shape: f32[2,1,32], index: 17, kind: input, shape index: {}]
  %s18 = inlined_call_operand.vmem [shape: f32[2,1,32], index: 18, kind: input, shape index: {}]
  %s19 = inlined_call_operand.vmem [shape: f32[2,1,32], index: 19, kind: input, shape index: {}]
  %s20 = inlined_call_operand.vmem [shape: f32[2,32,64], index: 20, kind: input, shape index: {}]
  %s21 = inlined_call_operand.vmem [shape: f32[2,1,64], index: 21, kind: input, shape index: {}]
  %s22 = inlined_call_operand.vmem [shape: f32[2,64,32], index: 22, kind: input, shape index: {}]
  %s23 = inlined_call_operand.vmem [shape: f32[2,1,32], index: 23, kind: input, shape index: {}]
  %s24 = inlined_call_operand.vmem [shape: f32[2,1,32], index: 24, kind: input, shape index: {}]
  %s25 = inlined_call_operand.vmem [shape: f32[2,1,32], index: 25, kind: input, shape index: {}]
  %s26 = inlined_call_operand.vmem [shape: f32[32,128], index: 26, kind: input, shape index: {}]
  %s27 = inlined_call_operand.hbm [shape: f32[1,128], index: 27, kind: input, shape index: {}]
  %s28 = inlined_call_operand.hbm [shape: f32[2,8,128], index: 28, kind: output, shape index: {}]
  %s29 = sld [smem:[#allocation0]]
  $region157: #{rrs_forward.3} parent=0
    _
  %s31 = ssub.s32 1, %s29
  %s32 = scalar_select 0, %s31, %s29
  $region1: #{rrs_forward.3} parent=0
    #allocation3 [shape = 'u8[512]{0}', space=vmem, size = 0x400, scoped, tag = 'input window, operand 27, single buffered']
    #allocation4 [shape = 's32[2]{0}', space=sflag, size = 0x8, scoped, tag = 'scoped memory for rrs_forward.3']
    #allocation5 [shape = 's32[2]{0}', space=sflag, size = 0x8, scoped, tag = 'scoped memory for rrs_forward.3']
    #allocation6 [shape = 'u8[8192]{0}', space=vmem, size = 0x2000, scoped, tag = 'output window, operand 0']
    %33 = vsyncpa [#allocation4], 0
    %34 = vsyncpa [#allocation5], 0
    %s35 = scalar_lea.sflag [#allocation5], 1
    %36 = vsyncpa %s35, 0
    loop: start=0, step=1, limit=6
    $region2: #{rrs_forward.3} parent=1 // loop_pre_header
      _
    $region3: #{rrs_forward.3} parent=1 // loop_header
      %s38 = sphi 0, %s42
      %p39 = scmp.ge.s32.totalorder %s38, 6
      %s45 = sphi 0, %s57
      %s46 = sphi 0, %s53
      %s47 = sphi 0, %s45
      %s48 = sphi 0, %s46
      %s49 = sphi 0, %s47
      %s50 = sphi 0, %s48
      %s60 = sphi 0, %s62
      %s63 = sphi 0, %s60
      %s64 = sphi 0, %s63
      %s80 = sphi 0, %s64
      %s86 = sphi 0, %s88
      %s89 = sphi 0, %s86
      %s90 = sphi 0, %s89
      %s106 = sphi 0, %s90
      %s112 = sphi 0, %s114
      %s115 = sphi 0, %s112
      %s116 = sphi 0, %s115
      %s132 = sphi 0, %s116
      %s138 = sphi 0, %s140
      %s141 = sphi 0, %s138
      %s142 = sphi 0, %s141
      %s158 = sphi 0, %s142
      %s162 = sphi 0, %s162
      %s164 = sphi 0, %s162
      %s165 = sphi 0, %s164
      %s179 = sphi 0, %s165
      %s183 = sphi 0, %s183
      %s185 = sphi 0, %s183
      %s186 = sphi 0, %s185
      %s200 = sphi 0, %s186
      %s206 = sphi 0, %s208
      %s209 = sphi 0, %s206
      %s210 = sphi 0, %s209
      %s226 = sphi 0, %s210
      %s232 = sphi 0, %s234
      %s235 = sphi 0, %s232
      %s236 = sphi 0, %s235
      %s252 = sphi 0, %s236
      %s258 = sphi 0, %s260
      %s261 = sphi 0, %s258
      %s262 = sphi 0, %s261
      %s278 = sphi 0, %s262
      %s284 = sphi 0, %s286
      %s287 = sphi 0, %s284
      %s288 = sphi 0, %s287
      %s304 = sphi 0, %s288
      %s310 = sphi 0, %s312
      %s313 = sphi 0, %s310
      %s314 = sphi 0, %s313
      %s330 = sphi 0, %s314
      %s336 = sphi 0, %s338
      %s339 = sphi 0, %s336
      %s340 = sphi 0, %s339
      %s356 = sphi 0, %s340
      %s362 = sphi 0, %s364
      %s365 = sphi 0, %s362
      %s366 = sphi 0, %s365
      %s382 = sphi 0, %s366
      %s388 = sphi 0, %s390
      %s391 = sphi 0, %s388
      %s392 = sphi 0, %s391
      %s408 = sphi 0, %s392
      %s414 = sphi 0, %s416
      %s417 = sphi 0, %s414
      %s418 = sphi 0, %s417
      %s434 = sphi 0, %s418
      %s440 = sphi 0, %s442
      %s443 = sphi 0, %s440
      %s444 = sphi 0, %s443
      %s460 = sphi 0, %s444
      %s466 = sphi 0, %s468
      %s469 = sphi 0, %s466
      %s470 = sphi 0, %s469
      %s486 = sphi 0, %s470
      %s492 = sphi 0, %s494
      %s495 = sphi 0, %s492
      %s496 = sphi 0, %s495
      %s512 = sphi 0, %s496
      %s518 = sphi 0, %s520
      %s521 = sphi 0, %s518
      %s522 = sphi 0, %s521
      %s538 = sphi 0, %s522
      %s544 = sphi 0, %s546
      %s547 = sphi 0, %s544
      %s548 = sphi 0, %s547
      %s564 = sphi 0, %s548
      %s570 = sphi 0, %s572
      %s573 = sphi 0, %s570
      %s574 = sphi 0, %s573
      %s590 = sphi 0, %s574
      %s596 = sphi 0, %s598
      %s599 = sphi 0, %s596
      %s600 = sphi 0, %s599
      %s616 = sphi 0, %s600
      %s622 = sphi 0, %s624
      %s625 = sphi 0, %s622
      %s626 = sphi 0, %s625
      %s642 = sphi 0, %s626
      %s648 = sphi 0, %s650
      %s651 = sphi 0, %s648
      %s652 = sphi 0, %s651
      %s668 = sphi 0, %s652
      %s674 = sphi 0, %s676
      %s677 = sphi 0, %s674
      %s678 = sphi 0, %s677
      %s694 = sphi 0, %s678
      %s700 = sphi 0, %s702
      %s703 = sphi 0, %s700
      %s704 = sphi 0, %s703
      %s720 = sphi 0, %s704
      %s724 = sphi 0, %s724
      %s726 = sphi 0, %s724
      %s727 = sphi 0, %s726
      %s741 = sphi 0, %s727
      %s745 = sphi 0, %s745
      %s747 = sphi 0, %s745
      %s748 = sphi 0, %s747
      %s762 = sphi 0, %s748
      %s768 = sphi 0, %s770
      %s771 = sphi 0, %s768
      %s772 = sphi 0, %s771
      %s788 = sphi 0, %s772
    $region4: #{rrs_forward.3} parent=1 // loop_header_branch
      %41 = sbr.rel (%p39) target = $region8
    $region5: #{rrs_forward.3} parent=1 // loop_body
      %s43 = ssub.s32 %s38, 1
      %s44 = ssub.s32 %s38, 2
      %s51 = sadd.s32 1, %s46
      %p52 = scmp.ge.s32.totalorder %s51, 2
      %s53 = scalar_select %p52, 0, %s51
      %s54 = sadd.s32 1, %s45
      %s55 = scalar_select %p52, %s54, %s45
      %p56 = scmp.ge.s32.totalorder %s55, 2
      %s57 = scalar_select %p56, 0, %s55
      %s58 = ssub.s32 %s45, %s57
      %p59 = scmp.eq.s32.totalorder %s58, 0
      %s61 = sadd.s32 %s60, 1
      %s62 = scalar_select %p59, %s60, %s61
      %p65 = pneg %p59
      %p66 = scmp.eq.s32.totalorder %s38, 3
      %p67 = por %p65, %p66
      %p68 = scmp.ne.s32.totalorder %s60, %s63
      %p69 = scmp.eq.s32.totalorder %s38, 0
      %p70 = por %p68, %p69
      %p71 = scmp.ne.s32.totalorder %s60, %s63
      %p72 = scmp.eq.s32.totalorder %s43, 3
      %p73 = por %p71, %p72
      %p74 = scmp.ne.s32.totalorder %s63, %s64
      %p75 = scmp.eq.s32.totalorder %s43, 0
      %p76 = por %p74, %p75
      %p77 = scmp.ne.s32.totalorder %s63, %s64
      %p78 = scmp.eq.s32.totalorder %s44, 3
      %p79 = por %p77, %p78
      %p81 = scmp.ne.s32.totalorder %s64, %s80
      %p82 = scmp.eq.s32.totalorder %s44, 0
      %p83 = por %p81, %p82
      %s84 = ssub.s32 %s45, %s57
      %p85 = scmp.eq.s32.totalorder %s84, 0
      %s87 = sadd.s32 %s86, 1
      %s88 = scalar_select %p85, %s86, %s87
      %p91 = pneg %p85
      %p92 = scmp.eq.s32.totalorder %s38, 3
      %p93 = por %p91, %p92
      %p94 = scmp.ne.s32.totalorder %s86, %s89
      %p95 = scmp.eq.s32.totalorder %s38, 0
      %p96 = por %p94, %p95
      %p97 = scmp.ne.s32.totalorder %s86, %s89
      %p98 = scmp.eq.s32.totalorder %s43, 3
      %p99 = por %p97, %p98
      %p100 = scmp.ne.s32.totalorder %s89, %s90
      %p101 = scmp.eq.s32.totalorder %s43, 0
      %p102 = por %p100, %p101
      %p103 = scmp.ne.s32.totalorder %s89, %s90
      %p104 = scmp.eq.s32.totalorder %s44, 3
      %p105 = por %p103, %p104
      %p107 = scmp.ne.s32.totalorder %s90, %s106
      %p108 = scmp.eq.s32.totalorder %s44, 0
      %p109 = por %p107, %p108
      %s110 = ssub.s32 %s45, %s57
      %p111 = scmp.eq.s32.totalorder %s110, 0
      %s113 = sadd.s32 %s112, 1
      %s114 = scalar_select %p111, %s112, %s113
      %p117 = pneg %p111
      %p118 = scmp.eq.s32.totalorder %s38, 3
      %p119 = por %p117, %p118
      %p120 = scmp.ne.s32.totalorder %s112, %s115
      %p121 = scmp.eq.s32.totalorder %s38, 0
      %p122 = por %p120, %p121
      %p123 = scmp.ne.s32.totalorder %s112, %s115
      %p124 = scmp.eq.s32.totalorder %s43, 3
      %p125 = por %p123, %p124
      %p126 = scmp.ne.s32.totalorder %s115, %s116
      %p127 = scmp.eq.s32.totalorder %s43, 0
      %p128 = por %p126, %p127
      %p129 = scmp.ne.s32.totalorder %s115, %s116
      %p130 = scmp.eq.s32.totalorder %s44, 3
      %p131 = por %p129, %p130
      %p133 = scmp.ne.s32.totalorder %s116, %s132
      %p134 = scmp.eq.s32.totalorder %s44, 0
      %p135 = por %p133, %p134
      %s136 = ssub.s32 %s45, %s57
      %p137 = scmp.eq.s32.totalorder %s136, 0
      %s139 = sadd.s32 %s138, 1
      %s140 = scalar_select %p137, %s138, %s139
      %p143 = pneg %p137
      %p144 = scmp.eq.s32.totalorder %s38, 3
      %p145 = por %p143, %p144
      %p146 = scmp.ne.s32.totalorder %s138, %s141
      %p147 = scmp.eq.s32.totalorder %s38, 0
      %p148 = por %p146, %p147
      %p149 = scmp.ne.s32.totalorder %s138, %s141
      %p150 = scmp.eq.s32.totalorder %s43, 3
      %p151 = por %p149, %p150
      %p152 = scmp.ne.s32.totalorder %s141, %s142
      %p153 = scmp.eq.s32.totalorder %s43, 0
      %p154 = por %p152, %p153
      %p155 = scmp.ne.s32.totalorder %s141, %s142
      %p156 = scmp.eq.s32.totalorder %s44, 3
      %p157 = por %p155, %p156
      %p159 = scmp.ne.s32.totalorder %s142, %s158
      %p160 = scmp.eq.s32.totalorder %s44, 0
      %p161 = por %p159, %p160
      %s163 = sadd.s32 %s162, 1
      %p166 = scmp.eq.s32.totalorder %s38, 3
      %p167 = scmp.ne.s32.totalorder %s162, %s164
      %p168 = scmp.eq.s32.totalorder %s38, 0
      %p169 = por %p167, %p168
      %p170 = scmp.ne.s32.totalorder %s162, %s164
      %p171 = scmp.eq.s32.totalorder %s43, 3
      %p172 = por %p170, %p171
      %p173 = scmp.ne.s32.totalorder %s164, %s165
      %p174 = scmp.eq.s32.totalorder %s43, 0
      %p175 = por %p173, %p174
      %p176 = scmp.ne.s32.totalorder %s164, %s165
      %p177 = scmp.eq.s32.totalorder %s44, 3
      %p178 = por %p176, %p177
      %p180 = scmp.ne.s32.totalorder %s165, %s179
      %p181 = scmp.eq.s32.totalorder %s44, 0
      %p182 = por %p180, %p181
      %s184 = sadd.s32 %s183, 1
      %p187 = scmp.eq.s32.totalorder %s38, 3
      %p188 = scmp.ne.s32.totalorder %s183, %s185
      %p189 = scmp.eq.s32.totalorder %s38, 0
      %p190 = por %p188, %p189
      %p191 = scmp.ne.s32.totalorder %s183, %s185
      %p192 = scmp.eq.s32.totalorder %s43, 3
      %p193 = por %p191, %p192
      %p194 = scmp.ne.s32.totalorder %s185, %s186
      %p195 = scmp.eq.s32.totalorder %s43, 0
      %p196 = por %p194, %p195
      %p197 = scmp.ne.s32.totalorder %s185, %s186
      %p198 = scmp.eq.s32.totalorder %s44, 3
      %p199 = por %p197, %p198
      %p201 = scmp.ne.s32.totalorder %s186, %s200
      %p202 = scmp.eq.s32.totalorder %s44, 0
      %p203 = por %p201, %p202
      %s204 = ssub.s32 %s46, %s53
      %p205 = scmp.eq.s32.totalorder %s204, 0
      %s207 = sadd.s32 %s206, 1
      %s208 = scalar_select %p205, %s206, %s207
      %p211 = pneg %p205
      %p212 = scmp.eq.s32.totalorder %s38, 3
      %p213 = por %p211, %p212
      %p214 = scmp.ne.s32.totalorder %s206, %s209
      %p215 = scmp.eq.s32.totalorder %s38, 0
      %p216 = por %p214, %p215
      %p217 = scmp.ne.s32.totalorder %s206, %s209
      %p218 = scmp.eq.s32.totalorder %s43, 3
      %p219 = por %p217, %p218
      %p220 = scmp.ne.s32.totalorder %s209, %s210
      %p221 = scmp.eq.s32.totalorder %s43, 0
      %p222 = por %p220, %p221
      %p223 = scmp.ne.s32.totalorder %s209, %s210
      %p224 = scmp.eq.s32.totalorder %s44, 3
      %p225 = por %p223, %p224
      %p227 = scmp.ne.s32.totalorder %s210, %s226
      %p228 = scmp.eq.s32.totalorder %s44, 0
      %p229 = por %p227, %p228
      %s230 = ssub.s32 %s46, %s53
      %p231 = scmp.eq.s32.totalorder %s230, 0
      %s233 = sadd.s32 %s232, 1
      %s234 = scalar_select %p231, %s232, %s233
      %p237 = pneg %p231
      %p238 = scmp.eq.s32.totalorder %s38, 3
      %p239 = por %p237, %p238
      %p240 = scmp.ne.s32.totalorder %s232, %s235
      %p241 = scmp.eq.s32.totalorder %s38, 0
      %p242 = por %p240, %p241
      %p243 = scmp.ne.s32.totalorder %s232, %s235
      %p244 = scmp.eq.s32.totalorder %s43, 3
      %p245 = por %p243, %p244
      %p246 = scmp.ne.s32.totalorder %s235, %s236
      %p247 = scmp.eq.s32.totalorder %s43, 0
      %p248 = por %p246, %p247
      %p249 = scmp.ne.s32.totalorder %s235, %s236
      %p250 = scmp.eq.s32.totalorder %s44, 3
      %p251 = por %p249, %p250
      %p253 = scmp.ne.s32.totalorder %s236, %s252
      %p254 = scmp.eq.s32.totalorder %s44, 0
      %p255 = por %p253, %p254
      %s256 = ssub.s32 %s46, %s53
      %p257 = scmp.eq.s32.totalorder %s256, 0
      %s259 = sadd.s32 %s258, 1
      %s260 = scalar_select %p257, %s258, %s259
      %p263 = pneg %p257
      %p264 = scmp.eq.s32.totalorder %s38, 3
      %p265 = por %p263, %p264
      %p266 = scmp.ne.s32.totalorder %s258, %s261
      %p267 = scmp.eq.s32.totalorder %s38, 0
      %p268 = por %p266, %p267
      %p269 = scmp.ne.s32.totalorder %s258, %s261
      %p270 = scmp.eq.s32.totalorder %s43, 3
      %p271 = por %p269, %p270
      %p272 = scmp.ne.s32.totalorder %s261, %s262
      %p273 = scmp.eq.s32.totalorder %s43, 0
      %p274 = por %p272, %p273
      %p275 = scmp.ne.s32.totalorder %s261, %s262
      %p276 = scmp.eq.s32.totalorder %s44, 3
      %p277 = por %p275, %p276
      %p279 = scmp.ne.s32.totalorder %s262, %s278
      %p280 = scmp.eq.s32.totalorder %s44, 0
      %p281 = por %p279, %p280
      %s282 = ssub.s32 %s46, %s53
      %p283 = scmp.eq.s32.totalorder %s282, 0
      %s285 = sadd.s32 %s284, 1
      %s286 = scalar_select %p283, %s284, %s285
      %p289 = pneg %p283
      %p290 = scmp.eq.s32.totalorder %s38, 3
      %p291 = por %p289, %p290
      %p292 = scmp.ne.s32.totalorder %s284, %s287
      %p293 = scmp.eq.s32.totalorder %s38, 0
      %p294 = por %p292, %p293
      %p295 = scmp.ne.s32.totalorder %s284, %s287
      %p296 = scmp.eq.s32.totalorder %s43, 3
      %p297 = por %p295, %p296
      %p298 = scmp.ne.s32.totalorder %s287, %s288
      %p299 = scmp.eq.s32.totalorder %s43, 0
      %p300 = por %p298, %p299
      %p301 = scmp.ne.s32.totalorder %s287, %s288
      %p302 = scmp.eq.s32.totalorder %s44, 3
      %p303 = por %p301, %p302
      %p305 = scmp.ne.s32.totalorder %s288, %s304
      %p306 = scmp.eq.s32.totalorder %s44, 0
      %p307 = por %p305, %p306
      %s308 = ssub.s32 %s46, %s53
      %p309 = scmp.eq.s32.totalorder %s308, 0
      %s311 = sadd.s32 %s310, 1
      %s312 = scalar_select %p309, %s310, %s311
      %p315 = pneg %p309
      %p316 = scmp.eq.s32.totalorder %s38, 3
      %p317 = por %p315, %p316
      %p318 = scmp.ne.s32.totalorder %s310, %s313
      %p319 = scmp.eq.s32.totalorder %s38, 0
      %p320 = por %p318, %p319
      %p321 = scmp.ne.s32.totalorder %s310, %s313
      %p322 = scmp.eq.s32.totalorder %s43, 3
      %p323 = por %p321, %p322
      %p324 = scmp.ne.s32.totalorder %s313, %s314
      %p325 = scmp.eq.s32.totalorder %s43, 0
      %p326 = por %p324, %p325
      %p327 = scmp.ne.s32.totalorder %s313, %s314
      %p328 = scmp.eq.s32.totalorder %s44, 3
      %p329 = por %p327, %p328
      %p331 = scmp.ne.s32.totalorder %s314, %s330
      %p332 = scmp.eq.s32.totalorder %s44, 0
      %p333 = por %p331, %p332
      %s334 = ssub.s32 %s46, %s53
      %p335 = scmp.eq.s32.totalorder %s334, 0
      %s337 = sadd.s32 %s336, 1
      %s338 = scalar_select %p335, %s336, %s337
      %p341 = pneg %p335
      %p342 = scmp.eq.s32.totalorder %s38, 3
      %p343 = por %p341, %p342
      %p344 = scmp.ne.s32.totalorder %s336, %s339
      %p345 = scmp.eq.s32.totalorder %s38, 0
      %p346 = por %p344, %p345
      %p347 = scmp.ne.s32.totalorder %s336, %s339
      %p348 = scmp.eq.s32.totalorder %s43, 3
      %p349 = por %p347, %p348
      %p350 = scmp.ne.s32.totalorder %s339, %s340
      %p351 = scmp.eq.s32.totalorder %s43, 0
      %p352 = por %p350, %p351
      %p353 = scmp.ne.s32.totalorder %s339, %s340
      %p354 = scmp.eq.s32.totalorder %s44, 3
      %p355 = por %p353, %p354
      %p357 = scmp.ne.s32.totalorder %s340, %s356
      %p358 = scmp.eq.s32.totalorder %s44, 0
      %p359 = por %p357, %p358
      %s360 = ssub.s32 %s46, %s53
      %p361 = scmp.eq.s32.totalorder %s360, 0
      %s363 = sadd.s32 %s362, 1
      %s364 = scalar_select %p361, %s362, %s363
      %p367 = pneg %p361
      %p368 = scmp.eq.s32.totalorder %s38, 3
      %p369 = por %p367, %p368
      %p370 = scmp.ne.s32.totalorder %s362, %s365
      %p371 = scmp.eq.s32.totalorder %s38, 0
      %p372 = por %p370, %p371
      %p373 = scmp.ne.s32.totalorder %s362, %s365
      %p374 = scmp.eq.s32.totalorder %s43, 3
      %p375 = por %p373, %p374
      %p376 = scmp.ne.s32.totalorder %s365, %s366
      %p377 = scmp.eq.s32.totalorder %s43, 0
      %p378 = por %p376, %p377
      %p379 = scmp.ne.s32.totalorder %s365, %s366
      %p380 = scmp.eq.s32.totalorder %s44, 3
      %p381 = por %p379, %p380
      %p383 = scmp.ne.s32.totalorder %s366, %s382
      %p384 = scmp.eq.s32.totalorder %s44, 0
      %p385 = por %p383, %p384
      %s386 = ssub.s32 %s46, %s53
      %p387 = scmp.eq.s32.totalorder %s386, 0
      %s389 = sadd.s32 %s388, 1
      %s390 = scalar_select %p387, %s388, %s389
      %p393 = pneg %p387
      %p394 = scmp.eq.s32.totalorder %s38, 3
      %p395 = por %p393, %p394
      %p396 = scmp.ne.s32.totalorder %s388, %s391
      %p397 = scmp.eq.s32.totalorder %s38, 0
      %p398 = por %p396, %p397
      %p399 = scmp.ne.s32.totalorder %s388, %s391
      %p400 = scmp.eq.s32.totalorder %s43, 3
      %p401 = por %p399, %p400
      %p402 = scmp.ne.s32.totalorder %s391, %s392
      %p403 = scmp.eq.s32.totalorder %s43, 0
      %p404 = por %p402, %p403
      %p405 = scmp.ne.s32.totalorder %s391, %s392
      %p406 = scmp.eq.s32.totalorder %s44, 3
      %p407 = por %p405, %p406
      %p409 = scmp.ne.s32.totalorder %s392, %s408
      %p410 = scmp.eq.s32.totalorder %s44, 0
      %p411 = por %p409, %p410
      %s412 = ssub.s32 %s46, %s53
      %p413 = scmp.eq.s32.totalorder %s412, 0
      %s415 = sadd.s32 %s414, 1
      %s416 = scalar_select %p413, %s414, %s415
      %p419 = pneg %p413
      %p420 = scmp.eq.s32.totalorder %s38, 3
      %p421 = por %p419, %p420
      %p422 = scmp.ne.s32.totalorder %s414, %s417
      %p423 = scmp.eq.s32.totalorder %s38, 0
      %p424 = por %p422, %p423
      %p425 = scmp.ne.s32.totalorder %s414, %s417
      %p426 = scmp.eq.s32.totalorder %s43, 3
      %p427 = por %p425, %p426
      %p428 = scmp.ne.s32.totalorder %s417, %s418
      %p429 = scmp.eq.s32.totalorder %s43, 0
      %p430 = por %p428, %p429
      %p431 = scmp.ne.s32.totalorder %s417, %s418
      %p432 = scmp.eq.s32.totalorder %s44, 3
      %p433 = por %p431, %p432
      %p435 = scmp.ne.s32.totalorder %s418, %s434
      %p436 = scmp.eq.s32.totalorder %s44, 0
      %p437 = por %p435, %p436
      %s438 = ssub.s32 %s46, %s53
      %p439 = scmp.eq.s32.totalorder %s438, 0
      %s441 = sadd.s32 %s440, 1
      %s442 = scalar_select %p439, %s440, %s441
      %p445 = pneg %p439
      %p446 = scmp.eq.s32.totalorder %s38, 3
      %p447 = por %p445, %p446
      %p448 = scmp.ne.s32.totalorder %s440, %s443
      %p449 = scmp.eq.s32.totalorder %s38, 0
      %p450 = por %p448, %p449
      %p451 = scmp.ne.s32.totalorder %s440, %s443
      %p452 = scmp.eq.s32.totalorder %s43, 3
      %p453 = por %p451, %p452
      %p454 = scmp.ne.s32.totalorder %s443, %s444
      %p455 = scmp.eq.s32.totalorder %s43, 0
      %p456 = por %p454, %p455
      %p457 = scmp.ne.s32.totalorder %s443, %s444
      %p458 = scmp.eq.s32.totalorder %s44, 3
      %p459 = por %p457, %p458
      %p461 = scmp.ne.s32.totalorder %s444, %s460
      %p462 = scmp.eq.s32.totalorder %s44, 0
      %p463 = por %p461, %p462
      %s464 = ssub.s32 %s46, %s53
      %p465 = scmp.eq.s32.totalorder %s464, 0
      %s467 = sadd.s32 %s466, 1
      %s468 = scalar_select %p465, %s466, %s467
      %p471 = pneg %p465
      %p472 = scmp.eq.s32.totalorder %s38, 3
      %p473 = por %p471, %p472
      %p474 = scmp.ne.s32.totalorder %s466, %s469
      %p475 = scmp.eq.s32.totalorder %s38, 0
      %p476 = por %p474, %p475
      %p477 = scmp.ne.s32.totalorder %s466, %s469
      %p478 = scmp.eq.s32.totalorder %s43, 3
      %p479 = por %p477, %p478
      %p480 = scmp.ne.s32.totalorder %s469, %s470
      %p481 = scmp.eq.s32.totalorder %s43, 0
      %p482 = por %p480, %p481
      %p483 = scmp.ne.s32.totalorder %s469, %s470
      %p484 = scmp.eq.s32.totalorder %s44, 3
      %p485 = por %p483, %p484
      %p487 = scmp.ne.s32.totalorder %s470, %s486
      %p488 = scmp.eq.s32.totalorder %s44, 0
      %p489 = por %p487, %p488
      %s490 = ssub.s32 %s46, %s53
      %p491 = scmp.eq.s32.totalorder %s490, 0
      %s493 = sadd.s32 %s492, 1
      %s494 = scalar_select %p491, %s492, %s493
      %p497 = pneg %p491
      %p498 = scmp.eq.s32.totalorder %s38, 3
      %p499 = por %p497, %p498
      %p500 = scmp.ne.s32.totalorder %s492, %s495
      %p501 = scmp.eq.s32.totalorder %s38, 0
      %p502 = por %p500, %p501
      %p503 = scmp.ne.s32.totalorder %s492, %s495
      %p504 = scmp.eq.s32.totalorder %s43, 3
      %p505 = por %p503, %p504
      %p506 = scmp.ne.s32.totalorder %s495, %s496
      %p507 = scmp.eq.s32.totalorder %s43, 0
      %p508 = por %p506, %p507
      %p509 = scmp.ne.s32.totalorder %s495, %s496
      %p510 = scmp.eq.s32.totalorder %s44, 3
      %p511 = por %p509, %p510
      %p513 = scmp.ne.s32.totalorder %s496, %s512
      %p514 = scmp.eq.s32.totalorder %s44, 0
      %p515 = por %p513, %p514
      %s516 = ssub.s32 %s46, %s53
      %p517 = scmp.eq.s32.totalorder %s516, 0
      %s519 = sadd.s32 %s518, 1
      %s520 = scalar_select %p517, %s518, %s519
      %p523 = pneg %p517
      %p524 = scmp.eq.s32.totalorder %s38, 3
      %p525 = por %p523, %p524
      %p526 = scmp.ne.s32.totalorder %s518, %s521
      %p527 = scmp.eq.s32.totalorder %s38, 0
      %p528 = por %p526, %p527
      %p529 = scmp.ne.s32.totalorder %s518, %s521
      %p530 = scmp.eq.s32.totalorder %s43, 3
      %p531 = por %p529, %p530
      %p532 = scmp.ne.s32.totalorder %s521, %s522
      %p533 = scmp.eq.s32.totalorder %s43, 0
      %p534 = por %p532, %p533
      %p535 = scmp.ne.s32.totalorder %s521, %s522
      %p536 = scmp.eq.s32.totalorder %s44, 3
      %p537 = por %p535, %p536
      %p539 = scmp.ne.s32.totalorder %s522, %s538
      %p540 = scmp.eq.s32.totalorder %s44, 0
      %p541 = por %p539, %p540
      %s542 = ssub.s32 %s46, %s53
      %p543 = scmp.eq.s32.totalorder %s542, 0
      %s545 = sadd.s32 %s544, 1
      %s546 = scalar_select %p543, %s544, %s545
      %p549 = pneg %p543
      %p550 = scmp.eq.s32.totalorder %s38, 3
      %p551 = por %p549, %p550
      %p552 = scmp.ne.s32.totalorder %s544, %s547
      %p553 = scmp.eq.s32.totalorder %s38, 0
      %p554 = por %p552, %p553
      %p555 = scmp.ne.s32.totalorder %s544, %s547
      %p556 = scmp.eq.s32.totalorder %s43, 3
      %p557 = por %p555, %p556
      %p558 = scmp.ne.s32.totalorder %s547, %s548
      %p559 = scmp.eq.s32.totalorder %s43, 0
      %p560 = por %p558, %p559
      %p561 = scmp.ne.s32.totalorder %s547, %s548
      %p562 = scmp.eq.s32.totalorder %s44, 3
      %p563 = por %p561, %p562
      %p565 = scmp.ne.s32.totalorder %s548, %s564
      %p566 = scmp.eq.s32.totalorder %s44, 0
      %p567 = por %p565, %p566
      %s568 = ssub.s32 %s46, %s53
      %p569 = scmp.eq.s32.totalorder %s568, 0
      %s571 = sadd.s32 %s570, 1
      %s572 = scalar_select %p569, %s570, %s571
      %p575 = pneg %p569
      %p576 = scmp.eq.s32.totalorder %s38, 3
      %p577 = por %p575, %p576
      %p578 = scmp.ne.s32.totalorder %s570, %s573
      %p579 = scmp.eq.s32.totalorder %s38, 0
      %p580 = por %p578, %p579
      %p581 = scmp.ne.s32.totalorder %s570, %s573
      %p582 = scmp.eq.s32.totalorder %s43, 3
      %p583 = por %p581, %p582
      %p584 = scmp.ne.s32.totalorder %s573, %s574
      %p585 = scmp.eq.s32.totalorder %s43, 0
      %p586 = por %p584, %p585
      %p587 = scmp.ne.s32.totalorder %s573, %s574
      %p588 = scmp.eq.s32.totalorder %s44, 3
      %p589 = por %p587, %p588
      %p591 = scmp.ne.s32.totalorder %s574, %s590
      %p592 = scmp.eq.s32.totalorder %s44, 0
      %p593 = por %p591, %p592
      %s594 = ssub.s32 %s46, %s53
      %p595 = scmp.eq.s32.totalorder %s594, 0
      %s597 = sadd.s32 %s596, 1
      %s598 = scalar_select %p595, %s596, %s597
      %p601 = pneg %p595
      %p602 = scmp.eq.s32.totalorder %s38, 3
      %p603 = por %p601, %p602
      %p604 = scmp.ne.s32.totalorder %s596, %s599
      %p605 = scmp.eq.s32.totalorder %s38, 0
      %p606 = por %p604, %p605
      %p607 = scmp.ne.s32.totalorder %s596, %s599
      %p608 = scmp.eq.s32.totalorder %s43, 3
      %p609 = por %p607, %p608
      %p610 = scmp.ne.s32.totalorder %s599, %s600
      %p611 = scmp.eq.s32.totalorder %s43, 0
      %p612 = por %p610, %p611
      %p613 = scmp.ne.s32.totalorder %s599, %s600
      %p614 = scmp.eq.s32.totalorder %s44, 3
      %p615 = por %p613, %p614
      %p617 = scmp.ne.s32.totalorder %s600, %s616
      %p618 = scmp.eq.s32.totalorder %s44, 0
      %p619 = por %p617, %p618
      %s620 = ssub.s32 %s46, %s53
      %p621 = scmp.eq.s32.totalorder %s620, 0
      %s623 = sadd.s32 %s622, 1
      %s624 = scalar_select %p621, %s622, %s623
      %p627 = pneg %p621
      %p628 = scmp.eq.s32.totalorder %s38, 3
      %p629 = por %p627, %p628
      %p630 = scmp.ne.s32.totalorder %s622, %s625
      %p631 = scmp.eq.s32.totalorder %s38, 0
      %p632 = por %p630, %p631
      %p633 = scmp.ne.s32.totalorder %s622, %s625
      %p634 = scmp.eq.s32.totalorder %s43, 3
      %p635 = por %p633, %p634
      %p636 = scmp.ne.s32.totalorder %s625, %s626
      %p637 = scmp.eq.s32.totalorder %s43, 0
      %p638 = por %p636, %p637
      %p639 = scmp.ne.s32.totalorder %s625, %s626
      %p640 = scmp.eq.s32.totalorder %s44, 3
      %p641 = por %p639, %p640
      %p643 = scmp.ne.s32.totalorder %s626, %s642
      %p644 = scmp.eq.s32.totalorder %s44, 0
      %p645 = por %p643, %p644
      %s646 = ssub.s32 %s46, %s53
      %p647 = scmp.eq.s32.totalorder %s646, 0
      %s649 = sadd.s32 %s648, 1
      %s650 = scalar_select %p647, %s648, %s649
      %p653 = pneg %p647
      %p654 = scmp.eq.s32.totalorder %s38, 3
      %p655 = por %p653, %p654
      %p656 = scmp.ne.s32.totalorder %s648, %s651
      %p657 = scmp.eq.s32.totalorder %s38, 0
      %p658 = por %p656, %p657
      %p659 = scmp.ne.s32.totalorder %s648, %s651
      %p660 = scmp.eq.s32.totalorder %s43, 3
      %p661 = por %p659, %p660
      %p662 = scmp.ne.s32.totalorder %s651, %s652
      %p663 = scmp.eq.s32.totalorder %s43, 0
      %p664 = por %p662, %p663
      %p665 = scmp.ne.s32.totalorder %s651, %s652
      %p666 = scmp.eq.s32.totalorder %s44, 3
      %p667 = por %p665, %p666
      %p669 = scmp.ne.s32.totalorder %s652, %s668
      %p670 = scmp.eq.s32.totalorder %s44, 0
      %p671 = por %p669, %p670
      %s672 = ssub.s32 %s46, %s53
      %p673 = scmp.eq.s32.totalorder %s672, 0
      %s675 = sadd.s32 %s674, 1
      %s676 = scalar_select %p673, %s674, %s675
      %p679 = pneg %p673
      %p680 = scmp.eq.s32.totalorder %s38, 3
      %p681 = por %p679, %p680
      %p682 = scmp.ne.s32.totalorder %s674, %s677
      %p683 = scmp.eq.s32.totalorder %s38, 0
      %p684 = por %p682, %p683
      %p685 = scmp.ne.s32.totalorder %s674, %s677
      %p686 = scmp.eq.s32.totalorder %s43, 3
      %p687 = por %p685, %p686
      %p688 = scmp.ne.s32.totalorder %s677, %s678
      %p689 = scmp.eq.s32.totalorder %s43, 0
      %p690 = por %p688, %p689
      %p691 = scmp.ne.s32.totalorder %s677, %s678
      %p692 = scmp.eq.s32.totalorder %s44, 3
      %p693 = por %p691, %p692
      %p695 = scmp.ne.s32.totalorder %s678, %s694
      %p696 = scmp.eq.s32.totalorder %s44, 0
      %p697 = por %p695, %p696
      %s698 = ssub.s32 %s46, %s53
      %p699 = scmp.eq.s32.totalorder %s698, 0
      %s701 = sadd.s32 %s700, 1
      %s702 = scalar_select %p699, %s700, %s701
      %p705 = pneg %p699
      %p706 = scmp.eq.s32.totalorder %s38, 3
      %p707 = por %p705, %p706
      %p708 = scmp.ne.s32.totalorder %s700, %s703
      %p709 = scmp.eq.s32.totalorder %s38, 0
      %p710 = por %p708, %p709
      %p711 = scmp.ne.s32.totalorder %s700, %s703
      %p712 = scmp.eq.s32.totalorder %s43, 3
      %p713 = por %p711, %p712
      %p714 = scmp.ne.s32.totalorder %s703, %s704
      %p715 = scmp.eq.s32.totalorder %s43, 0
      %p716 = por %p714, %p715
      %p717 = scmp.ne.s32.totalorder %s703, %s704
      %p718 = scmp.eq.s32.totalorder %s44, 3
      %p719 = por %p717, %p718
      %p721 = scmp.ne.s32.totalorder %s704, %s720
      %p722 = scmp.eq.s32.totalorder %s44, 0
      %p723 = por %p721, %p722
      %s725 = sadd.s32 %s724, 1
      %p728 = scmp.eq.s32.totalorder %s38, 3
      %p729 = scmp.ne.s32.totalorder %s724, %s726
      %p730 = scmp.eq.s32.totalorder %s38, 0
      %p731 = por %p729, %p730
      %p732 = scmp.ne.s32.totalorder %s724, %s726
      %p733 = scmp.eq.s32.totalorder %s43, 3
      %p734 = por %p732, %p733
      %p735 = scmp.ne.s32.totalorder %s726, %s727
      %p736 = scmp.eq.s32.totalorder %s43, 0
      %p737 = por %p735, %p736
      %p738 = scmp.ne.s32.totalorder %s726, %s727
      %p739 = scmp.eq.s32.totalorder %s44, 3
      %p740 = por %p738, %p739
      %p742 = scmp.ne.s32.totalorder %s727, %s741
      %p743 = scmp.eq.s32.totalorder %s44, 0
      %p744 = por %p742, %p743
      %s746 = sadd.s32 %s745, 1
      %p749 = scmp.eq.s32.totalorder %s38, 3
      %p750 = scmp.ne.s32.totalorder %s745, %s747
      %p751 = scmp.eq.s32.totalorder %s38, 0
      %p752 = por %p750, %p751
      %p753 = scmp.ne.s32.totalorder %s745, %s747
      %p754 = scmp.eq.s32.totalorder %s43, 3
      %p755 = por %p753, %p754
      %p756 = scmp.ne.s32.totalorder %s747, %s748
      %p757 = scmp.eq.s32.totalorder %s43, 0
      %p758 = por %p756, %p757
      %p759 = scmp.ne.s32.totalorder %s747, %s748
      %p760 = scmp.eq.s32.totalorder %s44, 3
      %p761 = por %p759, %p760
      %p763 = scmp.ne.s32.totalorder %s748, %s762
      %p764 = scmp.eq.s32.totalorder %s44, 0
      %p765 = por %p763, %p764
      %s766 = ssub.s32 %s45, %s57
      %p767 = scmp.eq.s32.totalorder %s766, 0
      %s769 = sadd.s32 %s768, 1
      %s770 = scalar_select %p767, %s768, %s769
      %p773 = pneg %p767
      %p774 = scmp.eq.s32.totalorder %s38, 3
      %p775 = por %p773, %p774
      %p776 = scmp.ne.s32.totalorder %s768, %s771
      %p777 = scmp.eq.s32.totalorder %s38, 0
      %p778 = por %p776, %p777
      %p779 = scmp.ne.s32.totalorder %s768, %s771
      %p780 = scmp.eq.s32.totalorder %s43, 3
      %p781 = por %p779, %p780
      %p782 = scmp.ne.s32.totalorder %s771, %s772
      %p783 = scmp.eq.s32.totalorder %s43, 0
      %p784 = por %p782, %p783
      %p785 = scmp.ne.s32.totalorder %s771, %s772
      %p786 = scmp.eq.s32.totalorder %s44, 3
      %p787 = por %p785, %p786
      %p789 = scmp.ne.s32.totalorder %s772, %s788
      %p790 = scmp.eq.s32.totalorder %s44, 0
      %p791 = por %p789, %p790
      %p792 = scmp.le.s32.totalorder 1, %s38
      %p793 = scmp.lt.s32.totalorder %s38, 5
      %p794 = pnand %p792, %p793
      %p795 = pneg %p794
      // Predicated region
      $region9: #{rrs_forward.3} parent=5 // pred_check
        _
      $region10: #{rrs_forward.3} parent=5 // pred_check_branch
        %797 = sbr.rel (%p794) target = $region12
      $region11: #{rrs_forward.3} parent=5 // pred_region
        %s798 = ssub.s32 %s38, 1
        // Predicated region
        $region13: #{rrs_forward.3} parent=11 // pred_check
          %p799 = pneg %p175
        $region14: #{rrs_forward.3} parent=11 // pred_check_branch
          %801 = sbr.rel (%p799) target = $region16
        $region15: #{rrs_forward.3} parent=11 // pred_region
          _
        $region16: #{rrs_forward.3} parent=11 // pred_fallthru
          _
        // Predicated region
        $region17: #{rrs_forward.3} parent=11 // pred_check
          %p802 = pneg %p196
        $region18: #{rrs_forward.3} parent=11 // pred_check_branch
          %804 = sbr.rel (%p802) target = $region20
        $region19: #{rrs_forward.3} parent=11 // pred_region
          _
        $region20: #{rrs_forward.3} parent=11 // pred_fallthru
          _
        // Predicated region
        $region21: #{rrs_forward.3} parent=11 // pred_check
          %p805 = pneg %p737
        $region22: #{rrs_forward.3} parent=11 // pred_check_branch
          %807 = sbr.rel (%p805) target = $region24
        $region23: #{rrs_forward.3} parent=11 // pred_region
          _
        $region24: #{rrs_forward.3} parent=11 // pred_fallthru
          _
        // Predicated region
        $region25: #{rrs_forward.3} parent=11 // pred_check
          %p808 = pneg %p758
        $region26: #{rrs_forward.3} parent=11 // pred_check_branch
          %810 = sbr.rel (%p808) target = $region28
        $region27: #{rrs_forward.3} parent=11 // pred_region
          %s812 = ssub.s32 16, 16
          %813 = vsyncadd [#allocation4], %s812
          %s815 = sshll.u32 [#allocation3], 4
          %s816 = int_to_ptr.vmem [resolvable:$true] %s815
          %818 = dma.hbm_to_vmem [thread:$0]  %s27, 16, %s816, [#allocation4]
        $region28: #{rrs_forward.3} parent=11 // pred_fallthru
          _
      $region12: #{rrs_forward.3} parent=5 // pred_fallthru
        _
      %p819 = scmp.lt.s32.totalorder %s38, 4
      // Predicated region
      $region29: #{rrs_forward.3} parent=5 // pred_check
        %p820 = pneg %p819
      $region30: #{rrs_forward.3} parent=5 // pred_check_branch
        %822 = sbr.rel (%p820) target = $region32
      $region31: #{rrs_forward.3} parent=5 // pred_region
        // Predicated region
        $region33: #{rrs_forward.3} parent=31 // pred_check
          %p823 = pneg %p70
        $region34: #{rrs_forward.3} parent=31 // pred_check_branch
          %825 = sbr.rel (%p823) target = $region36
        $region35: #{rrs_forward.3} parent=31 // pred_region
          %p826 = scmp.lt.s32.totalorder %s45, 1
          %s827 = scalar_select %p826, %s45, 1
          %s828 = smul.addr %s827, 8
          %s829 = scalar_lea.vmem %s0, %s828
        $region36: #{rrs_forward.3} parent=31 // pred_fallthru
          _
        // Predicated region
        $region37: #{rrs_forward.3} parent=31 // pred_check
          %p830 = pneg %p96
        $region38: #{rrs_forward.3} parent=31 // pred_check_branch
          %832 = sbr.rel (%p830) target = $region40
        $region39: #{rrs_forward.3} parent=31 // pred_region
          %p833 = scmp.lt.s32.totalorder %s45, 1
          %s834 = scalar_select %p833, %s45, 1
          %s835 = smul.addr %s834, 8
          %s836 = scalar_lea.vmem %s1, %s835
        $region40: #{rrs_forward.3} parent=31 // pred_fallthru
          _
        // Predicated region
        $region41: #{rrs_forward.3} parent=31 // pred_check
          %p837 = pneg %p122
        $region42: #{rrs_forward.3} parent=31 // pred_check_branch
          %839 = sbr.rel (%p837) target = $region44
        $region43: #{rrs_forward.3} parent=31 // pred_region
          %p840 = scmp.lt.s32.totalorder %s45, 1
          %s841 = scalar_select %p840, %s45, 1
          %s842 = smul.addr %s841, 8
          %s843 = scalar_lea.vmem %s2, %s842
        $region44: #{rrs_forward.3} parent=31 // pred_fallthru
          _
        // Predicated region
        $region45: #{rrs_forward.3} parent=31 // pred_check
          %p844 = pneg %p148
        $region46: #{rrs_forward.3} parent=31 // pred_check_branch
          %846 = sbr.rel (%p844) target = $region48
        $region47: #{rrs_forward.3} parent=31 // pred_region
          %p847 = scmp.lt.s32.totalorder %s45, 1
          %s848 = scalar_select %p847, %s45, 1
          %s849 = scalar_lea.vmem %s3, %s848
        $region48: #{rrs_forward.3} parent=31 // pred_fallthru
          _
        // Predicated region
        $region49: #{rrs_forward.3} parent=31 // pred_check
          %p850 = pneg %p216
        $region50: #{rrs_forward.3} parent=31 // pred_check_branch
          %852 = sbr.rel (%p850) target = $region52
        $region51: #{rrs_forward.3} parent=31 // pred_region
          %p853 = scmp.lt.s32.totalorder %s46, 1
          %s854 = scalar_select %p853, %s46, 1
          %s855 = smul.addr %s854, 4
          %s856 = smul.addr %s855, 8
          %s857 = scalar_lea.vmem %s6, %s856
        $region52: #{rrs_forward.3} parent=31 // pred_fallthru
          _
        // Predicated region
        $region53: #{rrs_forward.3} parent=31 // pred_check
          %p858 = pneg %p242
        $region54: #{rrs_forward.3} parent=31 // pred_check_branch
          %860 = sbr.rel (%p858) target = $region56
        $region55: #{rrs_forward.3} parent=31 // pred_region
          %p861 = scmp.lt.s32.totalorder %s46, 1
          %s862 = scalar_select %p861, %s46, 1
          %s863 = scalar_lea.vmem %s7, %s862
        $region56: #{rrs_forward.3} parent=31 // pred_fallthru
          _
        // Predicated region
        $region57: #{rrs_forward.3} parent=31 // pred_check
          %p864 = pneg %p268
        $region58: #{rrs_forward.3} parent=31 // pred_check_branch
          %866 = sbr.rel (%p864) target = $region60
        $region59: #{rrs_forward.3} parent=31 // pred_region
          %p867 = scmp.lt.s32.totalorder %s46, 1
          %s868 = scalar_select %p867, %s46, 1
          %s869 = smul.addr %s868, 4
          %s870 = smul.addr %s869, 8
          %s871 = scalar_lea.vmem %s8, %s870
        $region60: #{rrs_forward.3} parent=31 // pred_fallthru
          _
        // Predicated region
        $region61: #{rrs_forward.3} parent=31 // pred_check
          %p872 = pneg %p294
        $region62: #{rrs_forward.3} parent=31 // pred_check_branch
          %874 = sbr.rel (%p872) target = $region64
        $region63: #{rrs_forward.3} parent=31 // pred_region
          %p875 = scmp.lt.s32.totalorder %s46, 1
          %s876 = scalar_select %p875, %s46, 1
          %s877 = scalar_lea.vmem %s9, %s876
        $region64: #{rrs_forward.3} parent=31 // pred_fallthru
          _
        // Predicated region
        $region65: #{rrs_forward.3} parent=31 // pred_check
          %p878 = pneg %p320
        $region66: #{rrs_forward.3} parent=31 // pred_check_branch
          %880 = sbr.rel (%p878) target = $region68
        $region67: #{rrs_forward.3} parent=31 // pred_region
          %p881 = scmp.lt.s32.totalorder %s46, 1
          %s882 = scalar_select %p881, %s46, 1
          %s883 = scalar_lea.vmem %s10, %s882
        $region68: #{rrs_forward.3} parent=31 // pred_fallthru
          _
        // Predicated region
        $region69: #{rrs_forward.3} parent=31 // pred_check
          %p884 = pneg %p346
        $region70: #{rrs_forward.3} parent=31 // pred_check_branch
          %886 = sbr.rel (%p884) target = $region72
        $region71: #{rrs_forward.3} parent=31 // pred_region
          %p887 = scmp.lt.s32.totalorder %s46, 1
          %s888 = scalar_select %p887, %s46, 1
          %s889 = scalar_lea.vmem %s11, %s888
        $region72: #{rrs_forward.3} parent=31 // pred_fallthru
          _
        // Predicated region
        $region73: #{rrs_forward.3} parent=31 // pred_check
          %p890 = pneg %p372
        $region74: #{rrs_forward.3} parent=31 // pred_check_branch
          %892 = sbr.rel (%p890) target = $region76
        $region75: #{rrs_forward.3} parent=31 // pred_region
          %p893 = scmp.lt.s32.totalorder %s46, 1
          %s894 = scalar_select %p893, %s46, 1
          %s895 = smul.addr %s894, 4
          %s896 = smul.addr %s895, 8
          %s897 = scalar_lea.vmem %s12, %s896
        $region76: #{rrs_forward.3} parent=31 // pred_fallthru
          _
        // Predicated region
        $region77: #{rrs_forward.3} parent=31 // pred_check
          %p898 = pneg %p398
        $region78: #{rrs_forward.3} parent=31 // pred_check_branch
          %900 = sbr.rel (%p898) target = $region80
        $region79: #{rrs_forward.3} parent=31 // pred_region
          %p901 = scmp.lt.s32.totalorder %s46, 1
          %s902 = scalar_select %p901, %s46, 1
          %s903 = scalar_lea.vmem %s13, %s902
        $region80: #{rrs_forward.3} parent=31 // pred_fallthru
          _
        // Predicated region
        $region81: #{rrs_forward.3} parent=31 // pred_check
          %p904 = pneg %p424
        $region82: #{rrs_forward.3} parent=31 // pred_check_branch
          %906 = sbr.rel (%p904) target = $region84
        $region83: #{rrs_forward.3} parent=31 // pred_region
          %p907 = scmp.lt.s32.totalorder %s46, 1
          %s908 = scalar_select %p907, %s46, 1
          %s909 = smul.addr %s908, 4
          %s910 = smul.addr %s909, 8
          %s911 = scalar_lea.vmem %s14, %s910
        $region84: #{rrs_forward.3} parent=31 // pred_fallthru
          _
        // Predicated region
        $region85: #{rrs_forward.3} parent=31 // pred_check
          %p912 = pneg %p450
        $region86: #{rrs_forward.3} parent=31 // pred_check_branch
          %914 = sbr.rel (%p912) target = $region88
        $region87: #{rrs_forward.3} parent=31 // pred_region
          %p915 = scmp.lt.s32.totalorder %s46, 1
          %s916 = scalar_select %p915, %s46, 1
          %s917 = scalar_lea.vmem %s15, %s916
        $region88: #{rrs_forward.3} parent=31 // pred_fallthru
          _
        // Predicated region
        $region89: #{rrs_forward.3} parent=31 // pred_check
          %p918 = pneg %p476
        $region90: #{rrs_forward.3} parent=31 // pred_check_branch
          %920 = sbr.rel (%p918) target = $region92
        $region91: #{rrs_forward.3} parent=31 // pred_region
          %p921 = scmp.lt.s32.totalorder %s46, 1
          %s922 = scalar_select %p921, %s46, 1
          %s923 = smul.addr %s922, 4
          %s924 = smul.addr %s923, 8
          %s925 = scalar_lea.vmem %s16, %s924
        $region92: #{rrs_forward.3} parent=31 // pred_fallthru
          _
        // Predicated region
        $region93: #{rrs_forward.3} parent=31 // pred_check
          %p926 = pneg %p502
        $region94: #{rrs_forward.3} parent=31 // pred_check_branch
          %928 = sbr.rel (%p926) target = $region96
        $region95: #{rrs_forward.3} parent=31 // pred_region
          %p929 = scmp.lt.s32.totalorder %s46, 1
          %s930 = scalar_select %p929, %s46, 1
          %s931 = scalar_lea.vmem %s17, %s930
        $region96: #{rrs_forward.3} parent=31 // pred_fallthru
          _
        // Predicated region
        $region97: #{rrs_forward.3} parent=31 // pred_check
          %p932 = pneg %p528
        $region98: #{rrs_forward.3} parent=31 // pred_check_branch
          %934 = sbr.rel (%p932) target = $region100
        $region99: #{rrs_forward.3} parent=31 // pred_region
          %p935 = scmp.lt.s32.totalorder %s46, 1
          %s936 = scalar_select %p935, %s46, 1
          %s937 = scalar_lea.vmem %s18, %s936
        $region100: #{rrs_forward.3} parent=31 // pred_fallthru
          _
        // Predicated region
        $region101: #{rrs_forward.3} parent=31 // pred_check
          %p938 = pneg %p554
        $region102: #{rrs_forward.3} parent=31 // pred_check_branch
          %940 = sbr.rel (%p938) target = $region104
        $region103: #{rrs_forward.3} parent=31 // pred_region
          %p941 = scmp.lt.s32.totalorder %s46, 1
          %s942 = scalar_select %p941, %s46, 1
          %s943 = scalar_lea.vmem %s19, %s942
        $region104: #{rrs_forward.3} parent=31 // pred_fallthru
          _
        // Predicated region
        $region105: #{rrs_forward.3} parent=31 // pred_check
          %p944 = pneg %p580
        $region106: #{rrs_forward.3} parent=31 // pred_check_branch
          %946 = sbr.rel (%p944) target = $region108
        $region107: #{rrs_forward.3} parent=31 // pred_region
          %p947 = scmp.lt.s32.totalorder %s46, 1
          %s948 = scalar_select %p947, %s46, 1
          %s949 = smul.addr %s948, 4
          %s950 = smul.addr %s949, 8
          %s951 = scalar_lea.vmem %s20, %s950
        $region108: #{rrs_forward.3} parent=31 // pred_fallthru
          _
        // Predicated region
        $region109: #{rrs_forward.3} parent=31 // pred_check
          %p952 = pneg %p606
        $region110: #{rrs_forward.3} parent=31 // pred_check_branch
          %954 = sbr.rel (%p952) target = $region112
        $region111: #{rrs_forward.3} parent=31 // pred_region
          %p955 = scmp.lt.s32.totalorder %s46, 1
          %s956 = scalar_select %p955, %s46, 1
          %s957 = scalar_lea.vmem %s21, %s956
        $region112: #{rrs_forward.3} parent=31 // pred_fallthru
          _
        // Predicated region
        $region113: #{rrs_forward.3} parent=31 // pred_check
          %p958 = pneg %p632
        $region114: #{rrs_forward.3} parent=31 // pred_check_branch
          %960 = sbr.rel (%p958) target = $region116
        $region115: #{rrs_forward.3} parent=31 // pred_region
          %p961 = scmp.lt.s32.totalorder %s46, 1
          %s962 = scalar_select %p961, %s46, 1
          %s963 = smul.addr %s962, 8
          %s964 = smul.addr %s963, 8
          %s965 = scalar_lea.vmem %s22, %s964
        $region116: #{rrs_forward.3} parent=31 // pred_fallthru
          _
        // Predicated region
        $region117: #{rrs_forward.3} parent=31 // pred_check
          %p966 = pneg %p658
        $region118: #{rrs_forward.3} parent=31 // pred_check_branch
          %968 = sbr.rel (%p966) target = $region120
        $region119: #{rrs_forward.3} parent=31 // pred_region
          %p969 = scmp.lt.s32.totalorder %s46, 1
          %s970 = scalar_select %p969, %s46, 1
          %s971 = scalar_lea.vmem %s23, %s970
        $region120: #{rrs_forward.3} parent=31 // pred_fallthru
          _
        // Predicated region
        $region121: #{rrs_forward.3} parent=31 // pred_check
          %p972 = pneg %p684
        $region122: #{rrs_forward.3} parent=31 // pred_check_branch
          %974 = sbr.rel (%p972) target = $region124
        $region123: #{rrs_forward.3} parent=31 // pred_region
          %p975 = scmp.lt.s32.totalorder %s46, 1
          %s976 = scalar_select %p975, %s46, 1
          %s977 = scalar_lea.vmem %s24, %s976
        $region124: #{rrs_forward.3} parent=31 // pred_fallthru
          _
        // Predicated region
        $region125: #{rrs_forward.3} parent=31 // pred_check
          %p978 = pneg %p710
        $region126: #{rrs_forward.3} parent=31 // pred_check_branch
          %980 = sbr.rel (%p978) target = $region128
        $region127: #{rrs_forward.3} parent=31 // pred_region
          %p981 = scmp.lt.s32.totalorder %s46, 1
          %s982 = scalar_select %p981, %s46, 1
          %s983 = scalar_lea.vmem %s25, %s982
        $region128: #{rrs_forward.3} parent=31 // pred_fallthru
          _
      $region32: #{rrs_forward.3} parent=5 // pred_fallthru
        _
      %p984 = scmp.le.s32.totalorder 1, %s38
      %p985 = scmp.lt.s32.totalorder %s38, 5
      %p986 = pnand %p984, %p985
      %p987 = pneg %p986
      // Predicated region
      $region129: #{rrs_forward.3} parent=5 // pred_check
        _
      $region130: #{rrs_forward.3} parent=5 // pred_check_branch
        %989 = sbr.rel (%p986) target = $region132
      $region131: #{rrs_forward.3} parent=5 // pred_region
        %s990 = ssub.s32 %s38, 1
        // Predicated region
        $region133: #{rrs_forward.3} parent=131 // pred_check
          %p991 = pneg %p758
        $region134: #{rrs_forward.3} parent=131 // pred_check_branch
          %993 = sbr.rel (%p991) target = $region136
        $region135: #{rrs_forward.3} parent=131 // pred_region
          %994 = dma.done [#allocation4], 16
        $region136: #{rrs_forward.3} parent=131 // pred_fallthru
          _
        %p995 = scmp.lt.s32.totalorder %s47, 1
        %s996 = scalar_select %p995, %s47, 1
        %s997 = smul.addr %s996, 8
        %s998 = scalar_lea.vmem %s0, %s997
        %p999 = pneg %p76
        %p1000 = pneg %p73
        %p1001 = scmp.lt.s32.totalorder %s47, 1
        %s1002 = scalar_select %p1001, %s47, 1
        %s1003 = smul.addr %s1002, 8
        %s1004 = scalar_lea.vmem %s1, %s1003
        %p1005 = pneg %p102
        %p1006 = pneg %p99
        %p1007 = scmp.lt.s32.totalorder %s47, 1
        %s1008 = scalar_select %p1007, %s47, 1
        %s1009 = smul.addr %s1008, 8
        %s1010 = scalar_lea.vmem %s2, %s1009
        %p1011 = pneg %p128
        %p1012 = pneg %p125
        %p1013 = scmp.lt.s32.totalorder %s47, 1
        %s1014 = scalar_select %p1013, %s47, 1
        %s1015 = scalar_lea.vmem %s3, %s1014
        %p1016 = pneg %p154
        %p1017 = pneg %p151
        %p1018 = pneg %p175
        %p1019 = pneg %p172
        %p1020 = pneg %p196
        %p1021 = pneg %p193
        %p1022 = scmp.lt.s32.totalorder %s48, 1
        %s1023 = scalar_select %p1022, %s48, 1
        %s1024 = smul.addr %s1023, 4
        %s1025 = smul.addr %s1024, 8
        %s1026 = scalar_lea.vmem %s6, %s1025
        %p1027 = pneg %p222
        %p1028 = pneg %p219
        %p1029 = scmp.lt.s32.totalorder %s48, 1
        %s1030 = scalar_select %p1029, %s48, 1
        %s1031 = scalar_lea.vmem %s7, %s1030
        %p1032 = pneg %p248
        %p1033 = pneg %p245
        %p1034 = scmp.lt.s32.totalorder %s48, 1
        %s1035 = scalar_select %p1034, %s48, 1
        %s1036 = smul.addr %s1035, 4
        %s1037 = smul.addr %s1036, 8
        %s1038 = scalar_lea.vmem %s8, %s1037
        %p1039 = pneg %p274
        %p1040 = pneg %p271
        %p1041 = scmp.lt.s32.totalorder %s48, 1
        %s1042 = scalar_select %p1041, %s48, 1
        %s1043 = scalar_lea.vmem %s9, %s1042
        %p1044 = pneg %p300
        %p1045 = pneg %p297
        %p1046 = scmp.lt.s32.totalorder %s48, 1
        %s1047 = scalar_select %p1046, %s48, 1
        %s1048 = scalar_lea.vmem %s10, %s1047
        %p1049 = pneg %p326
        %p1050 = pneg %p323
        %p1051 = scmp.lt.s32.totalorder %s48, 1
        %s1052 = scalar_select %p1051, %s48, 1
        %s1053 = scalar_lea.vmem %s11, %s1052
        %p1054 = pneg %p352
        %p1055 = pneg %p349
        %p1056 = scmp.lt.s32.totalorder %s48, 1
        %s1057 = scalar_select %p1056, %s48, 1
        %s1058 = smul.addr %s1057, 4
        %s1059 = smul.addr %s1058, 8
        %s1060 = scalar_lea.vmem %s12, %s1059
        %p1061 = pneg %p378
        %p1062 = pneg %p375
        %p1063 = scmp.lt.s32.totalorder %s48, 1
        %s1064 = scalar_select %p1063, %s48, 1
        %s1065 = scalar_lea.vmem %s13, %s1064
        %p1066 = pneg %p404
        %p1067 = pneg %p401
        %p1068 = scmp.lt.s32.totalorder %s48, 1
        %s1069 = scalar_select %p1068, %s48, 1
        %s1070 = smul.addr %s1069, 4
        %s1071 = smul.addr %s1070, 8
        %s1072 = scalar_lea.vmem %s14, %s1071
        %p1073 = pneg %p430
        %p1074 = pneg %p427
        %p1075 = scmp.lt.s32.totalorder %s48, 1
        %s1076 = scalar_select %p1075, %s48, 1
        %s1077 = scalar_lea.vmem %s15, %s1076
        %p1078 = pneg %p456
        %p1079 = pneg %p453
        %p1080 = scmp.lt.s32.totalorder %s48, 1
        %s1081 = scalar_select %p1080, %s48, 1
        %s1082 = smul.addr %s1081, 4
        %s1083 = smul.addr %s1082, 8
        %s1084 = scalar_lea.vmem %s16, %s1083
        %p1085 = pneg %p482
        %p1086 = pneg %p479
        %p1087 = scmp.lt.s32.totalorder %s48, 1
        %s1088 = scalar_select %p1087, %s48, 1
        %s1089 = scalar_lea.vmem %s17, %s1088
        %p1090 = pneg %p508
        %p1091 = pneg %p505
        %p1092 = scmp.lt.s32.totalorder %s48, 1
        %s1093 = scalar_select %p1092, %s48, 1
        %s1094 = scalar_lea.vmem %s18, %s1093
        %p1095 = pneg %p534
        %p1096 = pneg %p531
        %p1097 = scmp.lt.s32.totalorder %s48, 1
        %s1098 = scalar_select %p1097, %s48, 1
        %s1099 = scalar_lea.vmem %s19, %s1098
        %p1100 = pneg %p560
        %p1101 = pneg %p557
        %p1102 = scmp.lt.s32.totalorder %s48, 1
        %s1103 = scalar_select %p1102, %s48, 1
        %s1104 = smul.addr %s1103, 4
        %s1105 = smul.addr %s1104, 8
        %s1106 = scalar_lea.vmem %s20, %s1105
        %p1107 = pneg %p586
        %p1108 = pneg %p583
        %p1109 = scmp.lt.s32.totalorder %s48, 1
        %s1110 = scalar_select %p1109, %s48, 1
        %s1111 = scalar_lea.vmem %s21, %s1110
        %p1112 = pneg %p612
        %p1113 = pneg %p609
        %p1114 = scmp.lt.s32.totalorder %s48, 1
        %s1115 = scalar_select %p1114, %s48, 1
        %s1116 = smul.addr %s1115, 8
        %s1117 = smul.addr %s1116, 8
        %s1118 = scalar_lea.vmem %s22, %s1117
        %p1119 = pneg %p638
        %p1120 = pneg %p635
        %p1121 = scmp.lt.s32.totalorder %s48, 1
        %s1122 = scalar_select %p1121, %s48, 1
        %s1123 = scalar_lea.vmem %s23, %s1122
        %p1124 = pneg %p664
        %p1125 = pneg %p661
        %p1126 = scmp.lt.s32.totalorder %s48, 1
        %s1127 = scalar_select %p1126, %s48, 1
        %s1128 = scalar_lea.vmem %s24, %s1127
        %p1129 = pneg %p690
        %p1130 = pneg %p687
        %p1131 = scmp.lt.s32.totalorder %s48, 1
        %s1132 = scalar_select %p1131, %s48, 1
        %s1133 = scalar_lea.vmem %s25, %s1132
        %p1134 = pneg %p716
        %p1135 = pneg %p713
        %p1136 = pneg %p737
        %p1137 = pneg %p734
        %p1138 = pneg %p758
        %p1139 = pneg %p755
        %p1140 = pneg %p784
        %p1141 = pneg %p781
        %s1142 = sand.u32 %s771, 1
        %s1143 = scalar_lea.sflag [#allocation5], %s1142
        %s1144 = sand.u32 %s771, 1
        %s1145 = smul.addr %s1144, 8
        %s1146 = scalar_lea.vmem [#allocation6], %s1145
        %p1147 = scmp.lt.s32.totalorder %s47, 1
        %s1148 = scalar_select %p1147, %s47, 1
        %s1149 = smul.addr %s1148, 8
        %s1150 = scalar_lea.vmem %s0, %s1149
        %p1151 = scmp.lt.s32.totalorder %s47, 1
        %s1152 = scalar_select %p1151, %s47, 1
        %s1153 = smul.addr %s1152, 8
        %s1154 = scalar_lea.vmem %s1, %s1153
        %p1155 = scmp.lt.s32.totalorder %s47, 1
        %s1156 = scalar_select %p1155, %s47, 1
        %s1157 = smul.addr %s1156, 8
        %s1158 = scalar_lea.vmem %s2, %s1157
        %p1159 = scmp.lt.s32.totalorder %s47, 1
        %s1160 = scalar_select %p1159, %s47, 1
        %s1161 = scalar_lea.vmem %s3, %s1160
        %p1162 = scmp.lt.s32.totalorder %s48, 1
        %s1163 = scalar_select %p1162, %s48, 1
        %s1164 = smul.addr %s1163, 4
        %s1165 = smul.addr %s1164, 8
        %s1166 = scalar_lea.vmem %s6, %s1165
        %p1167 = scmp.lt.s32.totalorder %s48, 1
        %s1168 = scalar_select %p1167, %s48, 1
        %s1169 = scalar_lea.vmem %s7, %s1168
        %p1170 = scmp.lt.s32.totalorder %s48, 1
        %s1171 = scalar_select %p1170, %s48, 1
        %s1172 = smul.addr %s1171, 4
        %s1173 = smul.addr %s1172, 8
        %s1174 = scalar_lea.vmem %s8, %s1173
        %p1175 = scmp.lt.s32.totalorder %s48, 1
        %s1176 = scalar_select %p1175, %s48, 1
        %s1177 = scalar_lea.vmem %s9, %s1176
        %p1178 = scmp.lt.s32.totalorder %s48, 1
        %s1179 = scalar_select %p1178, %s48, 1
        %s1180 = scalar_lea.vmem %s10, %s1179
        %p1181 = scmp.lt.s32.totalorder %s48, 1
        %s1182 = scalar_select %p1181, %s48, 1
        %s1183 = scalar_lea.vmem %s11, %s1182
        %p1184 = scmp.lt.s32.totalorder %s48, 1
        %s1185 = scalar_select %p1184, %s48, 1
        %s1186 = smul.addr %s1185, 4
        %s1187 = smul.addr %s1186, 8
        %s1188 = scalar_lea.vmem %s12, %s1187
        %p1189 = scmp.lt.s32.totalorder %s48, 1
        %s1190 = scalar_select %p1189, %s48, 1
        %s1191 = scalar_lea.vmem %s13, %s1190
        %p1192 = scmp.lt.s32.totalorder %s48, 1
        %s1193 = scalar_select %p1192, %s48, 1
        %s1194 = smul.addr %s1193, 4
        %s1195 = smul.addr %s1194, 8
        %s1196 = scalar_lea.vmem %s14, %s1195
        %p1197 = scmp.lt.s32.totalorder %s48, 1
        %s1198 = scalar_select %p1197, %s48, 1
        %s1199 = scalar_lea.vmem %s15, %s1198
        %p1200 = scmp.lt.s32.totalorder %s48, 1
        %s1201 = scalar_select %p1200, %s48, 1
        %s1202 = smul.addr %s1201, 4
        %s1203 = smul.addr %s1202, 8
        %s1204 = scalar_lea.vmem %s16, %s1203
        %p1205 = scmp.lt.s32.totalorder %s48, 1
        %s1206 = scalar_select %p1205, %s48, 1
        %s1207 = scalar_lea.vmem %s17, %s1206
        %p1208 = scmp.lt.s32.totalorder %s48, 1
        %s1209 = scalar_select %p1208, %s48, 1
        %s1210 = scalar_lea.vmem %s18, %s1209
        %p1211 = scmp.lt.s32.totalorder %s48, 1
        %s1212 = scalar_select %p1211, %s48, 1
        %s1213 = scalar_lea.vmem %s19, %s1212
        %p1214 = scmp.lt.s32.totalorder %s48, 1
        %s1215 = scalar_select %p1214, %s48, 1
        %s1216 = smul.addr %s1215, 4
        %s1217 = smul.addr %s1216, 8
        %s1218 = scalar_lea.vmem %s20, %s1217
        %p1219 = scmp.lt.s32.totalorder %s48, 1
        %s1220 = scalar_select %p1219, %s48, 1
        %s1221 = scalar_lea.vmem %s21, %s1220
        %p1222 = scmp.lt.s32.totalorder %s48, 1
        %s1223 = scalar_select %p1222, %s48, 1
        %s1224 = smul.addr %s1223, 8
        %s1225 = smul.addr %s1224, 8
        %s1226 = scalar_lea.vmem %s22, %s1225
        %p1227 = scmp.lt.s32.totalorder %s48, 1
        %s1228 = scalar_select %p1227, %s48, 1
        %s1229 = scalar_lea.vmem %s23, %s1228
        %p1230 = scmp.lt.s32.totalorder %s48, 1
        %s1231 = scalar_select %p1230, %s48, 1
        %s1232 = scalar_lea.vmem %s24, %s1231
        %p1233 = scmp.lt.s32.totalorder %s48, 1
        %s1234 = scalar_select %p1233, %s48, 1
        %s1235 = scalar_lea.vmem %s25, %s1234
        %p1237 = scmp.eq.s32.totalorder %s48, 0
        // Predicated region
        $region137: #{rrs_forward.3} parent=131 // pred_check
          %p1238 = pneg %p1237
        $region138: #{rrs_forward.3} parent=131 // pred_check_branch
          %1240 = sbr.rel (%p1238) target = $region140
        $region139: #{rrs_forward.3} parent=131 // pred_region
          %v1241 = vld [vmem:[%s1150] sm:$0xff]
          %v1242 = vld [vmem:[%s4] sm:$0x1]
          %v1243 = vld [vmem:[%s5] sm:$0x1]
          %vm1244 = vcmask 261120
          %v1245 = vsel %vm1244, %v1241, 0.0
          %1246 = vadd.xlane.f32.xlu0 %v1245
          %v1247 = vpop.xlane.xlu0 %1246
          %v1248 = vrcp.pop 32.0
          %v1249 = vmul.f32 %v1247, %v1248
          %v1250 = vsub.f32 %v1241, %v1249
          %v1251 = vmul.f32 %v1250, %v1250
          %v1252 = vsel %vm1244, %v1251, 0.0
          %1253 = vadd.xlane.f32.xlu0 %v1252
          %v1254 = vpop.xlane.xlu0 %1253
          %v1255 = vmul.f32 %v1254, %v1248
          %v1256 = vadd.f32 %v1255, 1e-12
          %v1257 = vrsqrt.pop %v1256
          %v1258 = vmul.f32 %v1250, %v1257
          %v1260 = vlaneseq
          %v1261 = vshrl.u32 %v1260, 7
          %v1262 = vsub.s32 0, %v1261
          %v1263 = vrot.slane %v1242, %v1262
          %v1265 = vmul.f32 %v1258, %v1263
          %v1267 = vlaneseq
          %v1268 = vshrl.u32 %v1267, 7
          %v1269 = vsub.s32 0, %v1268
          %v1270 = vrot.slane %v1243, %v1269
          %v1272 = vadd.f32 %v1265, %v1270
          %1273 = vst.msk [vmem:[#allocation2] sm:$0xff] %vm1244, %v1272
        $region140: #{rrs_forward.3} parent=131 // pred_fallthru
          _
        %v1274 = vld [vmem:[#allocation2] sm:$0xff]
        %v1275 = vld [vmem:[%s1154] sm:$0xff]
        %v1276 = vld [vmem:[%s1166] sm:$0xff]
        %v1277 = vld [vmem:[%s1166 + $0x8] sm:$0xff]
        %v1278 = vld [vmem:[%s1166 + $0x10] sm:$0xff]
        %v1279 = vld [vmem:[%s1166 + $0x18] sm:$0xff]
        %v1280 = vpack.c.bf16 %v1274, %v1274
        %v1281 = vpack.c.bf16 %v1277, %v1276
        %v1282 = vpack.c.bf16 %v1279, %v1278
        %v1283 = vld [vmem:[%s1169] sm:$0x1]
        %v1285 = vlaneseq
        %v1286 = vshrl.u32 %v1285, 7
        %v1287 = vsub.s32 0, %v1286
        %v1288 = vrot.slane %v1283, %v1287
        %vm1290 = vcmask 261120
        %v1292 = vsel %vm1290, %v1280, 0
        %1294 = vmatprep.subr.bf16.mxu0 0
        %1295 = vmatpush1.bf16.msra.mxu0 %v1281
        %1296 = vmatprep.subr.bf16.mxu0 0
        %1297 = vmatpush1.bf16.msra.mxu0 %v1282
        %1298 = vmatprep.subr.bf16.mxu0 0
        %1299 = vmatpush1.bf16.msra.mxu0 0
        %1300 = vmatprep.subr.bf16.mxu0 0
        %1301 = vmatpush1.bf16.msra.mxu0 0
        %1302 = vmatprep.subr.bf16.mxu0 0
        %1303 = vmatpush1.bf16.msra.mxu0 0
        %1304 = vmatprep.subr.bf16.mxu0 0
        %1305 = vmatpush1.bf16.msra.mxu0 0
        %1306 = vmatprep.subr.bf16.mxu0 0
        %1307 = vmatpush1.bf16.msra.mxu0 0
        %1308 = vmatprep.subr.bf16.mxu0 0
        %1309 = vmatpush1.bf16.msra.mxu0 0
        %1310 = vmatprep.subr.bf16.mxu0 0
        %1311 = vmatpush1.bf16.msra.mxu0 0
        %1312 = vmatprep.subr.bf16.mxu0 0
        %1313 = vmatpush1.bf16.msra.mxu0 0
        %1314 = vmatprep.subr.bf16.mxu0 0
        %1315 = vmatpush1.bf16.msra.mxu0 0
        %1316 = vmatprep.subr.bf16.mxu0 0
        %1317 = vmatpush1.bf16.msra.mxu0 0
        %1318 = vmatprep.subr.bf16.mxu0 0
        %1319 = vmatpush1.bf16.msra.mxu0 0
        %1320 = vmatprep.subr.bf16.mxu0 0
        %1321 = vmatpush1.bf16.msra.mxu0 0
        %1322 = vmatprep.subr.bf16.mxu0 0
        %1323 = vmatpush1.bf16.msra.mxu0 0
        %1324 = vmatprep.subr.bf16.mxu0 0
        %1325 = vmatpush1.bf16.msra.mxu0 0
        %1326 = vmatprep.mubr.bf16.mxu0 0
        %1327 = vmatmul.mubr.bf16.gmra.mrb[0].mxu0 %v1292
        %v1328 = vpop.f32.mrb[0].mxu0
        %v1329 = vadd.f32 %v1288, %v1328
        %v1330 = vpop.f32.mrb[0].mxu0
        %v1331 = vpop.f32.mrb[0].mxu0
        %v1332 = vpop.f32.mrb[0].mxu0
        %1333 = vdwg.mxu0
        %1335 = vrot.lane.b32.xlu0 %v1329, 120
        %v1336 = vpop.permute.xlu0 %1335
        %1338 = vrot.lane.b32.xlu0 %v1329, 112
        %v1339 = vpop.permute.xlu0 %1338
        %1341 = vrot.lane.b32.xlu0 %v1329, 104
        %v1342 = vpop.permute.xlu0 %1341
        %v1344 = vld [vmem:[%s1158] sm:$0xff]
        %v1345 = vpack.c.bf16 %v1329, %v1329
        %v1346 = vpack.c.bf16 %v1336, %v1336
        %v1347 = vpack.c.bf16 %v1339, %v1339
        %v1348 = vpack.c.bf16 %v1342, %v1342
        %1350 = vrot.lane.b32.xlu0 %v1345, 96
        %v1351 = vpop.permute.xlu0 %1350
        %vm1352 = vcmask 64512
        %v1354 = vsel %vm1352, %v1345, 0
        %v1357 = vsel %vm1352, %v1351, 0
        %1359 = vmatprep.subr.bf16.mxu0 0
        %1360 = vmatpush1.bf16.xpose.msra.mxu0 %v1357
        %1361 = vmatprep.subr.bf16.mxu0 0
        %1362 = vmatpush1.bf16.xpose.msra.mxu0 0
        %1363 = vmatprep.subr.bf16.mxu0 0
        %1364 = vmatpush1.bf16.xpose.msra.mxu0 0
        %1365 = vmatprep.subr.bf16.mxu0 0
        %1366 = vmatpush1.bf16.xpose.msra.mxu0 0
        %1367 = vmatprep.subr.bf16.mxu0 0
        %1368 = vmatpush1.bf16.xpose.msra.mxu0 0
        %1369 = vmatprep.subr.bf16.mxu0 0
        %1370 = vmatpush1.bf16.xpose.msra.mxu0 0
        %1371 = vmatprep.subr.bf16.mxu0 0
        %1372 = vmatpush1.bf16.xpose.msra.mxu0 0
        %1373 = vmatprep.subr.bf16.mxu0 0
        %1374 = vmatpush1.bf16.xpose.msra.mxu0 0
        %1375 = vmatprep.subr.bf16.mxu0 0
        %1376 = vmatpush1.bf16.xpose.msra.mxu0 0
        %1377 = vmatprep.subr.bf16.mxu0 0
        %1378 = vmatpush1.bf16.xpose.msra.mxu0 0
        %1379 = vmatprep.subr.bf16.mxu0 0
        %1380 = vmatpush1.bf16.xpose.msra.mxu0 0
        %1381 = vmatprep.subr.bf16.mxu0 0
        %1382 = vmatpush1.bf16.xpose.msra.mxu0 0
        %1383 = vmatprep.subr.bf16.mxu0 0
        %1384 = vmatpush1.bf16.xpose.msra.mxu0 0
        %1385 = vmatprep.subr.bf16.mxu0 0
        %1386 = vmatpush1.bf16.xpose.msra.mxu0 0
        %1387 = vmatprep.subr.bf16.mxu0 0
        %1388 = vmatpush1.bf16.xpose.msra.mxu0 0
        %1389 = vmatprep.subr.bf16.mxu0 0
        %1390 = vmatpush1.bf16.xpose.msra.mxu0 0
        %1391 = vmatprep.mubr.bf16.mxu0 0
        %1392 = vmatmul.mubr.bf16.gmra.mrb[0].mxu0 %v1354
        %v1393 = vpop.f32.mrb[0].mxu0
        %v1394 = vadd.f32 0.0, %v1393
        %v1395 = vpop.f32.mrb[0].mxu0
        %v1396 = vpop.f32.mrb[0].mxu0
        %v1397 = vpop.f32.mrb[0].mxu0
        %1398 = vdwg.mxu0
        %1400 = vrot.lane.b32.xlu0 %v1346, 96
        %v1401 = vpop.permute.xlu0 %1400
        %v1403 = vsel %vm1352, %v1346, 0
        %v1406 = vsel %vm1352, %v1401, 0
        %1408 = vmatprep.subr.bf16.mxu0 0
        %1409 = vmatpush1.bf16.xpose.msra.mxu0 %v1406
        %1410 = vmatprep.subr.bf16.mxu0 0
        %1411 = vmatpush1.bf16.xpose.msra.mxu0 0
        %1412 = vmatprep.subr.bf16.mxu0 0
        %1413 = vmatpush1.bf16.xpose.msra.mxu0 0
        %1414 = vmatprep.subr.bf16.mxu0 0
        %1415 = vmatpush1.bf16.xpose.msra.mxu0 0
        %1416 = vmatprep.subr.bf16.mxu0 0
        %1417 = vmatpush1.bf16.xpose.msra.mxu0 0
        %1418 = vmatprep.subr.bf16.mxu0 0
        %1419 = vmatpush1.bf16.xpose.msra.mxu0 0
        %1420 = vmatprep.subr.bf16.mxu0 0
        %1421 = vmatpush1.bf16.xpose.msra.mxu0 0
        %1422 = vmatprep.subr.bf16.mxu0 0
        %1423 = vmatpush1.bf16.xpose.msra.mxu0 0
        %1424 = vmatprep.subr.bf16.mxu0 0
        %1425 = vmatpush1.bf16.xpose.msra.mxu0 0
        %1426 = vmatprep.subr.bf16.mxu0 0
        %1427 = vmatpush1.bf16.xpose.msra.mxu0 0
        %1428 = vmatprep.subr.bf16.mxu0 0
        %1429 = vmatpush1.bf16.xpose.msra.mxu0 0
        %1430 = vmatprep.subr.bf16.mxu0 0
        %1431 = vmatpush1.bf16.xpose.msra.mxu0 0
        %1432 = vmatprep.subr.bf16.mxu0 0
        %1433 = vmatpush1.bf16.xpose.msra.mxu0 0
        %1434 = vmatprep.subr.bf16.mxu0 0
        %1435 = vmatpush1.bf16.xpose.msra.mxu0 0
        %1436 = vmatprep.subr.bf16.mxu0 0
        %1437 = vmatpush1.bf16.xpose.msra.mxu0 0
        %1438 = vmatprep.subr.bf16.mxu0 0
        %1439 = vmatpush1.bf16.xpose.msra.mxu0 0
        %1440 = vmatprep.mubr.bf16.mxu0 0
        %1441 = vmatmul.mubr.bf16.gmra.mrb[0].mxu0 %v1403
        %v1442 = vpop.f32.mrb[0].mxu0
        %v1443 = vadd.f32 0.0, %v1442
        %v1444 = vpop.f32.mrb[0].mxu0
        %v1445 = vpop.f32.mrb[0].mxu0
        %v1446 = vpop.f32.mrb[0].mxu0
        %1447 = vdwg.mxu0
        %1449 = vrot.lane.b32.xlu0 %v1347, 96
        %v1450 = vpop.permute.xlu0 %1449
        %v1452 = vsel %vm1352, %v1347, 0
        %v1455 = vsel %vm1352, %v1450, 0
        %1457 = vmatprep.subr.bf16.mxu0 0
        %1458 = vmatpush1.bf16.xpose.msra.mxu0 %v1455
        %1459 = vmatprep.subr.bf16.mxu0 0
        %1460 = vmatpush1.bf16.xpose.msra.mxu0 0
        %1461 = vmatprep.subr.bf16.mxu0 0
        %1462 = vmatpush1.bf16.xpose.msra.mxu0 0
        %1463 = vmatprep.subr.bf16.mxu0 0
        %1464 = vmatpush1.bf16.xpose.msra.mxu0 0
        %1465 = vmatprep.subr.bf16.mxu0 0
        %1466 = vmatpush1.bf16.xpose.msra.mxu0 0
        %1467 = vmatprep.subr.bf16.mxu0 0
        %1468 = vmatpush1.bf16.xpose.msra.mxu0 0
        %1469 = vmatprep.subr.bf16.mxu0 0
        %1470 = vmatpush1.bf16.xpose.msra.mxu0 0
        %1471 = vmatprep.subr.bf16.mxu0 0
        %1472 = vmatpush1.bf16.xpose.msra.mxu0 0
        %1473 = vmatprep.subr.bf16.mxu0 0
        %1474 = vmatpush1.bf16.xpose.msra.mxu0 0
        %1475 = vmatprep.subr.bf16.mxu0 0
        %1476 = vmatpush1.bf16.xpose.msra.mxu0 0
        %1477 = vmatprep.subr.bf16.mxu0 0
        %1478 = vmatpush1.bf16.xpose.msra.mxu0 0
        %1479 = vmatprep.subr.bf16.mxu0 0
        %1480 = vmatpush1.bf16.xpose.msra.mxu0 0
        %1481 = vmatprep.subr.bf16.mxu0 0
        %1482 = vmatpush1.bf16.xpose.msra.mxu0 0
        %1483 = vmatprep.subr.bf16.mxu0 0
        %1484 = vmatpush1.bf16.xpose.msra.mxu0 0
        %1485 = vmatprep.subr.bf16.mxu0 0
        %1486 = vmatpush1.bf16.xpose.msra.mxu0 0
        %1487 = vmatprep.subr.bf16.mxu0 0
        %1488 = vmatpush1.bf16.xpose.msra.mxu0 0
        %1489 = vmatprep.mubr.bf16.mxu0 0
        %1490 = vmatmul.mubr.bf16.gmra.mrb[0].mxu0 %v1452
        %v1491 = vpop.f32.mrb[0].mxu0
        %v1492 = vadd.f32 0.0, %v1491
        %v1493 = vpop.f32.mrb[0].mxu0
        %v1494 = vpop.f32.mrb[0].mxu0
        %v1495 = vpop.f32.mrb[0].mxu0
        %1496 = vdwg.mxu0
        %1498 = vrot.lane.b32.xlu0 %v1348, 96
        %v1499 = vpop.permute.xlu0 %1498
        %v1501 = vsel %vm1352, %v1348, 0
        %v1504 = vsel %vm1352, %v1499, 0
        %1506 = vmatprep.subr.bf16.mxu0 0
        %1507 = vmatpush1.bf16.xpose.msra.mxu0 %v1504
        %1508 = vmatprep.subr.bf16.mxu0 0
        %1509 = vmatpush1.bf16.xpose.msra.mxu0 0
        %1510 = vmatprep.subr.bf16.mxu0 0
        %1511 = vmatpush1.bf16.xpose.msra.mxu0 0
        %1512 = vmatprep.subr.bf16.mxu0 0
        %1513 = vmatpush1.bf16.xpose.msra.mxu0 0
        %1514 = vmatprep.subr.bf16.mxu0 0
        %1515 = vmatpush1.bf16.xpose.msra.mxu0 0
        %1516 = vmatprep.subr.bf16.mxu0 0
        %1517 = vmatpush1.bf16.xpose.msra.mxu0 0
        %1518 = vmatprep.subr.bf16.mxu0 0
        %1519 = vmatpush1.bf16.xpose.msra.mxu0 0
        %1520 = vmatprep.subr.bf16.mxu0 0
        %1521 = vmatpush1.bf16.xpose.msra.mxu0 0
        %1522 = vmatprep.subr.bf16.mxu0 0
        %1523 = vmatpush1.bf16.xpose.msra.mxu0 0
        %1524 = vmatprep.subr.bf16.mxu0 0
        %1525 = vmatpush1.bf16.xpose.msra.mxu0 0
        %1526 = vmatprep.subr.bf16.mxu0 0
        %1527 = vmatpush1.bf16.xpose.msra.mxu0 0
        %1528 = vmatprep.subr.bf16.mxu0 0
        %1529 = vmatpush1.bf16.xpose.msra.mxu0 0
        %1530 = vmatprep.subr.bf16.mxu0 0
        %1531 = vmatpush1.bf16.xpose.msra.mxu0 0
        %1532 = vmatprep.subr.bf16.mxu0 0
        %1533 = vmatpush1.bf16.xpose.msra.mxu0 0
        %1534 = vmatprep.subr.bf16.mxu0 0
        %1535 = vmatpush1.bf16.xpose.msra.mxu0 0
        %1536 = vmatprep.subr.bf16.mxu0 0
        %1537 = vmatpush1.bf16.xpose.msra.mxu0 0
        %1538 = vmatprep.mubr.bf16.mxu0 0
        %1539 = vmatmul.mubr.bf16.gmra.mrb[0].mxu0 %v1501
        %v1540 = vpop.f32.mrb[0].mxu0
        %v1541 = vadd.f32 0.0, %v1540
        %v1542 = vpop.f32.mrb[0].mxu0
        %v1543 = vpop.f32.mrb[0].mxu0
        %v1544 = vpop.f32.mrb[0].mxu0
        %1545 = vdwg.mxu0
        %v1546 = vmul.f32 %v1394, 0.35355338
        %v1547 = vmul.f32 %v1443, 0.35355338
        %v1548 = vmul.f32 %v1492, 0.35355338
        %v1549 = vmul.f32 %v1541, 0.35355338
        %v1550 = vadd.f32 %v1546, %v1344
        %v1551 = vadd.f32 %v1547, %v1344
        %v1552 = vadd.f32 %v1548, %v1344
        %v1553 = vadd.f32 %v1549, %v1344
        %v1554 = vsel %vm1352, %v1550, -inf
        %1555 = vmax.xlane.f32.xlu0 %v1554
        %v1556 = vpop.xlane.xlu0 %1555
        %v1557 = vsel %vm1352, %v1551, -inf
        %1558 = vmax.xlane.f32.xlu0 %v1557
        %v1559 = vpop.xlane.xlu0 %1558
        %v1560 = vsel %vm1352, %v1552, -inf
        %1561 = vmax.xlane.f32.xlu0 %v1560
        %v1562 = vpop.xlane.xlu0 %1561
        %v1563 = vsel %vm1352, %v1553, -inf
        %1564 = vmax.xlane.f32.xlu0 %v1563
        %v1565 = vpop.xlane.xlu0 %1564
        %v1566 = vsub.f32 %v1550, %v1556
        %v1567 = vsub.f32 %v1551, %v1559
        %v1568 = vsub.f32 %v1552, %v1562
        %v1569 = vsub.f32 %v1553, %v1565
        %v1570 = vmul.f32 %v1566, 1.442695
        %v1571 = vpow.pop %v1570
        %v1572 = vmul.f32 %v1567, 1.442695
        %v1573 = vpow.pop %v1572
        %v1574 = vmul.f32 %v1568, 1.442695
        %v1575 = vpow.pop %v1574
        %v1576 = vmul.f32 %v1569, 1.442695
        %v1577 = vpow.pop %v1576
        %v1578 = vsel %vm1352, %v1571, 0.0
        %1579 = vadd.xlane.f32.xlu0 %v1578
        %v1580 = vpop.xlane.xlu0 %1579
        %v1581 = vsel %vm1352, %v1573, 0.0
        %1582 = vadd.xlane.f32.xlu0 %v1581
        %v1583 = vpop.xlane.xlu0 %1582
        %v1584 = vsel %vm1352, %v1575, 0.0
        %1585 = vadd.xlane.f32.xlu0 %v1584
        %v1586 = vpop.xlane.xlu0 %1585
        %v1587 = vsel %vm1352, %v1577, 0.0
        %1588 = vadd.xlane.f32.xlu0 %v1587
        %v1589 = vpop.xlane.xlu0 %1588
        %v1590 = vrcp.pop %v1580
        %v1591 = vrcp.pop %v1583
        %v1592 = vrcp.pop %v1586
        %v1593 = vrcp.pop %v1589
        %v1594 = vmul.f32 %v1571, %v1590
        %v1595 = vmul.f32 %v1573, %v1591
        %v1596 = vmul.f32 %v1575, %v1592
        %v1597 = vmul.f32 %v1577, %v1593
        %v1598 = vpack.c.bf16 %v1594, %v1594
        %v1599 = vpack.c.bf16 %v1595, %v1595
        %v1600 = vpack.c.bf16 %v1596, %v1596
        %v1601 = vpack.c.bf16 %v1597, %v1597
        %1602 = vrot.lane.b32.xlu0 %v1345, 64
        %v1603 = vpop.permute.xlu0 %1602
        %v1605 = vsel %vm1352, %v1598, 0
        %vm1607 = vcmask 1043456
        %v1609 = vsel %vm1607, %v1603, 0
        %1611 = vmatprep.subr.bf16.mxu0 0
        %1612 = vmatpush1.bf16.msra.mxu0 %v1609
        %1613 = vmatprep.subr.bf16.mxu0 0
        %1614 = vmatpush1.bf16.msra.mxu0 0
        %1615 = vmatprep.subr.bf16.mxu0 0
        %1616 = vmatpush1.bf16.msra.mxu0 0
        %1617 = vmatprep.subr.bf16.mxu0 0
        %1618 = vmatpush1.bf16.msra.mxu0 0
        %1619 = vmatprep.subr.bf16.mxu0 0
        %1620 = vmatpush1.bf16.msra.mxu0 0
        %1621 = vmatprep.subr.bf16.mxu0 0
        %1622 = vmatpush1.bf16.msra.mxu0 0
        %1623 = vmatprep.subr.bf16.mxu0 0
        %1624 = vmatpush1.bf16.msra.mxu0 0
        %1625 = vmatprep.subr.bf16.mxu0 0
        %1626 = vmatpush1.bf16.msra.mxu0 0
        %1627 = vmatprep.subr.bf16.mxu0 0
        %1628 = vmatpush1.bf16.msra.mxu0 0
        %1629 = vmatprep.subr.bf16.mxu0 0
        %1630 = vmatpush1.bf16.msra.mxu0 0
        %1631 = vmatprep.subr.bf16.mxu0 0
        %1632 = vmatpush1.bf16.msra.mxu0 0
        %1633 = vmatprep.subr.bf16.mxu0 0
        %1634 = vmatpush1.bf16.msra.mxu0 0
        %1635 = vmatprep.subr.bf16.mxu0 0
        %1636 = vmatpush1.bf16.msra.mxu0 0
        %1637 = vmatprep.subr.bf16.mxu0 0
        %1638 = vmatpush1.bf16.msra.mxu0 0
        %1639 = vmatprep.subr.bf16.mxu0 0
        %1640 = vmatpush1.bf16.msra.mxu0 0
        %1641 = vmatprep.subr.bf16.mxu0 0
        %1642 = vmatpush1.bf16.msra.mxu0 0
        %1643 = vmatprep.mubr.bf16.mxu0 0
        %1644 = vmatmul.mubr.bf16.gmra.mrb[0].mxu0 %v1605
        %v1645 = vpop.f32.mrb[0].mxu0
        %v1646 = vadd.f32 0.0, %v1645
        %v1647 = vpop.f32.mrb[0].mxu0
        %v1648 = vpop.f32.mrb[0].mxu0
        %v1649 = vpop.f32.mrb[0].mxu0
        %1650 = vdwg.mxu0
        %1651 = vrot.lane.b32.xlu0 %v1346, 64
        %v1652 = vpop.permute.xlu0 %1651
        %v1654 = vsel %vm1352, %v1599, 0
        %v1657 = vsel %vm1607, %v1652, 0
        %1659 = vmatprep.subr.bf16.mxu0 0
        %1660 = vmatpush1.bf16.msra.mxu0 %v1657
        %1661 = vmatprep.subr.bf16.mxu0 0
        %1662 = vmatpush1.bf16.msra.mxu0 0
        %1663 = vmatprep.subr.bf16.mxu0 0
        %1664 = vmatpush1.bf16.msra.mxu0 0
        %1665 = vmatprep.subr.bf16.mxu0 0
        %1666 = vmatpush1.bf16.msra.mxu0 0
        %1667 = vmatprep.subr.bf16.mxu0 0
        %1668 = vmatpush1.bf16.msra.mxu0 0
        %1669 = vmatprep.subr.bf16.mxu0 0
        %1670 = vmatpush1.bf16.msra.mxu0 0
        %1671 = vmatprep.subr.bf16.mxu0 0
        %1672 = vmatpush1.bf16.msra.mxu0 0
        %1673 = vmatprep.subr.bf16.mxu0 0
        %1674 = vmatpush1.bf16.msra.mxu0 0
        %1675 = vmatprep.subr.bf16.mxu0 0
        %1676 = vmatpush1.bf16.msra.mxu0 0
        %1677 = vmatprep.subr.bf16.mxu0 0
        %1678 = vmatpush1.bf16.msra.mxu0 0
        %1679 = vmatprep.subr.bf16.mxu0 0
        %1680 = vmatpush1.bf16.msra.mxu0 0
        %1681 = vmatprep.subr.bf16.mxu0 0
        %1682 = vmatpush1.bf16.msra.mxu0 0
        %1683 = vmatprep.subr.bf16.mxu0 0
        %1684 = vmatpush1.bf16.msra.mxu0 0
        %1685 = vmatprep.subr.bf16.mxu0 0
        %1686 = vmatpush1.bf16.msra.mxu0 0
        %1687 = vmatprep.subr.bf16.mxu0 0
        %1688 = vmatpush1.bf16.msra.mxu0 0
        %1689 = vmatprep.subr.bf16.mxu0 0
        %1690 = vmatpush1.bf16.msra.mxu0 0
        %1691 = vmatprep.mubr.bf16.mxu0 0
        %1692 = vmatmul.mubr.bf16.gmra.mrb[0].mxu0 %v1654
        %v1693 = vpop.f32.mrb[0].mxu0
        %v1694 = vadd.f32 0.0, %v1693
        %v1695 = vpop.f32.mrb[0].mxu0
        %v1696 = vpop.f32.mrb[0].mxu0
        %v1697 = vpop.f32.mrb[0].mxu0
        %1698 = vdwg.mxu0
        %1699 = vrot.lane.b32.xlu0 %v1347, 64
        %v1700 = vpop.permute.xlu0 %1699
        %v1702 = vsel %vm1352, %v1600, 0
        %v1705 = vsel %vm1607, %v1700, 0
        %1707 = vmatprep.subr.bf16.mxu0 0
        %1708 = vmatpush1.bf16.msra.mxu0 %v1705
        %1709 = vmatprep.subr.bf16.mxu0 0
        %1710 = vmatpush1.bf16.msra.mxu0 0
        %1711 = vmatprep.subr.bf16.mxu0 0
        %1712 = vmatpush1.bf16.msra.mxu0 0
        %1713 = vmatprep.subr.bf16.mxu0 0
        %1714 = vmatpush1.bf16.msra.mxu0 0
        %1715 = vmatprep.subr.bf16.mxu0 0
        %1716 = vmatpush1.bf16.msra.mxu0 0
        %1717 = vmatprep.subr.bf16.mxu0 0
        %1718 = vmatpush1.bf16.msra.mxu0 0
        %1719 = vmatprep.subr.bf16.mxu0 0
        %1720 = vmatpush1.bf16.msra.mxu0 0
        %1721 = vmatprep.subr.bf16.mxu0 0
        %1722 = vmatpush1.bf16.msra.mxu0 0
        %1723 = vmatprep.subr.bf16.mxu0 0
        %1724 = vmatpush1.bf16.msra.mxu0 0
        %1725 = vmatprep.subr.bf16.mxu0 0
        %1726 = vmatpush1.bf16.msra.mxu0 0
        %1727 = vmatprep.subr.bf16.mxu0 0
        %1728 = vmatpush1.bf16.msra.mxu0 0
        %1729 = vmatprep.subr.bf16.mxu0 0
        %1730 = vmatpush1.bf16.msra.mxu0 0
        %1731 = vmatprep.subr.bf16.mxu0 0
        %1732 = vmatpush1.bf16.msra.mxu0 0
        %1733 = vmatprep.subr.bf16.mxu0 0
        %1734 = vmatpush1.bf16.msra.mxu0 0
        %1735 = vmatprep.subr.bf16.mxu0 0
        %1736 = vmatpush1.bf16.msra.mxu0 0
        %1737 = vmatprep.subr.bf16.mxu0 0
        %1738 = vmatpush1.bf16.msra.mxu0 0
        %1739 = vmatprep.mubr.bf16.mxu0 0
        %1740 = vmatmul.mubr.bf16.gmra.mrb[0].mxu0 %v1702
        %v1741 = vpop.f32.mrb[0].mxu0
        %v1742 = vadd.f32 0.0, %v1741
        %v1743 = vpop.f32.mrb[0].mxu0
        %v1744 = vpop.f32.mrb[0].mxu0
        %v1745 = vpop.f32.mrb[0].mxu0
        %1746 = vdwg.mxu0
        %1747 = vrot.lane.b32.xlu0 %v1348, 64
        %v1748 = vpop.permute.xlu0 %1747
        %v1750 = vsel %vm1352, %v1601, 0
        %v1753 = vsel %vm1607, %v1748, 0
        %1755 = vmatprep.subr.bf16.mxu0 0
        %1756 = vmatpush1.bf16.msra.mxu0 %v1753
        %1757 = vmatprep.subr.bf16.mxu0 0
        %1758 = vmatpush1.bf16.msra.mxu0 0
        %1759 = vmatprep.subr.bf16.mxu0 0
        %1760 = vmatpush1.bf16.msra.mxu0 0
        %1761 = vmatprep.subr.bf16.mxu0 0
        %1762 = vmatpush1.bf16.msra.mxu0 0
        %1763 = vmatprep.subr.bf16.mxu0 0
        %1764 = vmatpush1.bf16.msra.mxu0 0
        %1765 = vmatprep.subr.bf16.mxu0 0
        %1766 = vmatpush1.bf16.msra.mxu0 0
        %1767 = vmatprep.subr.bf16.mxu0 0
        %1768 = vmatpush1.bf16.msra.mxu0 0
        %1769 = vmatprep.subr.bf16.mxu0 0
        %1770 = vmatpush1.bf16.msra.mxu0 0
        %1771 = vmatprep.subr.bf16.mxu0 0
        %1772 = vmatpush1.bf16.msra.mxu0 0
        %1773 = vmatprep.subr.bf16.mxu0 0
        %1774 = vmatpush1.bf16.msra.mxu0 0
        %1775 = vmatprep.subr.bf16.mxu0 0
        %1776 = vmatpush1.bf16.msra.mxu0 0
        %1777 = vmatprep.subr.bf16.mxu0 0
        %1778 = vmatpush1.bf16.msra.mxu0 0
        %1779 = vmatprep.subr.bf16.mxu0 0
        %1780 = vmatpush1.bf16.msra.mxu0 0
        %1781 = vmatprep.subr.bf16.mxu0 0
        %1782 = vmatpush1.bf16.msra.mxu0 0
        %1783 = vmatprep.subr.bf16.mxu0 0
        %1784 = vmatpush1.bf16.msra.mxu0 0
        %1785 = vmatprep.subr.bf16.mxu0 0
        %1786 = vmatpush1.bf16.msra.mxu0 0
        %1787 = vmatprep.mubr.bf16.mxu0 0
        %1788 = vmatmul.mubr.bf16.gmra.mrb[0].mxu0 %v1750
        %v1789 = vpop.f32.mrb[0].mxu0
        %v1790 = vadd.f32 0.0, %v1789
        %v1791 = vpop.f32.mrb[0].mxu0
        %v1792 = vpop.f32.mrb[0].mxu0
        %v1793 = vpop.f32.mrb[0].mxu0
        %1794 = vdwg.mxu0
        %1796 = vrot.lane.b32.xlu0 %v1694, 8
        %v1797 = vpop.permute.xlu0 %1796
        %1800 = vrot.lane.b32.xlu0 %v1742, 16
        %v1801 = vpop.permute.xlu0 %1800
        %1804 = vrot.lane.b32.xlu0 %v1790, 24
        %v1805 = vpop.permute.xlu0 %1804
        %v1807 = vsel %vm1352, %v1646, %v1797
        %vm1808 = vcmask 130048
        %v1809 = vsel %vm1808, %v1807, %v1801
        %vm1810 = vcmask 195584
        %v1811 = vsel %vm1810, %v1809, %v1805
        %v1812 = vld [vmem:[%s1174] sm:$0xff]
        %v1813 = vld [vmem:[%s1174 + $0x8] sm:$0xff]
        %v1814 = vld [vmem:[%s1174 + $0x10] sm:$0xff]
        %v1815 = vld [vmem:[%s1174 + $0x18] sm:$0xff]
        %v1816 = vpack.c.bf16 %v1811, %v1811
        %v1817 = vpack.c.bf16 %v1813, %v1812
        %v1818 = vpack.c.bf16 %v1815, %v1814
        %v1819 = vld [vmem:[%s1177] sm:$0x1]
        %v1821 = vlaneseq
        %v1822 = vshrl.u32 %v1821, 7
        %v1823 = vsub.s32 0, %v1822
        %v1824 = vrot.slane %v1819, %v1823
        %v1827 = vsel %vm1290, %v1816, 0
        %1829 = vmatprep.subr.bf16.mxu0 0
        %1830 = vmatpush1.bf16.msra.mxu0 %v1817
        %1831 = vmatprep.subr.bf16.mxu0 0
        %1832 = vmatpush1.bf16.msra.mxu0 %v1818
        %1833 = vmatprep.subr.bf16.mxu0 0
        %1834 = vmatpush1.bf16.msra.mxu0 0
        %1835 = vmatprep.subr.bf16.mxu0 0
        %1836 = vmatpush1.bf16.msra.mxu0 0
        %1837 = vmatprep.subr.bf16.mxu0 0
        %1838 = vmatpush1.bf16.msra.mxu0 0
        %1839 = vmatprep.subr.bf16.mxu0 0
        %1840 = vmatpush1.bf16.msra.mxu0 0
        %1841 = vmatprep.subr.bf16.mxu0 0
        %1842 = vmatpush1.bf16.msra.mxu0 0
        %1843 = vmatprep.subr.bf16.mxu0 0
        %1844 = vmatpush1.bf16.msra.mxu0 0
        %1845 = vmatprep.subr.bf16.mxu0 0
        %1846 = vmatpush1.bf16.msra.mxu0 0
        %1847 = vmatprep.subr.bf16.mxu0 0
        %1848 = vmatpush1.bf16.msra.mxu0 0
        %1849 = vmatprep.subr.bf16.mxu0 0
        %1850 = vmatpush1.bf16.msra.mxu0 0
        %1851 = vmatprep.subr.bf16.mxu0 0
        %1852 = vmatpush1.bf16.msra.mxu0 0
        %1853 = vmatprep.subr.bf16.mxu0 0
        %1854 = vmatpush1.bf16.msra.mxu0 0
        %1855 = vmatprep.subr.bf16.mxu0 0
        %1856 = vmatpush1.bf16.msra.mxu0 0
        %1857 = vmatprep.subr.bf16.mxu0 0
        %1858 = vmatpush1.bf16.msra.mxu0 0
        %1859 = vmatprep.subr.bf16.mxu0 0
        %1860 = vmatpush1.bf16.msra.mxu0 0
        %1861 = vmatprep.mubr.bf16.mxu0 0
        %1862 = vmatmul.mubr.bf16.gmra.mrb[0].mxu0 %v1827
        %v1863 = vpop.f32.mrb[0].mxu0
        %v1864 = vadd.f32 %v1824, %v1863
        %v1865 = vpop.f32.mrb[0].mxu0
        %v1866 = vpop.f32.mrb[0].mxu0
        %v1867 = vpop.f32.mrb[0].mxu0
        %1868 = vdwg.mxu0
        %v1869 = vadd.f32 %v1864, %v1274
        %v1870 = vld [vmem:[%s1180] sm:$0x1]
        %v1871 = vld [vmem:[%s1183] sm:$0x1]
        %v1872 = vsel %vm1290, %v1869, 0.0
        %1873 = vadd.xlane.f32.xlu0 %v1872
        %v1874 = vpop.xlane.xlu0 %1873
        %v1875 = vrcp.pop 32.0
        %v1876 = vmul.f32 %v1874, %v1875
        %v1877 = vsub.f32 %v1869, %v1876
        %v1878 = vmul.f32 %v1877, %v1877
        %v1879 = vsel %vm1290, %v1878, 0.0
        %1880 = vadd.xlane.f32.xlu0 %v1879
        %v1881 = vpop.xlane.xlu0 %1880
        %v1882 = vmul.f32 %v1881, %v1875
        %v1883 = vadd.f32 %v1882, 1e-12
        %v1884 = vrsqrt.pop %v1883
        %v1885 = vmul.f32 %v1877, %v1884
        %v1887 = vlaneseq
        %v1888 = vshrl.u32 %v1887, 7
        %v1889 = vsub.s32 0, %v1888
        %v1890 = vrot.slane %v1870, %v1889
        %v1892 = vmul.f32 %v1885, %v1890
        %v1894 = vlaneseq
        %v1895 = vshrl.u32 %v1894, 7
        %v1896 = vsub.s32 0, %v1895
        %v1897 = vrot.slane %v1871, %v1896
        %v1899 = vadd.f32 %v1892, %v1897
        %v1900 = vld [vmem:[%s1188] sm:$0xff]
        %v1901 = vld [vmem:[%s1188 + $0x8] sm:$0xff]
        %v1902 = vld [vmem:[%s1188 + $0x10] sm:$0xff]
        %v1903 = vld [vmem:[%s1188 + $0x18] sm:$0xff]
        %v1904 = vpack.c.bf16 %v1899, %v1899
        %v1905 = vpack.c.bf16 %v1901, %v1900
        %v1906 = vpack.c.bf16 %v1903, %v1902
        %v1907 = vld [vmem:[%s1191] sm:$0x1]
        %v1909 = vlaneseq
        %v1910 = vshrl.u32 %v1909, 7
        %v1911 = vsub.s32 0, %v1910
        %v1912 = vrot.slane %v1907, %v1911
        %v1915 = vsel %vm1290, %v1904, 0
        %1917 = vmatprep.subr.bf16.mxu0 0
        %1918 = vmatpush1.bf16.msra.mxu0 %v1905
        %1919 = vmatprep.subr.bf16.mxu0 0
        %1920 = vmatpush1.bf16.msra.mxu0 %v1906
        %1921 = vmatprep.subr.bf16.mxu0 0
        %1922 = vmatpush1.bf16.msra.mxu0 0
        %1923 = vmatprep.subr.bf16.mxu0 0
        %1924 = vmatpush1.bf16.msra.mxu0 0
        %1925 = vmatprep.subr.bf16.mxu0 0
        %1926 = vmatpush1.bf16.msra.mxu0 0
        %1927 = vmatprep.subr.bf16.mxu0 0
        %1928 = vmatpush1.bf16.msra.mxu0 0
        %1929 = vmatprep.subr.bf16.mxu0 0
        %1930 = vmatpush1.bf16.msra.mxu0 0
        %1931 = vmatprep.subr.bf16.mxu0 0
        %1932 = vmatpush1.bf16.msra.mxu0 0
        %1933 = vmatprep.subr.bf16.mxu0 0
        %1934 = vmatpush1.bf16.msra.mxu0 0
        %1935 = vmatprep.subr.bf16.mxu0 0
        %1936 = vmatpush1.bf16.msra.mxu0 0
        %1937 = vmatprep.subr.bf16.mxu0 0
        %1938 = vmatpush1.bf16.msra.mxu0 0
        %1939 = vmatprep.subr.bf16.mxu0 0
        %1940 = vmatpush1.bf16.msra.mxu0 0
        %1941 = vmatprep.subr.bf16.mxu0 0
        %1942 = vmatpush1.bf16.msra.mxu0 0
        %1943 = vmatprep.subr.bf16.mxu0 0
        %1944 = vmatpush1.bf16.msra.mxu0 0
        %1945 = vmatprep.subr.bf16.mxu0 0
        %1946 = vmatpush1.bf16.msra.mxu0 0
        %1947 = vmatprep.subr.bf16.mxu0 0
        %1948 = vmatpush1.bf16.msra.mxu0 0
        %1949 = vmatprep.mubr.bf16.mxu0 0
        %1950 = vmatmul.mubr.bf16.gmra.mrb[0].mxu0 %v1915
        %v1951 = vpop.f32.mrb[0].mxu0
        %v1952 = vadd.f32 %v1912, %v1951
        %v1953 = vpop.f32.mrb[0].mxu0
        %v1954 = vpop.f32.mrb[0].mxu0
        %v1955 = vpop.f32.mrb[0].mxu0
        %1956 = vdwg.mxu0
        %v1957 = vld [vmem:[%s1196] sm:$0xff]
        %v1958 = vld [vmem:[%s1196 + $0x8] sm:$0xff]
        %v1959 = vld [vmem:[%s1196 + $0x10] sm:$0xff]
        %v1960 = vld [vmem:[%s1196 + $0x18] sm:$0xff]
        %v1961 = vpack.c.bf16 %v1275, %v1275
        %v1962 = vpack.c.bf16 %v1958, %v1957
        %v1963 = vpack.c.bf16 %v1960, %v1959
        %v1964 = vld [vmem:[%s1199] sm:$0x1]
        %v1966 = vlaneseq
        %v1967 = vshrl.u32 %v1966, 7
        %v1968 = vsub.s32 0, %v1967
        %v1969 = vrot.slane %v1964, %v1968
        %v1972 = vsel %vm1290, %v1961, 0
        %1974 = vmatprep.subr.bf16.mxu0 0
        %1975 = vmatpush1.bf16.msra.mxu0 %v1962
        %1976 = vmatprep.subr.bf16.mxu0 0
        %1977 = vmatpush1.bf16.msra.mxu0 %v1963
        %1978 = vmatprep.subr.bf16.mxu0 0
        %1979 = vmatpush1.bf16.msra.mxu0 0
        %1980 = vmatprep.subr.bf16.mxu0 0
        %1981 = vmatpush1.bf16.msra.mxu0 0
        %1982 = vmatprep.subr.bf16.mxu0 0
        %1983 = vmatpush1.bf16.msra.mxu0 0
        %1984 = vmatprep.subr.bf16.mxu0 0
        %1985 = vmatpush1.bf16.msra.mxu0 0
        %1986 = vmatprep.subr.bf16.mxu0 0
        %1987 = vmatpush1.bf16.msra.mxu0 0
        %1988 = vmatprep.subr.bf16.mxu0 0
        %1989 = vmatpush1.bf16.msra.mxu0 0
        %1990 = vmatprep.subr.bf16.mxu0 0
        %1991 = vmatpush1.bf16.msra.mxu0 0
        %1992 = vmatprep.subr.bf16.mxu0 0
        %1993 = vmatpush1.bf16.msra.mxu0 0
        %1994 = vmatprep.subr.bf16.mxu0 0
        %1995 = vmatpush1.bf16.msra.mxu0 0
        %1996 = vmatprep.subr.bf16.mxu0 0
        %1997 = vmatpush1.bf16.msra.mxu0 0
        %1998 = vmatprep.subr.bf16.mxu0 0
        %1999 = vmatpush1.bf16.msra.mxu0 0
        %2000 = vmatprep.subr.bf16.mxu0 0
        %2001 = vmatpush1.bf16.msra.mxu0 0
        %2002 = vmatprep.subr.bf16.mxu0 0
        %2003 = vmatpush1.bf16.msra.mxu0 0
        %2004 = vmatprep.subr.bf16.mxu0 0
        %2005 = vmatpush1.bf16.msra.mxu0 0
        %2006 = vmatprep.mubr.bf16.mxu0 0
        %2007 = vmatmul.mubr.bf16.gmra.mrb[0].mxu0 %v1972
        %v2008 = vpop.f32.mrb[0].mxu0
        %v2009 = vadd.f32 %v1969, %v2008
        %v2010 = vpop.f32.mrb[0].mxu0
        %v2011 = vpop.f32.mrb[0].mxu0
        %v2012 = vpop.f32.mrb[0].mxu0
        %2013 = vdwg.mxu0
        %2015 = vrot.lane.b32.xlu0 %v1952, 120
        %v2016 = vpop.permute.xlu0 %2015
        %2018 = vrot.lane.b32.xlu0 %v1952, 112
        %v2019 = vpop.permute.xlu0 %2018
        %2021 = vrot.lane.b32.xlu0 %v1952, 104
        %v2022 = vpop.permute.xlu0 %2021
        %2025 = vrot.lane.b32.xlu0 %v2009, 120
        %v2026 = vpop.permute.xlu0 %2025
        %2028 = vrot.lane.b32.xlu0 %v2009, 112
        %v2029 = vpop.permute.xlu0 %2028
        %2031 = vrot.lane.b32.xlu0 %v2009, 104
        %v2032 = vpop.permute.xlu0 %2031
        %v2034 = vld [vmem:[%s1161] sm:$0x1]
        %v2035 = vpack.c.bf16 %v1952, %v1952
        %v2036 = vpack.c.bf16 %v2016, %v2016
        %v2037 = vpack.c.bf16 %v2019, %v2019
        %v2038 = vpack.c.bf16 %v2022, %v2022
        %v2039 = vpack.c.bf16 %v2009, %v2009
        %v2040 = vpack.c.bf16 %v2026, %v2026
        %v2041 = vpack.c.bf16 %v2029, %v2029
        %v2042 = vpack.c.bf16 %v2032, %v2032
        %v2044 = vsel %vm1352, %v2035, 0
        %v2047 = vsel %vm1352, %v2039, 0
        %2049 = vmatprep.subr.bf16.mxu0 0
        %2050 = vmatpush1.bf16.xpose.msra.mxu0 %v2047
        %2051 = vmatprep.subr.bf16.mxu0 0
        %2052 = vmatpush1.bf16.xpose.msra.mxu0 0
        %2053 = vmatprep.subr.bf16.mxu0 0
        %2054 = vmatpush1.bf16.xpose.msra.mxu0 0
        %2055 = vmatprep.subr.bf16.mxu0 0
        %2056 = vmatpush1.bf16.xpose.msra.mxu0 0
        %2057 = vmatprep.subr.bf16.mxu0 0
        %2058 = vmatpush1.bf16.xpose.msra.mxu0 0
        %2059 = vmatprep.subr.bf16.mxu0 0
        %2060 = vmatpush1.bf16.xpose.msra.mxu0 0
        %2061 = vmatprep.subr.bf16.mxu0 0
        %2062 = vmatpush1.bf16.xpose.msra.mxu0 0
        %2063 = vmatprep.subr.bf16.mxu0 0
        %2064 = vmatpush1.bf16.xpose.msra.mxu0 0
        %2065 = vmatprep.subr.bf16.mxu0 0
        %2066 = vmatpush1.bf16.xpose.msra.mxu0 0
        %2067 = vmatprep.subr.bf16.mxu0 0
        %2068 = vmatpush1.bf16.xpose.msra.mxu0 0
        %2069 = vmatprep.subr.bf16.mxu0 0
        %2070 = vmatpush1.bf16.xpose.msra.mxu0 0
        %2071 = vmatprep.subr.bf16.mxu0 0
        %2072 = vmatpush1.bf16.xpose.msra.mxu0 0
        %2073 = vmatprep.subr.bf16.mxu0 0
        %2074 = vmatpush1.bf16.xpose.msra.mxu0 0
        %2075 = vmatprep.subr.bf16.mxu0 0
        %2076 = vmatpush1.bf16.xpose.msra.mxu0 0
        %2077 = vmatprep.subr.bf16.mxu0 0
        %2078 = vmatpush1.bf16.xpose.msra.mxu0 0
        %2079 = vmatprep.subr.bf16.mxu0 0
        %2080 = vmatpush1.bf16.xpose.msra.mxu0 0
        %2081 = vmatprep.mubr.bf16.mxu0 0
        %2082 = vmatmul.mubr.bf16.gmra.mrb[0].mxu0 %v2044
        %v2083 = vpop.f32.mrb[0].mxu0
        %v2084 = vadd.f32 0.0, %v2083
        %v2085 = vpop.f32.mrb[0].mxu0
        %v2086 = vpop.f32.mrb[0].mxu0
        %v2087 = vpop.f32.mrb[0].mxu0
        %2088 = vdwg.mxu0
        %v2090 = vsel %vm1352, %v2036, 0
        %v2093 = vsel %vm1352, %v2040, 0
        %2095 = vmatprep.subr.bf16.mxu0 0
        %2096 = vmatpush1.bf16.xpose.msra.mxu0 %v2093
        %2097 = vmatprep.subr.bf16.mxu0 0
        %2098 = vmatpush1.bf16.xpose.msra.mxu0 0
        %2099 = vmatprep.subr.bf16.mxu0 0
        %2100 = vmatpush1.bf16.xpose.msra.mxu0 0
        %2101 = vmatprep.subr.bf16.mxu0 0
        %2102 = vmatpush1.bf16.xpose.msra.mxu0 0
        %2103 = vmatprep.subr.bf16.mxu0 0
        %2104 = vmatpush1.bf16.xpose.msra.mxu0 0
        %2105 = vmatprep.subr.bf16.mxu0 0
        %2106 = vmatpush1.bf16.xpose.msra.mxu0 0
        %2107 = vmatprep.subr.bf16.mxu0 0
        %2108 = vmatpush1.bf16.xpose.msra.mxu0 0
        %2109 = vmatprep.subr.bf16.mxu0 0
        %2110 = vmatpush1.bf16.xpose.msra.mxu0 0
        %2111 = vmatprep.subr.bf16.mxu0 0
        %2112 = vmatpush1.bf16.xpose.msra.mxu0 0
        %2113 = vmatprep.subr.bf16.mxu0 0
        %2114 = vmatpush1.bf16.xpose.msra.mxu0 0
        %2115 = vmatprep.subr.bf16.mxu0 0
        %2116 = vmatpush1.bf16.xpose.msra.mxu0 0
        %2117 = vmatprep.subr.bf16.mxu0 0
        %2118 = vmatpush1.bf16.xpose.msra.mxu0 0
        %2119 = vmatprep.subr.bf16.mxu0 0
        %2120 = vmatpush1.bf16.xpose.msra.mxu0 0
        %2121 = vmatprep.subr.bf16.mxu0 0
        %2122 = vmatpush1.bf16.xpose.msra.mxu0 0
        %2123 = vmatprep.subr.bf16.mxu0 0
        %2124 = vmatpush1.bf16.xpose.msra.mxu0 0
        %2125 = vmatprep.subr.bf16.mxu0 0
        %2126 = vmatpush1.bf16.xpose.msra.mxu0 0
        %2127 = vmatprep.mubr.bf16.mxu0 0
        %2128 = vmatmul.mubr.bf16.gmra.mrb[0].mxu0 %v2090
        %v2129 = vpop.f32.mrb[0].mxu0
        %v2130 = vadd.f32 0.0, %v2129
        %v2131 = vpop.f32.mrb[0].mxu0
        %v2132 = vpop.f32.mrb[0].mxu0
        %v2133 = vpop.f32.mrb[0].mxu0
        %2134 = vdwg.mxu0
        %v2136 = vsel %vm1352, %v2037, 0
        %v2139 = vsel %vm1352, %v2041, 0
        %2141 = vmatprep.subr.bf16.mxu0 0
        %2142 = vmatpush1.bf16.xpose.msra.mxu0 %v2139
        %2143 = vmatprep.subr.bf16.mxu0 0
        %2144 = vmatpush1.bf16.xpose.msra.mxu0 0
        %2145 = vmatprep.subr.bf16.mxu0 0
        %2146 = vmatpush1.bf16.xpose.msra.mxu0 0
        %2147 = vmatprep.subr.bf16.mxu0 0
        %2148 = vmatpush1.bf16.xpose.msra.mxu0 0
        %2149 = vmatprep.subr.bf16.mxu0 0
        %2150 = vmatpush1.bf16.xpose.msra.mxu0 0
        %2151 = vmatprep.subr.bf16.mxu0 0
        %2152 = vmatpush1.bf16.xpose.msra.mxu0 0
        %2153 = vmatprep.subr.bf16.mxu0 0
        %2154 = vmatpush1.bf16.xpose.msra.mxu0 0
        %2155 = vmatprep.subr.bf16.mxu0 0
        %2156 = vmatpush1.bf16.xpose.msra.mxu0 0
        %2157 = vmatprep.subr.bf16.mxu0 0
        %2158 = vmatpush1.bf16.xpose.msra.mxu0 0
        %2159 = vmatprep.subr.bf16.mxu0 0
        %2160 = vmatpush1.bf16.xpose.msra.mxu0 0
        %2161 = vmatprep.subr.bf16.mxu0 0
        %2162 = vmatpush1.bf16.xpose.msra.mxu0 0
        %2163 = vmatprep.subr.bf16.mxu0 0
        %2164 = vmatpush1.bf16.xpose.msra.mxu0 0
        %2165 = vmatprep.subr.bf16.mxu0 0
        %2166 = vmatpush1.bf16.xpose.msra.mxu0 0
        %2167 = vmatprep.subr.bf16.mxu0 0
        %2168 = vmatpush1.bf16.xpose.msra.mxu0 0
        %2169 = vmatprep.subr.bf16.mxu0 0
        %2170 = vmatpush1.bf16.xpose.msra.mxu0 0
        %2171 = vmatprep.subr.bf16.mxu0 0
        %2172 = vmatpush1.bf16.xpose.msra.mxu0 0
        %2173 = vmatprep.mubr.bf16.mxu0 0
        %2174 = vmatmul.mubr.bf16.gmra.mrb[0].mxu0 %v2136
        %v2175 = vpop.f32.mrb[0].mxu0
        %v2176 = vadd.f32 0.0, %v2175
        %v2177 = vpop.f32.mrb[0].mxu0
        %v2178 = vpop.f32.mrb[0].mxu0
        %v2179 = vpop.f32.mrb[0].mxu0
        %2180 = vdwg.mxu0
        %v2182 = vsel %vm1352, %v2038, 0
        %v2185 = vsel %vm1352, %v2042, 0
        %2187 = vmatprep.subr.bf16.mxu0 0
        %2188 = vmatpush1.bf16.xpose.msra.mxu0 %v2185
        %2189 = vmatprep.subr.bf16.mxu0 0
        %2190 = vmatpush1.bf16.xpose.msra.mxu0 0
        %2191 = vmatprep.subr.bf16.mxu0 0
        %2192 = vmatpush1.bf16.xpose.msra.mxu0 0
        %2193 = vmatprep.subr.bf16.mxu0 0
        %2194 = vmatpush1.bf16.xpose.msra.mxu0 0
        %2195 = vmatprep.subr.bf16.mxu0 0
        %2196 = vmatpush1.bf16.xpose.msra.mxu0 0
        %2197 = vmatprep.subr.bf16.mxu0 0
        %2198 = vmatpush1.bf16.xpose.msra.mxu0 0
        %2199 = vmatprep.subr.bf16.mxu0 0
        %2200 = vmatpush1.bf16.xpose.msra.mxu0 0
        %2201 = vmatprep.subr.bf16.mxu0 0
        %2202 = vmatpush1.bf16.xpose.msra.mxu0 0
        %2203 = vmatprep.subr.bf16.mxu0 0
        %2204 = vmatpush1.bf16.xpose.msra.mxu0 0
        %2205 = vmatprep.subr.bf16.mxu0 0
        %2206 = vmatpush1.bf16.xpose.msra.mxu0 0
        %2207 = vmatprep.subr.bf16.mxu0 0
        %2208 = vmatpush1.bf16.xpose.msra.mxu0 0
        %2209 = vmatprep.subr.bf16.mxu0 0
        %2210 = vmatpush1.bf16.xpose.msra.mxu0 0
        %2211 = vmatprep.subr.bf16.mxu0 0
        %2212 = vmatpush1.bf16.xpose.msra.mxu0 0
        %2213 = vmatprep.subr.bf16.mxu0 0
        %2214 = vmatpush1.bf16.xpose.msra.mxu0 0
        %2215 = vmatprep.subr.bf16.mxu0 0
        %2216 = vmatpush1.bf16.xpose.msra.mxu0 0
        %2217 = vmatprep.subr.bf16.mxu0 0
        %2218 = vmatpush1.bf16.xpose.msra.mxu0 0
        %2219 = vmatprep.mubr.bf16.mxu0 0
        %2220 = vmatmul.mubr.bf16.gmra.mrb[0].mxu0 %v2182
        %v2221 = vpop.f32.mrb[0].mxu0
        %v2222 = vadd.f32 0.0, %v2221
        %v2223 = vpop.f32.mrb[0].mxu0
        %v2224 = vpop.f32.mrb[0].mxu0
        %v2225 = vpop.f32.mrb[0].mxu0
        %2226 = vdwg.mxu0
        %v2227 = vmul.f32 %v2084, 0.35355338
        %v2228 = vmul.f32 %v2130, 0.35355338
        %v2229 = vmul.f32 %v2176, 0.35355338
        %v2230 = vmul.f32 %v2222, 0.35355338
        %v2232 = vlaneseq
        %v2233 = vshrl.u32 %v2232, 7
        %v2234 = vsub.s32 0, %v2233
        %v2235 = vrot.slane %v2034, %v2234
        %v2237 = vadd.f32 %v2227, %v2235
        %v2238 = vadd.f32 %v2228, %v2235
        %v2239 = vadd.f32 %v2229, %v2235
        %v2240 = vadd.f32 %v2230, %v2235
        %v2241 = vsel %vm1352, %v2237, -inf
        %2242 = vmax.xlane.f32.xlu0 %v2241
        %v2243 = vpop.xlane.xlu0 %2242
        %v2244 = vsel %vm1352, %v2238, -inf
        %2245 = vmax.xlane.f32.xlu0 %v2244
        %v2246 = vpop.xlane.xlu0 %2245
        %v2247 = vsel %vm1352, %v2239, -inf
        %2248 = vmax.xlane.f32.xlu0 %v2247
        %v2249 = vpop.xlane.xlu0 %2248
        %v2250 = vsel %vm1352, %v2240, -inf
        %2251 = vmax.xlane.f32.xlu0 %v2250
        %v2252 = vpop.xlane.xlu0 %2251
        %v2253 = vsub.f32 %v2237, %v2243
        %v2254 = vsub.f32 %v2238, %v2246
        %v2255 = vsub.f32 %v2239, %v2249
        %v2256 = vsub.f32 %v2240, %v2252
        %v2257 = vmul.f32 %v2253, 1.442695
        %v2258 = vpow.pop %v2257
        %v2259 = vmul.f32 %v2254, 1.442695
        %v2260 = vpow.pop %v2259
        %v2261 = vmul.f32 %v2255, 1.442695
        %v2262 = vpow.pop %v2261
        %v2263 = vmul.f32 %v2256, 1.442695
        %v2264 = vpow.pop %v2263
        %v2265 = vsel %vm1352, %v2258, 0.0
        %2266 = vadd.xlane.f32.xlu0 %v2265
        %v2267 = vpop.xlane.xlu0 %2266
        %v2268 = vsel %vm1352, %v2260, 0.0
        %2269 = vadd.xlane.f32.xlu0 %v2268
        %v2270 = vpop.xlane.xlu0 %2269
        %v2271 = vsel %vm1352, %v2262, 0.0
        %2272 = vadd.xlane.f32.xlu0 %v2271
        %v2273 = vpop.xlane.xlu0 %2272
        %v2274 = vsel %vm1352, %v2264, 0.0
        %2275 = vadd.xlane.f32.xlu0 %v2274
        %v2276 = vpop.xlane.xlu0 %2275
        %v2277 = vrcp.pop %v2267
        %v2278 = vrcp.pop %v2270
        %v2279 = vrcp.pop %v2273
        %v2280 = vrcp.pop %v2276
        %v2281 = vmul.f32 %v2258, %v2277
        %v2282 = vmul.f32 %v2260, %v2278
        %v2283 = vmul.f32 %v2262, %v2279
        %v2284 = vmul.f32 %v2264, %v2280
        %v2285 = vpack.c.bf16 %v2281, %v2281
        %v2286 = vpack.c.bf16 %v2282, %v2282
        %v2287 = vpack.c.bf16 %v2283, %v2283
        %v2288 = vpack.c.bf16 %v2284, %v2284
        %2290 = vrot.lane.b32.xlu0 %v2039, 96
        %v2291 = vpop.permute.xlu0 %2290
        %v2293 = vsel %vm1352, %v2285, 0
        %v2296 = vsel %vm1607, %v2291, 0
        %2298 = vmatprep.subr.bf16.mxu0 0
        %2299 = vmatpush1.bf16.msra.mxu0 %v2296
        %2300 = vmatprep.subr.bf16.mxu0 0
        %2301 = vmatpush1.bf16.msra.mxu0 0
        %2302 = vmatprep.subr.bf16.mxu0 0
        %2303 = vmatpush1.bf16.msra.mxu0 0
        %2304 = vmatprep.subr.bf16.mxu0 0
        %2305 = vmatpush1.bf16.msra.mxu0 0
        %2306 = vmatprep.subr.bf16.mxu0 0
        %2307 = vmatpush1.bf16.msra.mxu0 0
        %2308 = vmatprep.subr.bf16.mxu0 0
        %2309 = vmatpush1.bf16.msra.mxu0 0
        %2310 = vmatprep.subr.bf16.mxu0 0
        %2311 = vmatpush1.bf16.msra.mxu0 0
        %2312 = vmatprep.subr.bf16.mxu0 0
        %2313 = vmatpush1.bf16.msra.mxu0 0
        %2314 = vmatprep.subr.bf16.mxu0 0
        %2315 = vmatpush1.bf16.msra.mxu0 0
        %2316 = vmatprep.subr.bf16.mxu0 0
        %2317 = vmatpush1.bf16.msra.mxu0 0
        %2318 = vmatprep.subr.bf16.mxu0 0
        %2319 = vmatpush1.bf16.msra.mxu0 0
        %2320 = vmatprep.subr.bf16.mxu0 0
        %2321 = vmatpush1.bf16.msra.mxu0 0
        %2322 = vmatprep.subr.bf16.mxu0 0
        %2323 = vmatpush1.bf16.msra.mxu0 0
        %2324 = vmatprep.subr.bf16.mxu0 0
        %2325 = vmatpush1.bf16.msra.mxu0 0
        %2326 = vmatprep.subr.bf16.mxu0 0
        %2327 = vmatpush1.bf16.msra.mxu0 0
        %2328 = vmatprep.subr.bf16.mxu0 0
        %2329 = vmatpush1.bf16.msra.mxu0 0
        %2330 = vmatprep.mubr.bf16.mxu0 0
        %2331 = vmatmul.mubr.bf16.gmra.mrb[0].mxu0 %v2293
        %v2332 = vpop.f32.mrb[0].mxu0
        %v2333 = vadd.f32 0.0, %v2332
        %v2334 = vpop.f32.mrb[0].mxu0
        %v2335 = vpop.f32.mrb[0].mxu0
        %v2336 = vpop.f32.mrb[0].mxu0
        %2337 = vdwg.mxu0
        %2339 = vrot.lane.b32.xlu0 %v2040, 96
        %v2340 = vpop.permute.xlu0 %2339
        %v2342 = vsel %vm1352, %v2286, 0
        %v2345 = vsel %vm1607, %v2340, 0
        %2347 = vmatprep.subr.bf16.mxu0 0
        %2348 = vmatpush1.bf16.msra.mxu0 %v2345
        %2349 = vmatprep.subr.bf16.mxu0 0
        %2350 = vmatpush1.bf16.msra.mxu0 0
        %2351 = vmatprep.subr.bf16.mxu0 0
        %2352 = vmatpush1.bf16.msra.mxu0 0
        %2353 = vmatprep.subr.bf16.mxu0 0
        %2354 = vmatpush1.bf16.msra.mxu0 0
        %2355 = vmatprep.subr.bf16.mxu0 0
        %2356 = vmatpush1.bf16.msra.mxu0 0
        %2357 = vmatprep.subr.bf16.mxu0 0
        %2358 = vmatpush1.bf16.msra.mxu0 0
        %2359 = vmatprep.subr.bf16.mxu0 0
        %2360 = vmatpush1.bf16.msra.mxu0 0
        %2361 = vmatprep.subr.bf16.mxu0 0
        %2362 = vmatpush1.bf16.msra.mxu0 0
        %2363 = vmatprep.subr.bf16.mxu0 0
        %2364 = vmatpush1.bf16.msra.mxu0 0
        %2365 = vmatprep.subr.bf16.mxu0 0
        %2366 = vmatpush1.bf16.msra.mxu0 0
        %2367 = vmatprep.subr.bf16.mxu0 0
        %2368 = vmatpush1.bf16.msra.mxu0 0
        %2369 = vmatprep.subr.bf16.mxu0 0
        %2370 = vmatpush1.bf16.msra.mxu0 0
        %2371 = vmatprep.subr.bf16.mxu0 0
        %2372 = vmatpush1.bf16.msra.mxu0 0
        %2373 = vmatprep.subr.bf16.mxu0 0
        %2374 = vmatpush1.bf16.msra.mxu0 0
        %2375 = vmatprep.subr.bf16.mxu0 0
        %2376 = vmatpush1.bf16.msra.mxu0 0
        %2377 = vmatprep.subr.bf16.mxu0 0
        %2378 = vmatpush1.bf16.msra.mxu0 0
        %2379 = vmatprep.mubr.bf16.mxu0 0
        %2380 = vmatmul.mubr.bf16.gmra.mrb[0].mxu0 %v2342
        %v2381 = vpop.f32.mrb[0].mxu0
        %v2382 = vadd.f32 0.0, %v2381
        %v2383 = vpop.f32.mrb[0].mxu0
        %v2384 = vpop.f32.mrb[0].mxu0
        %v2385 = vpop.f32.mrb[0].mxu0
        %2386 = vdwg.mxu0
        %2388 = vrot.lane.b32.xlu0 %v2041, 96
        %v2389 = vpop.permute.xlu0 %2388
        %v2391 = vsel %vm1352, %v2287, 0
        %v2394 = vsel %vm1607, %v2389, 0
        %2396 = vmatprep.subr.bf16.mxu0 0
        %2397 = vmatpush1.bf16.msra.mxu0 %v2394
        %2398 = vmatprep.subr.bf16.mxu0 0
        %2399 = vmatpush1.bf16.msra.mxu0 0
        %2400 = vmatprep.subr.bf16.mxu0 0
        %2401 = vmatpush1.bf16.msra.mxu0 0
        %2402 = vmatprep.subr.bf16.mxu0 0
        %2403 = vmatpush1.bf16.msra.mxu0 0
        %2404 = vmatprep.subr.bf16.mxu0 0
        %2405 = vmatpush1.bf16.msra.mxu0 0
        %2406 = vmatprep.subr.bf16.mxu0 0
        %2407 = vmatpush1.bf16.msra.mxu0 0
        %2408 = vmatprep.subr.bf16.mxu0 0
        %2409 = vmatpush1.bf16.msra.mxu0 0
        %2410 = vmatprep.subr.bf16.mxu0 0
        %2411 = vmatpush1.bf16.msra.mxu0 0
        %2412 = vmatprep.subr.bf16.mxu0 0
        %2413 = vmatpush1.bf16.msra.mxu0 0
        %2414 = vmatprep.subr.bf16.mxu0 0
        %2415 = vmatpush1.bf16.msra.mxu0 0
        %2416 = vmatprep.subr.bf16.mxu0 0
        %2417 = vmatpush1.bf16.msra.mxu0 0
        %2418 = vmatprep.subr.bf16.mxu0 0
        %2419 = vmatpush1.bf16.msra.mxu0 0
        %2420 = vmatprep.subr.bf16.mxu0 0
        %2421 = vmatpush1.bf16.msra.mxu0 0
        %2422 = vmatprep.subr.bf16.mxu0 0
        %2423 = vmatpush1.bf16.msra.mxu0 0
        %2424 = vmatprep.subr.bf16.mxu0 0
        %2425 = vmatpush1.bf16.msra.mxu0 0
        %2426 = vmatprep.subr.bf16.mxu0 0
        %2427 = vmatpush1.bf16.msra.mxu0 0
        %2428 = vmatprep.mubr.bf16.mxu0 0
        %2429 = vmatmul.mubr.bf16.gmra.mrb[0].mxu0 %v2391
        %v2430 = vpop.f32.mrb[0].mxu0
        %v2431 = vadd.f32 0.0, %v2430
        %v2432 = vpop.f32.mrb[0].mxu0
        %v2433 = vpop.f32.mrb[0].mxu0
        %v2434 = vpop.f32.mrb[0].mxu0
        %2435 = vdwg.mxu0
        %2437 = vrot.lane.b32.xlu0 %v2042, 96
        %v2438 = vpop.permute.xlu0 %2437
        %v2440 = vsel %vm1352, %v2288, 0
        %v2443 = vsel %vm1607, %v2438, 0
        %2445 = vmatprep.subr.bf16.mxu0 0
        %2446 = vmatpush1.bf16.msra.mxu0 %v2443
        %2447 = vmatprep.subr.bf16.mxu0 0
        %2448 = vmatpush1.bf16.msra.mxu0 0
        %2449 = vmatprep.subr.bf16.mxu0 0
        %2450 = vmatpush1.bf16.msra.mxu0 0
        %2451 = vmatprep.subr.bf16.mxu0 0
        %2452 = vmatpush1.bf16.msra.mxu0 0
        %2453 = vmatprep.subr.bf16.mxu0 0
        %2454 = vmatpush1.bf16.msra.mxu0 0
        %2455 = vmatprep.subr.bf16.mxu0 0
        %2456 = vmatpush1.bf16.msra.mxu0 0
        %2457 = vmatprep.subr.bf16.mxu0 0
        %2458 = vmatpush1.bf16.msra.mxu0 0
        %2459 = vmatprep.subr.bf16.mxu0 0
        %2460 = vmatpush1.bf16.msra.mxu0 0
        %2461 = vmatprep.subr.bf16.mxu0 0
        %2462 = vmatpush1.bf16.msra.mxu0 0
        %2463 = vmatprep.subr.bf16.mxu0 0
        %2464 = vmatpush1.bf16.msra.mxu0 0
        %2465 = vmatprep.subr.bf16.mxu0 0
        %2466 = vmatpush1.bf16.msra.mxu0 0
        %2467 = vmatprep.subr.bf16.mxu0 0
        %2468 = vmatpush1.bf16.msra.mxu0 0
        %2469 = vmatprep.subr.bf16.mxu0 0
        %2470 = vmatpush1.bf16.msra.mxu0 0
        %2471 = vmatprep.subr.bf16.mxu0 0
        %2472 = vmatpush1.bf16.msra.mxu0 0
        %2473 = vmatprep.subr.bf16.mxu0 0
        %2474 = vmatpush1.bf16.msra.mxu0 0
        %2475 = vmatprep.subr.bf16.mxu0 0
        %2476 = vmatpush1.bf16.msra.mxu0 0
        %2477 = vmatprep.mubr.bf16.mxu0 0
        %2478 = vmatmul.mubr.bf16.gmra.mrb[0].mxu0 %v2440
        %v2479 = vpop.f32.mrb[0].mxu0
        %v2480 = vadd.f32 0.0, %v2479
        %v2481 = vpop.f32.mrb[0].mxu0
        %v2482 = vpop.f32.mrb[0].mxu0
        %v2483 = vpop.f32.mrb[0].mxu0
        %2484 = vdwg.mxu0
        %2486 = vrot.lane.b32.xlu0 %v2382, 8
        %v2487 = vpop.permute.xlu0 %2486
        %2490 = vrot.lane.b32.xlu0 %v2431, 16
        %v2491 = vpop.permute.xlu0 %2490
        %2494 = vrot.lane.b32.xlu0 %v2480, 24
        %v2495 = vpop.permute.xlu0 %2494
        %v2497 = vsel %vm1352, %v2333, %v2487
        %v2498 = vsel %vm1808, %v2497, %v2491
        %v2499 = vsel %vm1810, %v2498, %v2495
        %v2500 = vld [vmem:[%s1204] sm:$0xff]
        %v2501 = vld [vmem:[%s1204 + $0x8] sm:$0xff]
        %v2502 = vld [vmem:[%s1204 + $0x10] sm:$0xff]
        %v2503 = vld [vmem:[%s1204 + $0x18] sm:$0xff]
        %v2504 = vpack.c.bf16 %v2499, %v2499
        %v2505 = vpack.c.bf16 %v2501, %v2500
        %v2506 = vpack.c.bf16 %v2503, %v2502
        %v2507 = vld [vmem:[%s1207] sm:$0x1]
        %v2509 = vlaneseq
        %v2510 = vshrl.u32 %v2509, 7
        %v2511 = vsub.s32 0, %v2510
        %v2512 = vrot.slane %v2507, %v2511
        %v2515 = vsel %vm1290, %v2504, 0
        %2517 = vmatprep.subr.bf16.mxu0 0
        %2518 = vmatpush1.bf16.msra.mxu0 %v2505
        %2519 = vmatprep.subr.bf16.mxu0 0
        %2520 = vmatpush1.bf16.msra.mxu0 %v2506
        %2521 = vmatprep.subr.bf16.mxu0 0
        %2522 = vmatpush1.bf16.msra.mxu0 0
        %2523 = vmatprep.subr.bf16.mxu0 0
        %2524 = vmatpush1.bf16.msra.mxu0 0
        %2525 = vmatprep.subr.bf16.mxu0 0
        %2526 = vmatpush1.bf16.msra.mxu0 0
        %2527 = vmatprep.subr.bf16.mxu0 0
        %2528 = vmatpush1.bf16.msra.mxu0 0
        %2529 = vmatprep.subr.bf16.mxu0 0
        %2530 = vmatpush1.bf16.msra.mxu0 0
        %2531 = vmatprep.subr.bf16.mxu0 0
        %2532 = vmatpush1.bf16.msra.mxu0 0
        %2533 = vmatprep.subr.bf16.mxu0 0
        %2534 = vmatpush1.bf16.msra.mxu0 0
        %2535 = vmatprep.subr.bf16.mxu0 0
        %2536 = vmatpush1.bf16.msra.mxu0 0
        %2537 = vmatprep.subr.bf16.mxu0 0
        %2538 = vmatpush1.bf16.msra.mxu0 0
        %2539 = vmatprep.subr.bf16.mxu0 0
        %2540 = vmatpush1.bf16.msra.mxu0 0
        %2541 = vmatprep.subr.bf16.mxu0 0
        %2542 = vmatpush1.bf16.msra.mxu0 0
        %2543 = vmatprep.subr.bf16.mxu0 0
        %2544 = vmatpush1.bf16.msra.mxu0 0
        %2545 = vmatprep.subr.bf16.mxu0 0
        %2546 = vmatpush1.bf16.msra.mxu0 0
        %2547 = vmatprep.subr.bf16.mxu0 0
        %2548 = vmatpush1.bf16.msra.mxu0 0
        %2549 = vmatprep.mubr.bf16.mxu0 0
        %2550 = vmatmul.mubr.bf16.gmra.mrb[0].mxu0 %v2515
        %v2551 = vpop.f32.mrb[0].mxu0
        %v2552 = vadd.f32 %v2512, %v2551
        %v2553 = vpop.f32.mrb[0].mxu0
        %v2554 = vpop.f32.mrb[0].mxu0
        %v2555 = vpop.f32.mrb[0].mxu0
        %2556 = vdwg.mxu0
        %v2557 = vadd.f32 %v2552, %v1899
        %v2558 = vld [vmem:[%s1210] sm:$0x1]
        %v2559 = vld [vmem:[%s1213] sm:$0x1]
        %v2560 = vsel %vm1290, %v2557, 0.0
        %2561 = vadd.xlane.f32.xlu0 %v2560
        %v2562 = vpop.xlane.xlu0 %2561
        %v2563 = vmul.f32 %v2562, %v1875
        %v2564 = vsub.f32 %v2557, %v2563
        %v2565 = vmul.f32 %v2564, %v2564
        %v2566 = vsel %vm1290, %v2565, 0.0
        %2567 = vadd.xlane.f32.xlu0 %v2566
        %v2568 = vpop.xlane.xlu0 %2567
        %v2569 = vmul.f32 %v2568, %v1875
        %v2570 = vadd.f32 %v2569, 1e-12
        %v2571 = vrsqrt.pop %v2570
        %v2572 = vmul.f32 %v2564, %v2571
        %v2574 = vlaneseq
        %v2575 = vshrl.u32 %v2574, 7
        %v2576 = vsub.s32 0, %v2575
        %v2577 = vrot.slane %v2558, %v2576
        %v2579 = vmul.f32 %v2572, %v2577
        %v2581 = vlaneseq
        %v2582 = vshrl.u32 %v2581, 7
        %v2583 = vsub.s32 0, %v2582
        %v2584 = vrot.slane %v2559, %v2583
        %v2586 = vadd.f32 %v2579, %v2584
        %v2587 = vld [vmem:[%s1218] sm:$0xff]
        %v2588 = vld [vmem:[%s1218 + $0x8] sm:$0xff]
        %v2589 = vld [vmem:[%s1218 + $0x10] sm:$0xff]
        %v2590 = vld [vmem:[%s1218 + $0x18] sm:$0xff]
        %v2591 = vpack.c.bf16 %v2586, %v2586
        %v2592 = vpack.c.bf16 %v2588, %v2587
        %v2593 = vpack.c.bf16 %v2590, %v2589
        %v2594 = vld [vmem:[%s1221] sm:$0x1]
        %v2596 = vlaneseq
        %v2597 = vshrl.u32 %v2596, 7
        %v2598 = vsub.s32 0, %v2597
        %v2599 = vrot.slane %v2594, %v2598
        %v2602 = vsel %vm1290, %v2591, 0
        %2604 = vmatprep.subr.bf16.mxu0 0
        %2605 = vmatpush1.bf16.msra.mxu0 %v2592
        %2606 = vmatprep.subr.bf16.mxu0 0
        %2607 = vmatpush1.bf16.msra.mxu0 %v2593
        %2608 = vmatprep.subr.bf16.mxu0 0
        %2609 = vmatpush1.bf16.msra.mxu0 0
        %2610 = vmatprep.subr.bf16.mxu0 0
        %2611 = vmatpush1.bf16.msra.mxu0 0
        %2612 = vmatprep.subr.bf16.mxu0 0
        %2613 = vmatpush1.bf16.msra.mxu0 0
        %2614 = vmatprep.subr.bf16.mxu0 0
        %2615 = vmatpush1.bf16.msra.mxu0 0
        %2616 = vmatprep.subr.bf16.mxu0 0
        %2617 = vmatpush1.bf16.msra.mxu0 0
        %2618 = vmatprep.subr.bf16.mxu0 0
        %2619 = vmatpush1.bf16.msra.mxu0 0
        %2620 = vmatprep.subr.bf16.mxu0 0
        %2621 = vmatpush1.bf16.msra.mxu0 0
        %2622 = vmatprep.subr.bf16.mxu0 0
        %2623 = vmatpush1.bf16.msra.mxu0 0
        %2624 = vmatprep.subr.bf16.mxu0 0
        %2625 = vmatpush1.bf16.msra.mxu0 0
        %2626 = vmatprep.subr.bf16.mxu0 0
        %2627 = vmatpush1.bf16.msra.mxu0 0
        %2628 = vmatprep.subr.bf16.mxu0 0
        %2629 = vmatpush1.bf16.msra.mxu0 0
        %2630 = vmatprep.subr.bf16.mxu0 0
        %2631 = vmatpush1.bf16.msra.mxu0 0
        %2632 = vmatprep.subr.bf16.mxu0 0
        %2633 = vmatpush1.bf16.msra.mxu0 0
        %2634 = vmatprep.subr.bf16.mxu0 0
        %2635 = vmatpush1.bf16.msra.mxu0 0
        %2636 = vmatprep.mubr.bf16.mxu0 0
        %2637 = vmatmul.mubr.bf16.gmra.mrb[0].mxu0 %v2602
        %v2638 = vpop.f32.mrb[0].mxu0
        %v2639 = vadd.f32 %v2599, %v2638
        %v2640 = vpop.f32.mrb[0].mxu0
        %v2641 = vpop.f32.mrb[0].mxu0
        %v2642 = vpop.f32.mrb[0].mxu0
        %2643 = vdwg.mxu0
        %v2644 = vmul.f32 %v2639, 0.5
        %v2645 = vmul.f32 %v2639, 0.044715
        %v2646 = vmul.f32 %v2645, %v2639
        %v2647 = vmul.f32 %v2646, %v2639
        %v2648 = vadd.f32 %v2639, %v2647
        %v2649 = vmul.f32 %v2648, 0.7978846
        %v2650 = vtanh.pop %v2649
        %v2651 = vadd.f32 %v2650, 1.0
        %v2652 = vmul.f32 %v2644, %v2651
        %v2653 = vld [vmem:[%s1226] sm:$0xff]
        %v2654 = vld [vmem:[%s1226 + $0x8] sm:$0xff]
        %v2655 = vld [vmem:[%s1226 + $0x10] sm:$0xff]
        %v2656 = vld [vmem:[%s1226 + $0x18] sm:$0xff]
        %v2657 = vld [vmem:[%s1226 + $0x20] sm:$0xff]
        %v2658 = vld [vmem:[%s1226 + $0x28] sm:$0xff]
        %v2659 = vld [vmem:[%s1226 + $0x30] sm:$0xff]
        %v2660 = vld [vmem:[%s1226 + $0x38] sm:$0xff]
        %v2661 = vpack.c.bf16 %v2652, %v2652
        %v2662 = vpack.c.bf16 %v2654, %v2653
        %v2663 = vpack.c.bf16 %v2656, %v2655
        %v2664 = vpack.c.bf16 %v2658, %v2657
        %v2665 = vpack.c.bf16 %v2660, %v2659
        %v2666 = vld [vmem:[%s1229] sm:$0x1]
        %v2668 = vlaneseq
        %v2669 = vshrl.u32 %v2668, 7
        %v2670 = vsub.s32 0, %v2669
        %v2671 = vrot.slane %v2666, %v2670
        %vm2673 = vcmask 523264
        %v2675 = vsel %vm2673, %v2661, 0
        %2677 = vmatprep.subr.bf16.mxu0 0
        %2678 = vmatpush1.bf16.msra.mxu0 %v2662
        %2679 = vmatprep.subr.bf16.mxu0 0
        %2680 = vmatpush1.bf16.msra.mxu0 %v2663
        %2681 = vmatprep.subr.bf16.mxu0 0
        %2682 = vmatpush1.bf16.msra.mxu0 %v2664
        %2683 = vmatprep.subr.bf16.mxu0 0
        %2684 = vmatpush1.bf16.msra.mxu0 %v2665
        %2685 = vmatprep.subr.bf16.mxu0 0
        %2686 = vmatpush1.bf16.msra.mxu0 0
        %2687 = vmatprep.subr.bf16.mxu0 0
        %2688 = vmatpush1.bf16.msra.mxu0 0
        %2689 = vmatprep.subr.bf16.mxu0 0
        %2690 = vmatpush1.bf16.msra.mxu0 0
        %2691 = vmatprep.subr.bf16.mxu0 0
        %2692 = vmatpush1.bf16.msra.mxu0 0
        %2693 = vmatprep.subr.bf16.mxu0 0
        %2694 = vmatpush1.bf16.msra.mxu0 0
        %2695 = vmatprep.subr.bf16.mxu0 0
        %2696 = vmatpush1.bf16.msra.mxu0 0
        %2697 = vmatprep.subr.bf16.mxu0 0
        %2698 = vmatpush1.bf16.msra.mxu0 0
        %2699 = vmatprep.subr.bf16.mxu0 0
        %2700 = vmatpush1.bf16.msra.mxu0 0
        %2701 = vmatprep.subr.bf16.mxu0 0
        %2702 = vmatpush1.bf16.msra.mxu0 0
        %2703 = vmatprep.subr.bf16.mxu0 0
        %2704 = vmatpush1.bf16.msra.mxu0 0
        %2705 = vmatprep.subr.bf16.mxu0 0
        %2706 = vmatpush1.bf16.msra.mxu0 0
        %2707 = vmatprep.subr.bf16.mxu0 0
        %2708 = vmatpush1.bf16.msra.mxu0 0
        %2709 = vmatprep.mubr.bf16.mxu0 0
        %2710 = vmatmul.mubr.bf16.gmra.mrb[0].mxu0 %v2675
        %v2711 = vpop.f32.mrb[0].mxu0
        %v2712 = vadd.f32 %v2671, %v2711
        %v2713 = vpop.f32.mrb[0].mxu0
        %v2714 = vpop.f32.mrb[0].mxu0
        %v2715 = vpop.f32.mrb[0].mxu0
        %2716 = vdwg.mxu0
        %v2717 = vadd.f32 %v2712, %v2586
        %v2718 = vld [vmem:[%s1232] sm:$0x1]
        %v2719 = vld [vmem:[%s1235] sm:$0x1]
        %v2720 = vsel %vm1290, %v2717, 0.0
        %2721 = vadd.xlane.f32.xlu0 %v2720
        %v2722 = vpop.xlane.xlu0 %2721
        %v2723 = vmul.f32 %v2722, %v1875
        %v2724 = vsub.f32 %v2717, %v2723
        %v2725 = vmul.f32 %v2724, %v2724
        %v2726 = vsel %vm1290, %v2725, 0.0
        %2727 = vadd.xlane.f32.xlu0 %v2726
        %v2728 = vpop.xlane.xlu0 %2727
        %v2729 = vmul.f32 %v2728, %v1875
        %v2730 = vadd.f32 %v2729, 1e-12
        %v2731 = vrsqrt.pop %v2730
        %v2732 = vmul.f32 %v2724, %v2731
        %v2734 = vlaneseq
        %v2735 = vshrl.u32 %v2734, 7
        %v2736 = vsub.s32 0, %v2735
        %v2737 = vrot.slane %v2718, %v2736
        %v2739 = vmul.f32 %v2732, %v2737
        %v2741 = vlaneseq
        %v2742 = vshrl.u32 %v2741, 7
        %v2743 = vsub.s32 0, %v2742
        %v2744 = vrot.slane %v2719, %v2743
        %v2746 = vadd.f32 %v2739, %v2744
        %2747 = vst.msk [vmem:[#allocation2] sm:$0xff] %vm1290, %v2746
        %p2748 = scmp.eq.s32.totalorder %s48, 1
        // Predicated region
        $region141: #{rrs_forward.3} parent=131 // pred_check
          %p2749 = pneg %p2748
        $region142: #{rrs_forward.3} parent=131 // pred_check_branch
          %2751 = sbr.rel (%p2749) target = $region144
        $region143: #{rrs_forward.3} parent=131 // pred_region
          %v2752 = vld [vmem:[%s26] sm:$0xff]
          %v2753 = vld [vmem:[%s26 + $0x8] sm:$0xff]
          %v2754 = vld [vmem:[%s26 + $0x10] sm:$0xff]
          %v2755 = vld [vmem:[%s26 + $0x18] sm:$0xff]
          %v2756 = vpack.c.bf16 %v2746, %v2746
          %v2757 = vpack.c.bf16 %v2753, %v2752
          %v2758 = vpack.c.bf16 %v2755, %v2754
          %v2759 = vld [vmem:[#allocation3] sm:$0x1]
          %v2761 = vlaneseq
          %v2762 = vshrl.u32 %v2761, 7
          %v2763 = vsub.s32 0, %v2762
          %v2764 = vrot.slane %v2759, %v2763
          %v2767 = vsel %vm1290, %v2756, 0
          %2769 = vmatprep.subr.bf16.mxu0 0
          %2770 = vmatpush1.bf16.msra.mxu0 %v2757
          %2771 = vmatprep.subr.bf16.mxu0 0
          %2772 = vmatpush1.bf16.msra.mxu0 %v2758
          %2773 = vmatprep.subr.bf16.mxu0 0
          %2774 = vmatpush1.bf16.msra.mxu0 0
          %2775 = vmatprep.subr.bf16.mxu0 0
          %2776 = vmatpush1.bf16.msra.mxu0 0
          %2777 = vmatprep.subr.bf16.mxu0 0
          %2778 = vmatpush1.bf16.msra.mxu0 0
          %2779 = vmatprep.subr.bf16.mxu0 0
          %2780 = vmatpush1.bf16.msra.mxu0 0
          %2781 = vmatprep.subr.bf16.mxu0 0
          %2782 = vmatpush1.bf16.msra.mxu0 0
          %2783 = vmatprep.subr.bf16.mxu0 0
          %2784 = vmatpush1.bf16.msra.mxu0 0
          %2785 = vmatprep.subr.bf16.mxu0 0
          %2786 = vmatpush1.bf16.msra.mxu0 0
          %2787 = vmatprep.subr.bf16.mxu0 0
          %2788 = vmatpush1.bf16.msra.mxu0 0
          %2789 = vmatprep.subr.bf16.mxu0 0
          %2790 = vmatpush1.bf16.msra.mxu0 0
          %2791 = vmatprep.subr.bf16.mxu0 0
          %2792 = vmatpush1.bf16.msra.mxu0 0
          %2793 = vmatprep.subr.bf16.mxu0 0
          %2794 = vmatpush1.bf16.msra.mxu0 0
          %2795 = vmatprep.subr.bf16.mxu0 0
          %2796 = vmatpush1.bf16.msra.mxu0 0
          %2797 = vmatprep.subr.bf16.mxu0 0
          %2798 = vmatpush1.bf16.msra.mxu0 0
          %2799 = vmatprep.subr.bf16.mxu0 0
          %2800 = vmatpush1.bf16.msra.mxu0 0
          %2801 = vmatprep.mubr.bf16.mxu0 0
          %2802 = vmatmul.mubr.bf16.gmra.mrb[0].mxu0 %v2767
          %v2803 = vpop.f32.mrb[0].mxu0
          %v2804 = vadd.f32 %v2764, %v2803
          %v2805 = vpop.f32.mrb[0].mxu0
          %v2806 = vpop.f32.mrb[0].mxu0
          %v2807 = vpop.f32.mrb[0].mxu0
          %2808 = vdwg.mxu0
          %2809 = vst [vmem:[%s1146] sm:$0xff] %v2804
        $region144: #{rrs_forward.3} parent=131 // pred_fallthru
          _
        %s2810 = sand.u32 %s771, 1
        %s2811 = scalar_lea.sflag [#allocation5], %s2810
        %s2812 = sand.u32 %s771, 1
        %s2813 = smul.addr %s2812, 8
        %s2814 = scalar_lea.vmem [#allocation6], %s2813
        // Predicated region
        $region145: #{rrs_forward.3} parent=131 // pred_check
          %p2815 = pneg %p781
        $region146: #{rrs_forward.3} parent=131 // pred_check_branch
          %2817 = sbr.rel (%p2815) target = $region148
        $region147: #{rrs_forward.3} parent=131 // pred_region
          %s2819 = ssub.s32 128, 128
          %2820 = vsyncadd %s2811, %s2819
          %s2821 = smul.addr %s47, 128
          %s2822 = scalar_lea.hbm %s28, %s2821
          %s2824 = sshll.u32 %s2814, 4
          %s2825 = int_to_ptr.vmem [resolvable:$true] %s2824
          %2827 = dma.vmem_to_hbm [thread:$0]  %s2825, 128, %s2822, %s2811
        $region148: #{rrs_forward.3} parent=131 // pred_fallthru
          _
      $region132: #{rrs_forward.3} parent=5 // pred_fallthru
        _
      %p2828 = scmp.le.s32.totalorder 2, %s38
      // Predicated region
      $region149: #{rrs_forward.3} parent=5 // pred_check
        %p2829 = pneg %p2828
      $region150: #{rrs_forward.3} parent=5 // pred_check_branch
        %2831 = sbr.rel (%p2829) target = $region152
      $region151: #{rrs_forward.3} parent=5 // pred_region
        %s2832 = ssub.s32 %s38, 2
        // Predicated region
        $region153: #{rrs_forward.3} parent=151 // pred_check
          %p2833 = pneg %p787
        $region154: #{rrs_forward.3} parent=151 // pred_check_branch
          %2835 = sbr.rel (%p2833) target = $region156
        $region155: #{rrs_forward.3} parent=151 // pred_region
          %s2836 = sand.u32 %s772, 1
          %s2837 = scalar_lea.sflag [#allocation5], %s2836
          %s2838 = sand.u32 %s772, 1
          %s2839 = smul.addr %s2838, 8
          %s2840 = scalar_lea.vmem [#allocation6], %s2839
          %2841 = dma.done %s2837, 128
        $region156: #{rrs_forward.3} parent=151 // pred_fallthru
          _
      $region152: #{rrs_forward.3} parent=5 // pred_fallthru
        _
    $region6: #{rrs_forward.3} parent=1 // loop_footer
      %s42 = sadd.s32 1, %s38
    $region7: #{rrs_forward.3} parent=1 // loop_footer_branch
      %37 = sbr.rel target = $region3
    $region8: #{rrs_forward.3} parent=1 // loop_exit
      _
    %2842 = vsyncpa [#allocation4], 1
    %s2843 = scalar_lea.sflag [#allocation4], 1
    %2844 = vsyncpa %s2843, 1
    %2845 = vsyncpa [#allocation5], 1
    %s2846 = scalar_lea.sflag [#allocation5], 1
    %2847 = vsyncpa %s2846, 1

</llo_original>
